<compile_context>
chip_gen: v6e
topology: v6e:2x2x1
jax: 0.10.0
libtpu: 0.0.40
codegen_flags: <defaults>
</compile_context>

<pallas_src>
import jax
import jax.numpy as jnp
from jax.experimental import pallas as pl
from jax.experimental.pallas import tpu as pltpu

# (in, out) per layer, in application order:
# layer1..layer5, layer11, layer12, layer6..layer9, layer10
_DIMS = [(4, 8), (8, 16), (16, 32), (32, 64), (64, 128),
         (128, 256), (256, 128), (128, 64), (64, 32), (32, 16),
         (16, 8), (8, 1)]
_NUM_LAYERS = len(_DIMS)                       # 12
_NARROW_IDX = [1, 2, 3, 4, 7, 8, 9, 10]        # layers padded to 128x128
_DEFAULT_TM = 1024                             # batch tile (lanes); keep % 256 == 0


def _mlp_kernel(x_ref, w0_ref, wnar_ref, wup_ref, wdown_ref, wlast_ref, b_ref,
                out_ref):
    f32, bf16 = jnp.float32, jnp.bfloat16

    # Layer 0 (4->8): (128,4) @ (4,TM) -> (128,TM).  Rows >= 8 of w0/bias are zero,
    # so the zero-padding invariant (h rows >= real width are exactly 0) holds.
    h = jnp.dot(w0_ref[...], x_ref[...].astype(bf16), preferred_element_type=f32)
    h = jnp.maximum(h + b_ref[0:128, 0:1], 0.0).astype(bf16)

    # Narrow layers 1..4 (8->16 ... 64->128): (128,128) @ (128,TM).
    for li in range(4):
        h = jnp.dot(wnar_ref[li], h, preferred_element_type=f32)
        h = jnp.maximum(h + b_ref[0:128, li + 1:li + 2], 0.0).astype(bf16)

    # Wide layer 5 (128->256): (256,128) @ (128,TM) -> (256,TM).  No padding needed.
    h = jnp.dot(wup_ref[...], h, preferred_element_type=f32)
    h = jnp.maximum(h + b_ref[:, 5:6], 0.0).astype(bf16)

    # Wide layer 6 (256->128): (128,256) @ (256,TM) -> (128,TM).  No padding needed.
    h = jnp.dot(wdown_ref[...], h, preferred_element_type=f32)
    h = jnp.maximum(h + b_ref[0:128, 6:7], 0.0).astype(bf16)

    # Narrow layers 7..10 (128->64 ... 16->8): (128,128) @ (128,TM).
    for li in range(4):
        h = jnp.dot(wnar_ref[li + 4], h, preferred_element_type=f32)
        h = jnp.maximum(h + b_ref[0:128, li + 7:li + 8], 0.0).astype(bf16)

    # Last layer (8->1), no ReLU.  Only row 0 of wlast is real; the result row is
    # already lane-dense (1, TM).
    y = jnp.dot(wlast_ref[...], h, preferred_element_type=f32)       # (16, TM)
    out_ref[...] = (y[0:1, :] + b_ref[0:1, 11:12]).astype(out_ref.dtype)


def distance3_forward(x, packed_params, *, tm=_DEFAULT_TM):
    """x: (N, 4) float32 -> (N, 1) float32."""
    w0, wnar, wup, wdown, wlast, bias = packed_params
    n = x.shape[0]

    # Keep the tile a multiple of 256 and no larger than the padded batch.
    n_ceil = -(-n // 256) * 256
    tm = min(tm, n_ceil)
    # v7x has 2 TensorCores: whenever the padded batch allows it, force >= 2 grid
    # tiles so "parallel" megacore sharding keeps both cores busy.
    if n_ceil >= 512:
        half = -(-(n_ceil // 2) // 256) * 256
        tm = min(tm, half)
    # NOTE: for very large batches on v6e, tm can be swept up to 2048-4096 (set
    # vmem_limit_bytes past ~4096); on v7x keep the 64 MiB VMEM budget in mind.

    num_tiles = -(-n // tm)
    n_pad = num_tiles * tm

    xt = x.astype(jnp.float32).T                        # (4, N): batch on lanes
    if n_pad != n:
        xt = jnp.pad(xt, ((0, 0), (0, n_pad - n)))

    out = pl.pallas_call(
        _mlp_kernel,
        out_shape=jax.ShapeDtypeStruct((1, n_pad), jnp.float32),
        grid_spec=pltpu.PrefetchScalarGridSpec(
            num_scalar_prefetch=0,
            grid=(num_tiles,),
            in_specs=[
                pl.BlockSpec((4, tm), lambda i: (0, i)),           # x^T batch tile
                pl.BlockSpec(w0.shape, lambda i: (0, 0)),          # resident weights
                pl.BlockSpec(wnar.shape, lambda i: (0, 0, 0)),     # resident weights
                pl.BlockSpec(wup.shape, lambda i: (0, 0)),         # resident weights
                pl.BlockSpec(wdown.shape, lambda i: (0, 0)),       # resident weights
                pl.BlockSpec(wlast.shape, lambda i: (0, 0)),       # resident weights
                pl.BlockSpec(bias.shape, lambda i: (0, 0)),        # resident biases
            ],
            out_specs=pl.BlockSpec((1, tm), lambda i: (0, i)),     # lane-dense output
        ),
        compiler_params=pltpu.CompilerParams(
            dimension_semantics=("parallel",),                     # megacore split
        ),
    )(xt, w0, wnar, wup, wdown, wlast, bias)

    return out[0, :n].reshape(n, 1)


def init_params(key):
    """PyTorch nn.Linear default init U(-1/sqrt(fan_in), +1/sqrt(fan_in)).

    Weights are kept in torch layout (out_features, in_features)."""
    weights, biases = [], []
    for fin, fout in _DIMS:
        key, kw, kb = jax.random.split(key, 3)
        bound = 1.0 / (fin ** 0.5)
        weights.append(jax.random.uniform(kw, (fout, fin), jnp.float32, -bound, bound))
        biases.append(jax.random.uniform(kb, (fout,), jnp.float32, -bound, bound))
    return weights, biases


def pack_params(weights, biases):
    """Zero-pad the 12 torch-layout (out,in) weights / biases into kernel slabs.

    Two-tier packing: narrow layers padded to 128x128, the two 256-wide layers kept
    at their exact (256,128)/(128,256) shapes (no padding), tiny first/last layers
    padded to lane/sublane minimums only."""
    # First layer: (128, 4), real block at [:8, :4].
    w0 = jnp.zeros((128, _DIMS[0][0]), jnp.float32).at[:_DIMS[0][1], :].set(weights[0])
    # Narrow middle layers: (8, 128, 128), each real block at [:out, :in].
    wnar = jnp.zeros((len(_NARROW_IDX), 128, 128), jnp.float32)
    for s, li in enumerate(_NARROW_IDX):
        fin, fout = _DIMS[li]
        wnar = wnar.at[s, :fout, :fin].set(weights[li])
    # Wide layers need no padding: layer 5 is exactly (256,128), layer 6 (128,256).
    wup = weights[5]
    wdown = weights[6]
    # Last layer: (16, 128), real row 0, cols [:8] (16 sublanes for bf16 packing).
    wlast = jnp.zeros((16, 128), jnp.float32).at[0:1, :_DIMS[-1][0]].set(weights[-1])
    # Biases: (256, 12), column li = bias of layer li (zero padded), kept in f32.
    bias = jnp.zeros((256, _NUM_LAYERS), jnp.float32)
    for li in range(_NUM_LAYERS):
        bias = bias.at[:_DIMS[li][1], li].set(biases[li])
    return (w0.astype(jnp.bfloat16), wnar.astype(jnp.bfloat16),
            wup.astype(jnp.bfloat16), wdown.astype(jnp.bfloat16),
            wlast.astype(jnp.bfloat16), bias)


def reference_forward(x, weights, biases):
    """Plain-JAX reference with matching numerics (bf16 matmul operands, f32 acc)."""
    h = x.astype(jnp.float32)
    for li, (w, b) in enumerate(zip(weights, biases)):
        h = jnp.dot(h.astype(jnp.bfloat16), w.T.astype(jnp.bfloat16),
                    preferred_element_type=jnp.float32) + b
        if li < _NUM_LAYERS - 1:
            h = jnp.maximum(h, 0.0)
    return h


if __name__ == "__main__":
    key = jax.random.PRNGKey(0)
    key, kx = jax.random.split(key)
    batch = 16
    x = jax.random.normal(kx, (batch, 4), jnp.float32)

    weights, biases = init_params(key)
    packed = pack_params(weights, biases)

    out = distance3_forward(x, packed)
    out = jax.block_until_ready(out)

    ref = reference_forward(x, weights, biases)
    assert out.shape == (batch, 1), out.shape
    max_err = float(jnp.max(jnp.abs(out - ref)))
    assert jnp.allclose(out, ref, atol=1e-2, rtol=1e-2), f"max err {max_err}"

    print("KERNEL_OK")
</pallas_src>

<mosaic_0001>
module attributes {stable_mosaic.version = 11 : i64} {
  func.func @_mlp_kernel(%arg0: i32, %arg1: memref<4x256xf32, #tpu.memory_space<vmem>>, %arg2: memref<128x4xbf16, #tpu.memory_space<vmem>>, %arg3: memref<8x128x128xbf16, #tpu.memory_space<vmem>>, %arg4: memref<256x128xbf16, #tpu.memory_space<vmem>>, %arg5: memref<128x256xbf16, #tpu.memory_space<vmem>>, %arg6: memref<16x128xbf16, #tpu.memory_space<vmem>>, %arg7: memref<256x12xf32, #tpu.memory_space<vmem>>, %arg8: memref<1x256xf32, #tpu.memory_space<vmem>>) attributes {dimension_semantics = [#tpu.dimension_semantics<parallel>], iteration_bounds = array<i64: 1>, scalar_prefetch = 0 : i64, scratch_operands = 0 : i64, tpu.core_type = #tpu.core_type<tc>, window_params = [{transform_indices = @transform_0, window_bounds = array<i64: 4, 256>}, {pipeline_mode = #tpu.pipeline_mode<synchronous>, transform_indices = @transform_1, window_bounds = array<i64: 128, 4>}, {pipeline_mode = #tpu.pipeline_mode<synchronous>, transform_indices = @transform_2, window_bounds = array<i64: 8, 128, 128>}, {pipeline_mode = #tpu.pipeline_mode<synchronous>, transform_indices = @transform_3, window_bounds = array<i64: 256, 128>}, {pipeline_mode = #tpu.pipeline_mode<synchronous>, transform_indices = @transform_4, window_bounds = array<i64: 128, 256>}, {pipeline_mode = #tpu.pipeline_mode<synchronous>, transform_indices = @transform_5, window_bounds = array<i64: 16, 128>}, {pipeline_mode = #tpu.pipeline_mode<synchronous>, transform_indices = @transform_6, window_bounds = array<i64: 256, 12>}, {transform_indices = @transform_7, window_bounds = array<i64: 1, 256>}]} {
    %c0 = arith.constant 0 : index
    %c0_0 = arith.constant 0 : index
    %0 = vector.load %arg2[%c0, %c0_0] : memref<128x4xbf16, #tpu.memory_space<vmem>>, vector<128x4xbf16>
    %c0_1 = arith.constant 0 : index
    %c0_2 = arith.constant 0 : index
    %1 = vector.load %arg1[%c0_1, %c0_2] : memref<4x256xf32, #tpu.memory_space<vmem>>, vector<4x256xf32>
    %2 = arith.truncf %1 : vector<4x256xf32> to vector<4x256xbf16>
    %cst = arith.constant dense<0.000000e+00> : vector<128x256xf32>
    %3 = tpu.matmul %0, %2, %cst {dimension_numbers = #tpu.dot_dimension_numbers<[1], [0], [0], [1], [0, 0, 1, 1], [], []>} : vector<128x4xbf16>, vector<4x256xbf16>, vector<128x256xf32> -> vector<128x256xf32>
    %c0_3 = arith.constant 0 : index
    %c0_4 = arith.constant 0 : index
    %4 = vector.load %arg7[%c0_3, %c0_4] : memref<256x12xf32, #tpu.memory_space<vmem>>, vector<128x1xf32>
    %5 = vector.broadcast %4 : vector<128x1xf32> to vector<128x256xf32>
    %6 = arith.addf %3, %5 : vector<128x256xf32>
    %cst_5 = arith.constant 0.000000e+00 : f32
    %7 = vector.broadcast %cst_5 : f32 to vector<128x256xf32>
    %8 = arith.maximumf %6, %7 : vector<128x256xf32>
    %9 = arith.truncf %8 : vector<128x256xf32> to vector<128x256xbf16>
    %c0_6 = arith.constant 0 : index
    %c0_7 = arith.constant 0 : index
    %c0_8 = arith.constant 0 : index
    %10 = vector.load %arg3[%c0_6, %c0_7, %c0_8] : memref<8x128x128xbf16, #tpu.memory_space<vmem>>, vector<1x128x128xbf16>
    %11 = vector.shape_cast %10 : vector<1x128x128xbf16> to vector<128x128xbf16>
    %cst_9 = arith.constant dense<0.000000e+00> : vector<128x256xf32>
    %12 = tpu.matmul %11, %9, %cst_9 {dimension_numbers = #tpu.dot_dimension_numbers<[1], [0], [0], [1], [0, 0, 1, 1], [], []>} : vector<128x128xbf16>, vector<128x256xbf16>, vector<128x256xf32> -> vector<128x256xf32>
    %c0_10 = arith.constant 0 : index
    %c1 = arith.constant 1 : index
    %13 = vector.load %arg7[%c0_10, %c1] : memref<256x12xf32, #tpu.memory_space<vmem>>, vector<128x1xf32>
    %14 = vector.broadcast %13 : vector<128x1xf32> to vector<128x256xf32>
    %15 = arith.addf %12, %14 : vector<128x256xf32>
    %cst_11 = arith.constant 0.000000e+00 : f32
    %16 = vector.broadcast %cst_11 : f32 to vector<128x256xf32>
    %17 = arith.maximumf %15, %16 : vector<128x256xf32>
    %18 = arith.truncf %17 : vector<128x256xf32> to vector<128x256xbf16>
    %c1_12 = arith.constant 1 : index
    %c0_13 = arith.constant 0 : index
    %c0_14 = arith.constant 0 : index
    %19 = vector.load %arg3[%c1_12, %c0_13, %c0_14] : memref<8x128x128xbf16, #tpu.memory_space<vmem>>, vector<1x128x128xbf16>
    %20 = vector.shape_cast %19 : vector<1x128x128xbf16> to vector<128x128xbf16>
    %cst_15 = arith.constant dense<0.000000e+00> : vector<128x256xf32>
    %21 = tpu.matmul %20, %18, %cst_15 {dimension_numbers = #tpu.dot_dimension_numbers<[1], [0], [0], [1], [0, 0, 1, 1], [], []>} : vector<128x128xbf16>, vector<128x256xbf16>, vector<128x256xf32> -> vector<128x256xf32>
    %c0_16 = arith.constant 0 : index
    %c2 = arith.constant 2 : index
    %22 = vector.load %arg7[%c0_16, %c2] : memref<256x12xf32, #tpu.memory_space<vmem>>, vector<128x1xf32>
    %23 = vector.broadcast %22 : vector<128x1xf32> to vector<128x256xf32>
    %24 = arith.addf %21, %23 : vector<128x256xf32>
    %cst_17 = arith.constant 0.000000e+00 : f32
    %25 = vector.broadcast %cst_17 : f32 to vector<128x256xf32>
    %26 = arith.maximumf %24, %25 : vector<128x256xf32>
    %27 = arith.truncf %26 : vector<128x256xf32> to vector<128x256xbf16>
    %c2_18 = arith.constant 2 : index
    %c0_19 = arith.constant 0 : index
    %c0_20 = arith.constant 0 : index
    %28 = vector.load %arg3[%c2_18, %c0_19, %c0_20] : memref<8x128x128xbf16, #tpu.memory_space<vmem>>, vector<1x128x128xbf16>
    %29 = vector.shape_cast %28 : vector<1x128x128xbf16> to vector<128x128xbf16>
    %cst_21 = arith.constant dense<0.000000e+00> : vector<128x256xf32>
    %30 = tpu.matmul %29, %27, %cst_21 {dimension_numbers = #tpu.dot_dimension_numbers<[1], [0], [0], [1], [0, 0, 1, 1], [], []>} : vector<128x128xbf16>, vector<128x256xbf16>, vector<128x256xf32> -> vector<128x256xf32>
    %c0_22 = arith.constant 0 : index
    %c3 = arith.constant 3 : index
    %31 = vector.load %arg7[%c0_22, %c3] : memref<256x12xf32, #tpu.memory_space<vmem>>, vector<128x1xf32>
    %32 = vector.broadcast %31 : vector<128x1xf32> to vector<128x256xf32>
    %33 = arith.addf %30, %32 : vector<128x256xf32>
    %cst_23 = arith.constant 0.000000e+00 : f32
    %34 = vector.broadcast %cst_23 : f32 to vector<128x256xf32>
    %35 = arith.maximumf %33, %34 : vector<128x256xf32>
    %36 = arith.truncf %35 : vector<128x256xf32> to vector<128x256xbf16>
    %c3_24 = arith.constant 3 : index
    %c0_25 = arith.constant 0 : index
    %c0_26 = arith.constant 0 : index
    %37 = vector.load %arg3[%c3_24, %c0_25, %c0_26] : memref<8x128x128xbf16, #tpu.memory_space<vmem>>, vector<1x128x128xbf16>
    %38 = vector.shape_cast %37 : vector<1x128x128xbf16> to vector<128x128xbf16>
    %cst_27 = arith.constant dense<0.000000e+00> : vector<128x256xf32>
    %39 = tpu.matmul %38, %36, %cst_27 {dimension_numbers = #tpu.dot_dimension_numbers<[1], [0], [0], [1], [0, 0, 1, 1], [], []>} : vector<128x128xbf16>, vector<128x256xbf16>, vector<128x256xf32> -> vector<128x256xf32>
    %c0_28 = arith.constant 0 : index
    %c4 = arith.constant 4 : index
    %40 = vector.load %arg7[%c0_28, %c4] : memref<256x12xf32, #tpu.memory_space<vmem>>, vector<128x1xf32>
    %41 = vector.broadcast %40 : vector<128x1xf32> to vector<128x256xf32>
    %42 = arith.addf %39, %41 : vector<128x256xf32>
    %cst_29 = arith.constant 0.000000e+00 : f32
    %43 = vector.broadcast %cst_29 : f32 to vector<128x256xf32>
    %44 = arith.maximumf %42, %43 : vector<128x256xf32>
    %45 = arith.truncf %44 : vector<128x256xf32> to vector<128x256xbf16>
    %c0_30 = arith.constant 0 : index
    %c0_31 = arith.constant 0 : index
    %46 = vector.load %arg4[%c0_30, %c0_31] : memref<256x128xbf16, #tpu.memory_space<vmem>>, vector<256x128xbf16>
    %cst_32 = arith.constant dense<0.000000e+00> : vector<256x256xf32>
    %47 = tpu.matmul %46, %45, %cst_32 {dimension_numbers = #tpu.dot_dimension_numbers<[1], [0], [0], [1], [0, 0, 1, 1], [], []>} : vector<256x128xbf16>, vector<128x256xbf16>, vector<256x256xf32> -> vector<256x256xf32>
    %c0_33 = arith.constant 0 : index
    %c5 = arith.constant 5 : index
    %48 = vector.load %arg7[%c0_33, %c5] : memref<256x12xf32, #tpu.memory_space<vmem>>, vector<256x1xf32>
    %49 = vector.broadcast %48 : vector<256x1xf32> to vector<256x256xf32>
    %50 = arith.addf %47, %49 : vector<256x256xf32>
    %cst_34 = arith.constant 0.000000e+00 : f32
    %51 = vector.broadcast %cst_34 : f32 to vector<256x256xf32>
    %52 = arith.maximumf %50, %51 : vector<256x256xf32>
    %53 = arith.truncf %52 : vector<256x256xf32> to vector<256x256xbf16>
    %c0_35 = arith.constant 0 : index
    %c0_36 = arith.constant 0 : index
    %54 = vector.load %arg5[%c0_35, %c0_36] : memref<128x256xbf16, #tpu.memory_space<vmem>>, vector<128x256xbf16>
    %cst_37 = arith.constant dense<0.000000e+00> : vector<128x256xf32>
    %55 = tpu.matmul %54, %53, %cst_37 {dimension_numbers = #tpu.dot_dimension_numbers<[1], [0], [0], [1], [0, 0, 1, 1], [], []>} : vector<128x256xbf16>, vector<256x256xbf16>, vector<128x256xf32> -> vector<128x256xf32>
    %c0_38 = arith.constant 0 : index
    %c6 = arith.constant 6 : index
    %56 = vector.load %arg7[%c0_38, %c6] : memref<256x12xf32, #tpu.memory_space<vmem>>, vector<128x1xf32>
    %57 = vector.broadcast %56 : vector<128x1xf32> to vector<128x256xf32>
    %58 = arith.addf %55, %57 : vector<128x256xf32>
    %cst_39 = arith.constant 0.000000e+00 : f32
    %59 = vector.broadcast %cst_39 : f32 to vector<128x256xf32>
    %60 = arith.maximumf %58, %59 : vector<128x256xf32>
    %61 = arith.truncf %60 : vector<128x256xf32> to vector<128x256xbf16>
    %c4_40 = arith.constant 4 : index
    %c0_41 = arith.constant 0 : index
    %c0_42 = arith.constant 0 : index
    %62 = vector.load %arg3[%c4_40, %c0_41, %c0_42] : memref<8x128x128xbf16, #tpu.memory_space<vmem>>, vector<1x128x128xbf16>
    %63 = vector.shape_cast %62 : vector<1x128x128xbf16> to vector<128x128xbf16>
    %cst_43 = arith.constant dense<0.000000e+00> : vector<128x256xf32>
    %64 = tpu.matmul %63, %61, %cst_43 {dimension_numbers = #tpu.dot_dimension_numbers<[1], [0], [0], [1], [0, 0, 1, 1], [], []>} : vector<128x128xbf16>, vector<128x256xbf16>, vector<128x256xf32> -> vector<128x256xf32>
    %c0_44 = arith.constant 0 : index
    %c7 = arith.constant 7 : index
    %65 = vector.load %arg7[%c0_44, %c7] : memref<256x12xf32, #tpu.memory_space<vmem>>, vector<128x1xf32>
    %66 = vector.broadcast %65 : vector<128x1xf32> to vector<128x256xf32>
    %67 = arith.addf %64, %66 : vector<128x256xf32>
    %cst_45 = arith.constant 0.000000e+00 : f32
    %68 = vector.broadcast %cst_45 : f32 to vector<128x256xf32>
    %69 = arith.maximumf %67, %68 : vector<128x256xf32>
    %70 = arith.truncf %69 : vector<128x256xf32> to vector<128x256xbf16>
    %c5_46 = arith.constant 5 : index
    %c0_47 = arith.constant 0 : index
    %c0_48 = arith.constant 0 : index
    %71 = vector.load %arg3[%c5_46, %c0_47, %c0_48] : memref<8x128x128xbf16, #tpu.memory_space<vmem>>, vector<1x128x128xbf16>
    %72 = vector.shape_cast %71 : vector<1x128x128xbf16> to vector<128x128xbf16>
    %cst_49 = arith.constant dense<0.000000e+00> : vector<128x256xf32>
    %73 = tpu.matmul %72, %70, %cst_49 {dimension_numbers = #tpu.dot_dimension_numbers<[1], [0], [0], [1], [0, 0, 1, 1], [], []>} : vector<128x128xbf16>, vector<128x256xbf16>, vector<128x256xf32> -> vector<128x256xf32>
    %c0_50 = arith.constant 0 : index
    %c8 = arith.constant 8 : index
    %74 = vector.load %arg7[%c0_50, %c8] : memref<256x12xf32, #tpu.memory_space<vmem>>, vector<128x1xf32>
    %75 = vector.broadcast %74 : vector<128x1xf32> to vector<128x256xf32>
    %76 = arith.addf %73, %75 : vector<128x256xf32>
    %cst_51 = arith.constant 0.000000e+00 : f32
    %77 = vector.broadcast %cst_51 : f32 to vector<128x256xf32>
    %78 = arith.maximumf %76, %77 : vector<128x256xf32>
    %79 = arith.truncf %78 : vector<128x256xf32> to vector<128x256xbf16>
    %c6_52 = arith.constant 6 : index
    %c0_53 = arith.constant 0 : index
    %c0_54 = arith.constant 0 : index
    %80 = vector.load %arg3[%c6_52, %c0_53, %c0_54] : memref<8x128x128xbf16, #tpu.memory_space<vmem>>, vector<1x128x128xbf16>
    %81 = vector.shape_cast %80 : vector<1x128x128xbf16> to vector<128x128xbf16>
    %cst_55 = arith.constant dense<0.000000e+00> : vector<128x256xf32>
    %82 = tpu.matmul %81, %79, %cst_55 {dimension_numbers = #tpu.dot_dimension_numbers<[1], [0], [0], [1], [0, 0, 1, 1], [], []>} : vector<128x128xbf16>, vector<128x256xbf16>, vector<128x256xf32> -> vector<128x256xf32>
    %c0_56 = arith.constant 0 : index
    %c9 = arith.constant 9 : index
    %83 = vector.load %arg7[%c0_56, %c9] : memref<256x12xf32, #tpu.memory_space<vmem>>, vector<128x1xf32>
    %84 = vector.broadcast %83 : vector<128x1xf32> to vector<128x256xf32>
    %85 = arith.addf %82, %84 : vector<128x256xf32>
    %cst_57 = arith.constant 0.000000e+00 : f32
    %86 = vector.broadcast %cst_57 : f32 to vector<128x256xf32>
    %87 = arith.maximumf %85, %86 : vector<128x256xf32>
    %88 = arith.truncf %87 : vector<128x256xf32> to vector<128x256xbf16>
    %c7_58 = arith.constant 7 : index
    %c0_59 = arith.constant 0 : index
    %c0_60 = arith.constant 0 : index
    %89 = vector.load %arg3[%c7_58, %c0_59, %c0_60] : memref<8x128x128xbf16, #tpu.memory_space<vmem>>, vector<1x128x128xbf16>
    %90 = vector.shape_cast %89 : vector<1x128x128xbf16> to vector<128x128xbf16>
    %cst_61 = arith.constant dense<0.000000e+00> : vector<128x256xf32>
    %91 = tpu.matmul %90, %88, %cst_61 {dimension_numbers = #tpu.dot_dimension_numbers<[1], [0], [0], [1], [0, 0, 1, 1], [], []>} : vector<128x128xbf16>, vector<128x256xbf16>, vector<128x256xf32> -> vector<128x256xf32>
    %c0_62 = arith.constant 0 : index
    %c10 = arith.constant 10 : index
    %92 = vector.load %arg7[%c0_62, %c10] : memref<256x12xf32, #tpu.memory_space<vmem>>, vector<128x1xf32>
    %93 = vector.broadcast %92 : vector<128x1xf32> to vector<128x256xf32>
    %94 = arith.addf %91, %93 : vector<128x256xf32>
    %cst_63 = arith.constant 0.000000e+00 : f32
    %95 = vector.broadcast %cst_63 : f32 to vector<128x256xf32>
    %96 = arith.maximumf %94, %95 : vector<128x256xf32>
    %97 = arith.truncf %96 : vector<128x256xf32> to vector<128x256xbf16>
    %c0_64 = arith.constant 0 : index
    %c0_65 = arith.constant 0 : index
    %98 = vector.load %arg6[%c0_64, %c0_65] : memref<16x128xbf16, #tpu.memory_space<vmem>>, vector<16x128xbf16>
    %cst_66 = arith.constant dense<0.000000e+00> : vector<16x256xf32>
    %99 = tpu.matmul %98, %97, %cst_66 {dimension_numbers = #tpu.dot_dimension_numbers<[1], [0], [0], [1], [0, 0, 1, 1], [], []>} : vector<16x128xbf16>, vector<128x256xbf16>, vector<16x256xf32> -> vector<16x256xf32>
    %100 = vector.extract_strided_slice %99 {offsets = [0, 0], sizes = [1, 256], strides = [1, 1]} : vector<16x256xf32> to vector<1x256xf32>
    %c0_67 = arith.constant 0 : index
    %c11 = arith.constant 11 : index
    %101 = vector.load %arg7[%c0_67, %c11] : memref<256x12xf32, #tpu.memory_space<vmem>>, vector<1x1xf32>
    %102 = vector.broadcast %101 : vector<1x1xf32> to vector<1x256xf32>
    %103 = arith.addf %100, %102 : vector<1x256xf32>
    %c0_68 = arith.constant 0 : index
    %c0_69 = arith.constant 0 : index
    %104 = vector.load %arg8[%c0_68, %c0_69] : memref<1x256xf32, #tpu.memory_space<vmem>>, vector<1x256xf32>
    tpu.vector_store %arg8[%c0_68, %c0_69], %103 {strides = array<i32>} : memref<1x256xf32, #tpu.memory_space<vmem>>, vector<1x256xf32>,
    return
  }
  func.func @transform_0(%arg0: i32) -> (i32, i32) {
    %c0_i32 = arith.constant 0 : i32
    %c0_i32_0 = arith.constant 0 : i32
    return %c0_i32, %arg0 : i32, i32
  }
  func.func @transform_1(%arg0: i32) -> (i32, i32) {
    %c0_i32 = arith.constant 0 : i32
    %c0_i32_0 = arith.constant 0 : i32
    %c0_i32_1 = arith.constant 0 : i32
    return %c0_i32, %c0_i32_0 : i32, i32
  }
  func.func @transform_2(%arg0: i32) -> (i32, i32, i32) {
    %c0_i32 = arith.constant 0 : i32
    %c0_i32_0 = arith.constant 0 : i32
    %c0_i32_1 = arith.constant 0 : i32
    %c0_i32_2 = arith.constant 0 : i32
    return %c0_i32, %c0_i32_0, %c0_i32_1 : i32, i32, i32
  }
  func.func @transform_3(%arg0: i32) -> (i32, i32) {
    %c0_i32 = arith.constant 0 : i32
    %c0_i32_0 = arith.constant 0 : i32
    %c0_i32_1 = arith.constant 0 : i32
    return %c0_i32, %c0_i32_0 : i32, i32
  }
  func.func @transform_4(%arg0: i32) -> (i32, i32) {
    %c0_i32 = arith.constant 0 : i32
    %c0_i32_0 = arith.constant 0 : i32
    %c0_i32_1 = arith.constant 0 : i32
    return %c0_i32, %c0_i32_0 : i32, i32
  }
  func.func @transform_5(%arg0: i32) -> (i32, i32) {
    %c0_i32 = arith.constant 0 : i32
    %c0_i32_0 = arith.constant 0 : i32
    %c0_i32_1 = arith.constant 0 : i32
    return %c0_i32, %c0_i32_0 : i32, i32
  }
  func.func @transform_6(%arg0: i32) -> (i32, i32) {
    %c0_i32 = arith.constant 0 : i32
    %c0_i32_0 = arith.constant 0 : i32
    %c0_i32_1 = arith.constant 0 : i32
    return %c0_i32, %c0_i32_0 : i32, i32
  }
  func.func @transform_7(%arg0: i32) -> (i32, i32) {
    %c0_i32 = arith.constant 0 : i32
    %c0_i32_0 = arith.constant 0 : i32
    return %c0_i32, %arg0 : i32, i32
  }
}

</mosaic_0001>

<llo_original>
// kernel: tpu_custom_call.1
$region0: #{tpu_custom_call.1}
  #allocation0 [shape = 'u32[]', space=smem, size = 0x4, offset = 0x4, fixed_abs, tag = 'smem constant byte address 0x4 - core index']
  #allocation1 [shape = 'u32[144,128]{1,0:T(1,128)}', space=vmem, size = 0x12000, scoped, tag = 'internal scratch']
  %s0 = inlined_call_operand.vmem [shape: f32[4,256], index: 0, kind: input, shape index: {}]
  %s1 = inlined_call_operand.vmem [shape: bf16[128,4], index: 1, kind: input, shape index: {}]
  %s2 = inlined_call_operand.hbm [shape: bf16[8,128,128], index: 2, kind: input, shape index: {}]
  %s3 = inlined_call_operand.vmem [shape: bf16[256,128], index: 3, kind: input, shape index: {}]
  %s4 = inlined_call_operand.vmem [shape: bf16[128,256], index: 4, kind: input, shape index: {}]
  %s5 = inlined_call_operand.vmem [shape: bf16[16,128], index: 5, kind: input, shape index: {}]
  %s6 = inlined_call_operand.vmem [shape: f32[256,12], index: 6, kind: input, shape index: {}]
  %s7 = inlined_call_operand.hbm [shape: f32[1,256], index: 7, kind: output, shape index: {}]
  %s8 = sld [smem:[#allocation0]]
  $region42: #{tpu_custom_call.1} parent=0
    _
  %s10 = ssub.s32 1, %s8
  %s11 = scalar_select 0, %s10, %s8
  $region1: #{tpu_custom_call.1} parent=0
    #allocation2 [shape = 'u8[262144]{0}', space=vmem, size = 0x40000, scoped, tag = 'input window, operand 2, single buffered']
    #allocation3 [shape = 's32[1]{0}', space=sflag, size = 0x4, scoped, tag = 'scoped memory for tpu_custom_call.1']
    #allocation4 [shape = 's32[1]{0}', space=sflag, size = 0x4, scoped, tag = 'scoped memory for tpu_custom_call.1']
    #allocation5 [shape = 'u8[1024]{0}', space=vmem, size = 0x400, scoped, tag = 'output window, operand 0, single buffered']
    %12 = vsyncpa [#allocation3], 0
    %13 = vsyncpa [#allocation4], 0
    // Predicated region
    $region2: #{tpu_custom_call.1} parent=1 // pred_check
      _
    $region3: #{tpu_custom_call.1} parent=1 // pred_check_branch
      %15 = sbr.rel (0) target = $region5
    $region4: #{tpu_custom_call.1} parent=1 // pred_region
      _
    $region5: #{tpu_custom_call.1} parent=1 // pred_fallthru
      _
    // Predicated region
    $region6: #{tpu_custom_call.1} parent=1 // pred_check
      _
    $region7: #{tpu_custom_call.1} parent=1 // pred_check_branch
      %17 = sbr.rel (0) target = $region9
    $region8: #{tpu_custom_call.1} parent=1 // pred_region
      _
    $region9: #{tpu_custom_call.1} parent=1 // pred_fallthru
      _
    // Predicated region
    $region10: #{tpu_custom_call.1} parent=1 // pred_check
      _
    $region11: #{tpu_custom_call.1} parent=1 // pred_check_branch
      %19 = sbr.rel (0) target = $region13
    $region12: #{tpu_custom_call.1} parent=1 // pred_region
      %s21 = ssub.s32 8192, 8192
      %22 = vsyncadd [#allocation3], %s21
      %s23 = sshll.u32 [#allocation2], 4
      %s24 = int_to_ptr.vmem [resolvable:$true] %s23
      %29 = dma.hbm_to_vmem [thread:$0]  %s2, 8192, %s24, [#allocation3], 64, 64, 4
    $region13: #{tpu_custom_call.1} parent=1 // pred_fallthru
      _
    // Predicated region
    $region14: #{tpu_custom_call.1} parent=1 // pred_check
      _
    $region15: #{tpu_custom_call.1} parent=1 // pred_check_branch
      %31 = sbr.rel (0) target = $region17
    $region16: #{tpu_custom_call.1} parent=1 // pred_region
      _
    $region17: #{tpu_custom_call.1} parent=1 // pred_fallthru
      _
    // Predicated region
    $region18: #{tpu_custom_call.1} parent=1 // pred_check
      _
    $region19: #{tpu_custom_call.1} parent=1 // pred_check_branch
      %33 = sbr.rel (0) target = $region21
    $region20: #{tpu_custom_call.1} parent=1 // pred_region
      _
    $region21: #{tpu_custom_call.1} parent=1 // pred_fallthru
      _
    // Predicated region
    $region22: #{tpu_custom_call.1} parent=1 // pred_check
      _
    $region23: #{tpu_custom_call.1} parent=1 // pred_check_branch
      %35 = sbr.rel (0) target = $region25
    $region24: #{tpu_custom_call.1} parent=1 // pred_region
      _
    $region25: #{tpu_custom_call.1} parent=1 // pred_fallthru
      _
    // Predicated region
    $region26: #{tpu_custom_call.1} parent=1 // pred_check
      _
    $region27: #{tpu_custom_call.1} parent=1 // pred_check_branch
      %37 = sbr.rel (0) target = $region29
    $region28: #{tpu_custom_call.1} parent=1 // pred_region
      _
    $region29: #{tpu_custom_call.1} parent=1 // pred_fallthru
      _
    // Predicated region
    $region30: #{tpu_custom_call.1} parent=1 // pred_check
      _
    $region31: #{tpu_custom_call.1} parent=1 // pred_check_branch
      %39 = sbr.rel (0) target = $region33
    $region32: #{tpu_custom_call.1} parent=1 // pred_region
      %40 = dma.done [#allocation3], 8192
    $region33: #{tpu_custom_call.1} parent=1 // pred_fallthru
      _
    %v42 = vld [vmem:[%s1] sm:$0xf]
    %v43 = vld [vmem:[%s1 + $0x4] sm:$0xf]
    %v44 = vld [vmem:[%s1 + $0x8] sm:$0xf]
    %v45 = vld [vmem:[%s1 + $0xc] sm:$0xf]
    %v46 = vld [vmem:[%s1 + $0x10] sm:$0xf]
    %v47 = vld [vmem:[%s1 + $0x14] sm:$0xf]
    %v48 = vld [vmem:[%s1 + $0x18] sm:$0xf]
    %v49 = vld [vmem:[%s1 + $0x1c] sm:$0xf]
    %v50 = vld [vmem:[%s1 + $0x20] sm:$0xf]
    %v51 = vld [vmem:[%s1 + $0x24] sm:$0xf]
    %v52 = vld [vmem:[%s1 + $0x28] sm:$0xf]
    %v53 = vld [vmem:[%s1 + $0x2c] sm:$0xf]
    %v54 = vld [vmem:[%s1 + $0x30] sm:$0xf]
    %v55 = vld [vmem:[%s1 + $0x34] sm:$0xf]
    %v56 = vld [vmem:[%s1 + $0x38] sm:$0xf]
    %v57 = vld [vmem:[%s1 + $0x3c] sm:$0xf]
    %v58 = vld [vmem:[%s0] sm:$0xff]
    %v60 = vcombine.high %v58, %v58
    %v62 = vpack.c.bf16 %v58, %v58
    %v63 = vpack.c.bf16 %v60, %v60
    %v64 = vld [vmem:[%s6] sm:$0xff]
    %v65 = vld [vmem:[%s6 + $0x8] sm:$0xff]
    %v66 = vld [vmem:[%s6 + $0x10] sm:$0xff]
    %v67 = vld [vmem:[%s6 + $0x18] sm:$0xff]
    %v68 = vld [vmem:[%s6 + $0x20] sm:$0xff]
    %v69 = vld [vmem:[%s6 + $0x28] sm:$0xff]
    %v70 = vld [vmem:[%s6 + $0x30] sm:$0xff]
    %v71 = vld [vmem:[%s6 + $0x38] sm:$0xff]
    %v72 = vld [vmem:[%s6 + $0x40] sm:$0xff]
    %v73 = vld [vmem:[%s6 + $0x48] sm:$0xff]
    %v74 = vld [vmem:[%s6 + $0x50] sm:$0xff]
    %v75 = vld [vmem:[%s6 + $0x58] sm:$0xff]
    %v76 = vld [vmem:[%s6 + $0x60] sm:$0xff]
    %v77 = vld [vmem:[%s6 + $0x68] sm:$0xff]
    %v78 = vld [vmem:[%s6 + $0x70] sm:$0xff]
    %v79 = vld [vmem:[%s6 + $0x78] sm:$0xff]
    %81 = vset.pattern.permute.xlu0 0
    %82 = vperm.xlu0 %81, %v64
    %v83 = vpop.permute.xlu0 %82
    %86 = vset.pattern.permute.xlu0 0
    %87 = vperm.xlu0 %86, %v65
    %v88 = vpop.permute.xlu0 %87
    %91 = vset.pattern.permute.xlu0 0
    %92 = vperm.xlu0 %91, %v66
    %v93 = vpop.permute.xlu0 %92
    %96 = vset.pattern.permute.xlu0 0
    %97 = vperm.xlu0 %96, %v67
    %v98 = vpop.permute.xlu0 %97
    %101 = vset.pattern.permute.xlu0 0
    %102 = vperm.xlu0 %101, %v68
    %v103 = vpop.permute.xlu0 %102
    %106 = vset.pattern.permute.xlu0 0
    %107 = vperm.xlu0 %106, %v69
    %v108 = vpop.permute.xlu0 %107
    %111 = vset.pattern.permute.xlu0 0
    %112 = vperm.xlu0 %111, %v70
    %v113 = vpop.permute.xlu0 %112
    %116 = vset.pattern.permute.xlu0 0
    %117 = vperm.xlu0 %116, %v71
    %v118 = vpop.permute.xlu0 %117
    %121 = vset.pattern.permute.xlu0 0
    %122 = vperm.xlu0 %121, %v72
    %v123 = vpop.permute.xlu0 %122
    %126 = vset.pattern.permute.xlu0 0
    %127 = vperm.xlu0 %126, %v73
    %v128 = vpop.permute.xlu0 %127
    %131 = vset.pattern.permute.xlu0 0
    %132 = vperm.xlu0 %131, %v74
    %v133 = vpop.permute.xlu0 %132
    %136 = vset.pattern.permute.xlu0 0
    %137 = vperm.xlu0 %136, %v75
    %v138 = vpop.permute.xlu0 %137
    %141 = vset.pattern.permute.xlu0 0
    %142 = vperm.xlu0 %141, %v76
    %v143 = vpop.permute.xlu0 %142
    %146 = vset.pattern.permute.xlu0 0
    %147 = vperm.xlu0 %146, %v77
    %v148 = vpop.permute.xlu0 %147
    %151 = vset.pattern.permute.xlu0 0
    %152 = vperm.xlu0 %151, %v78
    %v153 = vpop.permute.xlu0 %152
    %156 = vset.pattern.permute.xlu0 0
    %157 = vperm.xlu0 %156, %v79
    %v158 = vpop.permute.xlu0 %157
    %v176 = vunpack.c.l.b16 %v42
    %v177 = vunpack.c.l.b16 %v43
    %v178 = vunpack.c.l.b16 %v44
    %v179 = vunpack.c.l.b16 %v45
    %v180 = vunpack.c.l.b16 %v46
    %v181 = vunpack.c.l.b16 %v47
    %v182 = vunpack.c.l.b16 %v48
    %v183 = vunpack.c.l.b16 %v49
    %v184 = vunpack.c.l.b16 %v50
    %v185 = vunpack.c.l.b16 %v51
    %v186 = vunpack.c.l.b16 %v52
    %v187 = vunpack.c.l.b16 %v53
    %v188 = vunpack.c.l.b16 %v54
    %v189 = vunpack.c.l.b16 %v55
    %v190 = vunpack.c.l.b16 %v56
    %v191 = vunpack.c.l.b16 %v57
    %v192 = vpack.c.b16 %v177, %v176
    %v193 = vpack.c.b16 %v179, %v178
    %v194 = vpack.c.b16 %v181, %v180
    %v195 = vpack.c.b16 %v183, %v182
    %v196 = vpack.c.b16 %v185, %v184
    %v197 = vpack.c.b16 %v187, %v186
    %v198 = vpack.c.b16 %v189, %v188
    %v199 = vpack.c.b16 %v191, %v190
    %vm200 = vcmask 31744
    %v202 = vsel %vm200, %v192, 0
    %v205 = vsel %vm200, %v193, 0
    %v208 = vsel %vm200, %v194, 0
    %v211 = vsel %vm200, %v195, 0
    %v214 = vsel %vm200, %v196, 0
    %v217 = vsel %vm200, %v197, 0
    %v220 = vsel %vm200, %v198, 0
    %v223 = vsel %vm200, %v199, 0
    %vm225 = vcmask 1041408
    %v227 = vsel %vm225, %v62, 0
    %v230 = vsel %vm225, %v63, 0
    %232 = vmatprep.subr.bf16.mxu0 0
    %233 = vmatpush1.bf16.msra.mxu0 0
    %234 = vmatprep.subr.bf16.mxu0 0
    %235 = vmatpush1.bf16.msra.mxu0 0
    %236 = vmatprep.subr.bf16.mxu0 0
    %237 = vmatpush1.bf16.msra.mxu0 0
    %238 = vmatprep.subr.bf16.mxu0 0
    %239 = vmatpush1.bf16.msra.mxu0 0
    %240 = vmatprep.subr.bf16.mxu0 0
    %241 = vmatpush1.bf16.msra.mxu0 0
    %242 = vmatprep.subr.bf16.mxu0 0
    %243 = vmatpush1.bf16.msra.mxu0 0
    %244 = vmatprep.subr.bf16.mxu0 0
    %245 = vmatpush1.bf16.msra.mxu0 0
    %246 = vmatprep.subr.bf16.mxu0 %v230
    %247 = vmatpush1.bf16.msra.mxu0 %v227
    %248 = vmatprep.subr.bf16.mxu0 0
    %249 = vmatpush2.bf16.msra.mxu0 0
    %250 = vmatprep.subr.bf16.mxu0 0
    %251 = vmatpush2.bf16.msra.mxu0 0
    %252 = vmatprep.subr.bf16.mxu0 0
    %253 = vmatpush2.bf16.msra.mxu0 0
    %254 = vmatprep.subr.bf16.mxu0 0
    %255 = vmatpush2.bf16.msra.mxu0 0
    %256 = vmatprep.subr.bf16.mxu0 0
    %257 = vmatpush2.bf16.msra.mxu0 0
    %258 = vmatprep.subr.bf16.mxu0 0
    %259 = vmatpush2.bf16.msra.mxu0 0
    %260 = vmatprep.subr.bf16.mxu0 0
    %261 = vmatpush2.bf16.msra.mxu0 0
    %262 = vmatprep.subr.bf16.mxu0 0
    %263 = vmatpush2.bf16.msra.mxu0 0
    %264 = vmatprep.mubr.bf16.mxu0 0
    %265 = vmatmul.mubr.bf16.gmra.mxu0 %v202
    %v266 = vpop.f32.mrf.mxu0
    %v267 = vadd.f32 %v83, %v266
    %v268 = vpop.f32.mrf.mxu0
    %v269 = vadd.f32 %v83, %v268
    %v270 = vpop.f32.mrf.mxu0
    %v271 = vadd.f32 %v88, %v270
    %v272 = vpop.f32.mrf.mxu0
    %v273 = vadd.f32 %v88, %v272
    %274 = vmatprep.mubr.bf16.mxu0 0
    %275 = vmatmul.mubr.bf16.gmra.mxu0 %v205
    %v276 = vpop.f32.mrf.mxu0
    %v277 = vadd.f32 %v93, %v276
    %v278 = vpop.f32.mrf.mxu0
    %v279 = vadd.f32 %v93, %v278
    %v280 = vpop.f32.mrf.mxu0
    %v281 = vadd.f32 %v98, %v280
    %v282 = vpop.f32.mrf.mxu0
    %v283 = vadd.f32 %v98, %v282
    %284 = vmatprep.mubr.bf16.mxu0 0
    %285 = vmatmul.mubr.bf16.gmra.mxu0 %v208
    %v286 = vpop.f32.mrf.mxu0
    %v287 = vadd.f32 %v103, %v286
    %v288 = vpop.f32.mrf.mxu0
    %v289 = vadd.f32 %v103, %v288
    %v290 = vpop.f32.mrf.mxu0
    %v291 = vadd.f32 %v108, %v290
    %v292 = vpop.f32.mrf.mxu0
    %v293 = vadd.f32 %v108, %v292
    %294 = vmatprep.mubr.bf16.mxu0 0
    %295 = vmatmul.mubr.bf16.gmra.mxu0 %v211
    %v296 = vpop.f32.mrf.mxu0
    %v297 = vadd.f32 %v113, %v296
    %v298 = vpop.f32.mrf.mxu0
    %v299 = vadd.f32 %v113, %v298
    %v300 = vpop.f32.mrf.mxu0
    %v301 = vadd.f32 %v118, %v300
    %v302 = vpop.f32.mrf.mxu0
    %v303 = vadd.f32 %v118, %v302
    %304 = vmatprep.mubr.bf16.mxu0 0
    %305 = vmatmul.mubr.bf16.gmra.mxu0 %v214
    %v306 = vpop.f32.mrf.mxu0
    %v307 = vadd.f32 %v123, %v306
    %v308 = vpop.f32.mrf.mxu0
    %v309 = vadd.f32 %v123, %v308
    %v310 = vpop.f32.mrf.mxu0
    %v311 = vadd.f32 %v128, %v310
    %v312 = vpop.f32.mrf.mxu0
    %v313 = vadd.f32 %v128, %v312
    %314 = vmatprep.mubr.bf16.mxu0 0
    %315 = vmatmul.mubr.bf16.gmra.mxu0 %v217
    %v316 = vpop.f32.mrf.mxu0
    %v317 = vadd.f32 %v133, %v316
    %v318 = vpop.f32.mrf.mxu0
    %v319 = vadd.f32 %v133, %v318
    %v320 = vpop.f32.mrf.mxu0
    %v321 = vadd.f32 %v138, %v320
    %v322 = vpop.f32.mrf.mxu0
    %v323 = vadd.f32 %v138, %v322
    %324 = vmatprep.mubr.bf16.mxu0 0
    %325 = vmatmul.mubr.bf16.gmra.mxu0 %v220
    %v326 = vpop.f32.mrf.mxu0
    %v327 = vadd.f32 %v143, %v326
    %v328 = vpop.f32.mrf.mxu0
    %v329 = vadd.f32 %v143, %v328
    %v330 = vpop.f32.mrf.mxu0
    %v331 = vadd.f32 %v148, %v330
    %v332 = vpop.f32.mrf.mxu0
    %v333 = vadd.f32 %v148, %v332
    %334 = vmatprep.mubr.bf16.mxu0 0
    %335 = vmatmul.mubr.bf16.gmra.mxu0 %v223
    %v336 = vpop.f32.mrf.mxu0
    %v337 = vadd.f32 %v153, %v336
    %v338 = vpop.f32.mrf.mxu0
    %v339 = vadd.f32 %v153, %v338
    %v340 = vpop.f32.mrf.mxu0
    %v341 = vadd.f32 %v158, %v340
    %v342 = vpop.f32.mrf.mxu0
    %v343 = vadd.f32 %v158, %v342
    %344 = vdwg.mxu0
    %v345 = vmax.f32 %v267, 0.0
    %v346 = vmax.f32 %v269, 0.0
    %v347 = vmax.f32 %v271, 0.0
    %v348 = vmax.f32 %v273, 0.0
    %v349 = vmax.f32 %v277, 0.0
    %v350 = vmax.f32 %v279, 0.0
    %v351 = vmax.f32 %v281, 0.0
    %v352 = vmax.f32 %v283, 0.0
    %v353 = vmax.f32 %v287, 0.0
    %v354 = vmax.f32 %v289, 0.0
    %v355 = vmax.f32 %v291, 0.0
    %v356 = vmax.f32 %v293, 0.0
    %v357 = vmax.f32 %v297, 0.0
    %v358 = vmax.f32 %v299, 0.0
    %v359 = vmax.f32 %v301, 0.0
    %v360 = vmax.f32 %v303, 0.0
    %v361 = vmax.f32 %v307, 0.0
    %v362 = vmax.f32 %v309, 0.0
    %v363 = vmax.f32 %v311, 0.0
    %v364 = vmax.f32 %v313, 0.0
    %v365 = vmax.f32 %v317, 0.0
    %v366 = vmax.f32 %v319, 0.0
    %v367 = vmax.f32 %v321, 0.0
    %v368 = vmax.f32 %v323, 0.0
    %v369 = vmax.f32 %v327, 0.0
    %v370 = vmax.f32 %v329, 0.0
    %v371 = vmax.f32 %v331, 0.0
    %v372 = vmax.f32 %v333, 0.0
    %v373 = vmax.f32 %v337, 0.0
    %v374 = vmax.f32 %v339, 0.0
    %v375 = vmax.f32 %v341, 0.0
    %v376 = vmax.f32 %v343, 0.0
    %v377 = vpack.c.bf16 %v347, %v345
    %v378 = vpack.c.bf16 %v348, %v346
    %v379 = vpack.c.bf16 %v351, %v349
    %v380 = vpack.c.bf16 %v352, %v350
    %v381 = vpack.c.bf16 %v355, %v353
    %v382 = vpack.c.bf16 %v356, %v354
    %v383 = vpack.c.bf16 %v359, %v357
    %v384 = vpack.c.bf16 %v360, %v358
    %v385 = vpack.c.bf16 %v363, %v361
    %v386 = vpack.c.bf16 %v364, %v362
    %v387 = vpack.c.bf16 %v367, %v365
    %v388 = vpack.c.bf16 %v368, %v366
    %v389 = vpack.c.bf16 %v371, %v369
    %v390 = vpack.c.bf16 %v372, %v370
    %v391 = vpack.c.bf16 %v375, %v373
    %v392 = vpack.c.bf16 %v376, %v374
    %v393 = vld [vmem:[#allocation2] sm:$0xf]
    %v394 = vld [vmem:[#allocation2 + $0x4] sm:$0xf]
    %v395 = vld [vmem:[#allocation2 + $0x8] sm:$0xf]
    %v396 = vld [vmem:[#allocation2 + $0xc] sm:$0xf]
    %v397 = vld [vmem:[#allocation2 + $0x10] sm:$0xf]
    %v398 = vld [vmem:[#allocation2 + $0x14] sm:$0xf]
    %v399 = vld [vmem:[#allocation2 + $0x18] sm:$0xf]
    %v400 = vld [vmem:[#allocation2 + $0x1c] sm:$0xf]
    %v401 = vld [vmem:[#allocation2 + $0x20] sm:$0xf]
    %v402 = vld [vmem:[#allocation2 + $0x24] sm:$0xf]
    %v403 = vld [vmem:[#allocation2 + $0x28] sm:$0xf]
    %v404 = vld [vmem:[#allocation2 + $0x2c] sm:$0xf]
    %v405 = vld [vmem:[#allocation2 + $0x30] sm:$0xf]
    %v406 = vld [vmem:[#allocation2 + $0x34] sm:$0xf]
    %v407 = vld [vmem:[#allocation2 + $0x38] sm:$0xf]
    %v408 = vld [vmem:[#allocation2 + $0x3c] sm:$0xf]
    %409 = vset.pattern.permute.xlu0 1
    %410 = vperm.xlu0 %409, %v64
    %v411 = vpop.permute.xlu0 %410
    %413 = vset.pattern.permute.xlu0 1
    %414 = vperm.xlu0 %413, %v65
    %v415 = vpop.permute.xlu0 %414
    %417 = vset.pattern.permute.xlu0 1
    %418 = vperm.xlu0 %417, %v66
    %v419 = vpop.permute.xlu0 %418
    %421 = vset.pattern.permute.xlu0 1
    %422 = vperm.xlu0 %421, %v67
    %v423 = vpop.permute.xlu0 %422
    %425 = vset.pattern.permute.xlu0 1
    %426 = vperm.xlu0 %425, %v68
    %v427 = vpop.permute.xlu0 %426
    %429 = vset.pattern.permute.xlu0 1
    %430 = vperm.xlu0 %429, %v69
    %v431 = vpop.permute.xlu0 %430
    %433 = vset.pattern.permute.xlu0 1
    %434 = vperm.xlu0 %433, %v70
    %v435 = vpop.permute.xlu0 %434
    %437 = vset.pattern.permute.xlu0 1
    %438 = vperm.xlu0 %437, %v71
    %v439 = vpop.permute.xlu0 %438
    %441 = vset.pattern.permute.xlu0 1
    %442 = vperm.xlu0 %441, %v72
    %v443 = vpop.permute.xlu0 %442
    %445 = vset.pattern.permute.xlu0 1
    %446 = vperm.xlu0 %445, %v73
    %v447 = vpop.permute.xlu0 %446
    %449 = vset.pattern.permute.xlu0 1
    %450 = vperm.xlu0 %449, %v74
    %v451 = vpop.permute.xlu0 %450
    %453 = vset.pattern.permute.xlu0 1
    %454 = vperm.xlu0 %453, %v75
    %v455 = vpop.permute.xlu0 %454
    %457 = vset.pattern.permute.xlu0 1
    %458 = vperm.xlu0 %457, %v76
    %v459 = vpop.permute.xlu0 %458
    %461 = vset.pattern.permute.xlu0 1
    %462 = vperm.xlu0 %461, %v77
    %v463 = vpop.permute.xlu0 %462
    %465 = vset.pattern.permute.xlu0 1
    %466 = vperm.xlu0 %465, %v78
    %v467 = vpop.permute.xlu0 %466
    %469 = vset.pattern.permute.xlu0 1
    %470 = vperm.xlu0 %469, %v79
    %v471 = vpop.permute.xlu0 %470
    %v489 = vunpack.c.l.b16 %v393
    %v490 = vunpack.c.l.b16 %v394
    %v491 = vunpack.c.l.b16 %v395
    %v492 = vunpack.c.l.b16 %v396
    %v493 = vunpack.c.l.b16 %v397
    %v494 = vunpack.c.l.b16 %v398
    %v495 = vunpack.c.l.b16 %v399
    %v496 = vunpack.c.l.b16 %v400
    %v497 = vunpack.c.l.b16 %v401
    %v498 = vunpack.c.l.b16 %v402
    %v499 = vunpack.c.l.b16 %v403
    %v500 = vunpack.c.l.b16 %v404
    %v501 = vunpack.c.l.b16 %v405
    %v502 = vunpack.c.l.b16 %v406
    %v503 = vunpack.c.l.b16 %v407
    %v504 = vunpack.c.l.b16 %v408
    %v505 = vpack.c.b16 %v490, %v489
    %v506 = vpack.c.b16 %v492, %v491
    %v507 = vpack.c.b16 %v494, %v493
    %v508 = vpack.c.b16 %v496, %v495
    %v509 = vpack.c.b16 %v498, %v497
    %v510 = vpack.c.b16 %v500, %v499
    %v511 = vpack.c.b16 %v502, %v501
    %v512 = vpack.c.b16 %v504, %v503
    %521 = vmatprep.subr.bf16.mxu0 %v392
    %522 = vmatpush1.bf16.msra.mxu0 %v391
    %523 = vmatprep.subr.bf16.mxu0 %v390
    %524 = vmatpush1.bf16.msra.mxu0 %v389
    %525 = vmatprep.subr.bf16.mxu0 %v388
    %526 = vmatpush1.bf16.msra.mxu0 %v387
    %527 = vmatprep.subr.bf16.mxu0 %v386
    %528 = vmatpush1.bf16.msra.mxu0 %v385
    %529 = vmatprep.subr.bf16.mxu0 %v384
    %530 = vmatpush1.bf16.msra.mxu0 %v383
    %531 = vmatprep.subr.bf16.mxu0 %v382
    %532 = vmatpush1.bf16.msra.mxu0 %v381
    %533 = vmatprep.subr.bf16.mxu0 %v380
    %534 = vmatpush1.bf16.msra.mxu0 %v379
    %535 = vmatprep.subr.bf16.mxu0 %v378
    %536 = vmatpush1.bf16.msra.mxu0 %v377
    %537 = vmatprep.subr.bf16.mxu0 0
    %538 = vmatpush2.bf16.msra.mxu0 0
    %539 = vmatprep.subr.bf16.mxu0 0
    %540 = vmatpush2.bf16.msra.mxu0 0
    %541 = vmatprep.subr.bf16.mxu0 0
    %542 = vmatpush2.bf16.msra.mxu0 0
    %543 = vmatprep.subr.bf16.mxu0 0
    %544 = vmatpush2.bf16.msra.mxu0 0
    %545 = vmatprep.subr.bf16.mxu0 0
    %546 = vmatpush2.bf16.msra.mxu0 0
    %547 = vmatprep.subr.bf16.mxu0 0
    %548 = vmatpush2.bf16.msra.mxu0 0
    %549 = vmatprep.subr.bf16.mxu0 0
    %550 = vmatpush2.bf16.msra.mxu0 0
    %551 = vmatprep.subr.bf16.mxu0 0
    %552 = vmatpush2.bf16.msra.mxu0 0
    %553 = vmatprep.mubr.bf16.mxu0 0
    %554 = vmatmul.mubr.bf16.gmra.mxu0 %v505
    %v555 = vpop.f32.mrf.mxu0
    %v556 = vadd.f32 %v411, %v555
    %v557 = vpop.f32.mrf.mxu0
    %v558 = vadd.f32 %v411, %v557
    %v559 = vpop.f32.mrf.mxu0
    %v560 = vadd.f32 %v415, %v559
    %v561 = vpop.f32.mrf.mxu0
    %v562 = vadd.f32 %v415, %v561
    %563 = vmatprep.mubr.bf16.mxu0 0
    %564 = vmatmul.mubr.bf16.gmra.mxu0 %v506
    %v565 = vpop.f32.mrf.mxu0
    %v566 = vadd.f32 %v419, %v565
    %v567 = vpop.f32.mrf.mxu0
    %v568 = vadd.f32 %v419, %v567
    %v569 = vpop.f32.mrf.mxu0
    %v570 = vadd.f32 %v423, %v569
    %v571 = vpop.f32.mrf.mxu0
    %v572 = vadd.f32 %v423, %v571
    %573 = vmatprep.mubr.bf16.mxu0 0
    %574 = vmatmul.mubr.bf16.gmra.mxu0 %v507
    %v575 = vpop.f32.mrf.mxu0
    %v576 = vadd.f32 %v427, %v575
    %v577 = vpop.f32.mrf.mxu0
    %v578 = vadd.f32 %v427, %v577
    %v579 = vpop.f32.mrf.mxu0
    %v580 = vadd.f32 %v431, %v579
    %v581 = vpop.f32.mrf.mxu0
    %v582 = vadd.f32 %v431, %v581
    %583 = vmatprep.mubr.bf16.mxu0 0
    %584 = vmatmul.mubr.bf16.gmra.mxu0 %v508
    %v585 = vpop.f32.mrf.mxu0
    %v586 = vadd.f32 %v435, %v585
    %v587 = vpop.f32.mrf.mxu0
    %v588 = vadd.f32 %v435, %v587
    %v589 = vpop.f32.mrf.mxu0
    %v590 = vadd.f32 %v439, %v589
    %v591 = vpop.f32.mrf.mxu0
    %v592 = vadd.f32 %v439, %v591
    %593 = vmatprep.mubr.bf16.mxu0 0
    %594 = vmatmul.mubr.bf16.gmra.mxu0 %v509
    %v595 = vpop.f32.mrf.mxu0
    %v596 = vadd.f32 %v443, %v595
    %v597 = vpop.f32.mrf.mxu0
    %v598 = vadd.f32 %v443, %v597
    %v599 = vpop.f32.mrf.mxu0
    %v600 = vadd.f32 %v447, %v599
    %v601 = vpop.f32.mrf.mxu0
    %v602 = vadd.f32 %v447, %v601
    %603 = vmatprep.mubr.bf16.mxu0 0
    %604 = vmatmul.mubr.bf16.gmra.mxu0 %v510
    %v605 = vpop.f32.mrf.mxu0
    %v606 = vadd.f32 %v451, %v605
    %v607 = vpop.f32.mrf.mxu0
    %v608 = vadd.f32 %v451, %v607
    %v609 = vpop.f32.mrf.mxu0
    %v610 = vadd.f32 %v455, %v609
    %v611 = vpop.f32.mrf.mxu0
    %v612 = vadd.f32 %v455, %v611
    %613 = vmatprep.mubr.bf16.mxu0 0
    %614 = vmatmul.mubr.bf16.gmra.mxu0 %v511
    %v615 = vpop.f32.mrf.mxu0
    %v616 = vadd.f32 %v459, %v615
    %v617 = vpop.f32.mrf.mxu0
    %v618 = vadd.f32 %v459, %v617
    %v619 = vpop.f32.mrf.mxu0
    %v620 = vadd.f32 %v463, %v619
    %v621 = vpop.f32.mrf.mxu0
    %v622 = vadd.f32 %v463, %v621
    %623 = vmatprep.mubr.bf16.mxu0 0
    %624 = vmatmul.mubr.bf16.gmra.mxu0 %v512
    %v625 = vpop.f32.mrf.mxu0
    %v626 = vadd.f32 %v467, %v625
    %v627 = vpop.f32.mrf.mxu0
    %v628 = vadd.f32 %v467, %v627
    %v629 = vpop.f32.mrf.mxu0
    %v630 = vadd.f32 %v471, %v629
    %v631 = vpop.f32.mrf.mxu0
    %v632 = vadd.f32 %v471, %v631
    %633 = vdwg.mxu0
    %v634 = vmax.f32 %v556, 0.0
    %v635 = vmax.f32 %v558, 0.0
    %v636 = vmax.f32 %v560, 0.0
    %v637 = vmax.f32 %v562, 0.0
    %v638 = vmax.f32 %v566, 0.0
    %v639 = vmax.f32 %v568, 0.0
    %v640 = vmax.f32 %v570, 0.0
    %v641 = vmax.f32 %v572, 0.0
    %v642 = vmax.f32 %v576, 0.0
    %v643 = vmax.f32 %v578, 0.0
    %v644 = vmax.f32 %v580, 0.0
    %v645 = vmax.f32 %v582, 0.0
    %v646 = vmax.f32 %v586, 0.0
    %v647 = vmax.f32 %v588, 0.0
    %v648 = vmax.f32 %v590, 0.0
    %v649 = vmax.f32 %v592, 0.0
    %v650 = vmax.f32 %v596, 0.0
    %v651 = vmax.f32 %v598, 0.0
    %v652 = vmax.f32 %v600, 0.0
    %v653 = vmax.f32 %v602, 0.0
    %v654 = vmax.f32 %v606, 0.0
    %v655 = vmax.f32 %v608, 0.0
    %v656 = vmax.f32 %v610, 0.0
    %v657 = vmax.f32 %v612, 0.0
    %v658 = vmax.f32 %v616, 0.0
    %v659 = vmax.f32 %v618, 0.0
    %v660 = vmax.f32 %v620, 0.0
    %v661 = vmax.f32 %v622, 0.0
    %v662 = vmax.f32 %v626, 0.0
    %v663 = vmax.f32 %v628, 0.0
    %v664 = vmax.f32 %v630, 0.0
    %v665 = vmax.f32 %v632, 0.0
    %v666 = vpack.c.bf16 %v636, %v634
    %v667 = vpack.c.bf16 %v637, %v635
    %v668 = vpack.c.bf16 %v640, %v638
    %v669 = vpack.c.bf16 %v641, %v639
    %v670 = vpack.c.bf16 %v644, %v642
    %v671 = vpack.c.bf16 %v645, %v643
    %v672 = vpack.c.bf16 %v648, %v646
    %v673 = vpack.c.bf16 %v649, %v647
    %v674 = vpack.c.bf16 %v652, %v650
    %v675 = vpack.c.bf16 %v653, %v651
    %v676 = vpack.c.bf16 %v656, %v654
    %v677 = vpack.c.bf16 %v657, %v655
    %v678 = vpack.c.bf16 %v660, %v658
    %v679 = vpack.c.bf16 %v661, %v659
    %v680 = vpack.c.bf16 %v664, %v662
    %v681 = vpack.c.bf16 %v665, %v663
    %s682 = scalar_lea.vmem [#allocation2], 64
    %v683 = vld [vmem:[%s682] sm:$0xf]
    %v684 = vld [vmem:[%s682 + $0x4] sm:$0xf]
    %v685 = vld [vmem:[%s682 + $0x8] sm:$0xf]
    %v686 = vld [vmem:[%s682 + $0xc] sm:$0xf]
    %v687 = vld [vmem:[%s682 + $0x10] sm:$0xf]
    %v688 = vld [vmem:[%s682 + $0x14] sm:$0xf]
    %v689 = vld [vmem:[%s682 + $0x18] sm:$0xf]
    %v690 = vld [vmem:[%s682 + $0x1c] sm:$0xf]
    %v691 = vld [vmem:[%s682 + $0x20] sm:$0xf]
    %v692 = vld [vmem:[%s682 + $0x24] sm:$0xf]
    %v693 = vld [vmem:[%s682 + $0x28] sm:$0xf]
    %v694 = vld [vmem:[%s682 + $0x2c] sm:$0xf]
    %v695 = vld [vmem:[%s682 + $0x30] sm:$0xf]
    %v696 = vld [vmem:[%s682 + $0x34] sm:$0xf]
    %v697 = vld [vmem:[%s682 + $0x38] sm:$0xf]
    %v698 = vld [vmem:[%s682 + $0x3c] sm:$0xf]
    %699 = vset.pattern.permute.xlu0 2
    %700 = vperm.xlu0 %699, %v64
    %v701 = vpop.permute.xlu0 %700
    %703 = vset.pattern.permute.xlu0 2
    %704 = vperm.xlu0 %703, %v65
    %v705 = vpop.permute.xlu0 %704
    %707 = vset.pattern.permute.xlu0 2
    %708 = vperm.xlu0 %707, %v66
    %v709 = vpop.permute.xlu0 %708
    %711 = vset.pattern.permute.xlu0 2
    %712 = vperm.xlu0 %711, %v67
    %v713 = vpop.permute.xlu0 %712
    %715 = vset.pattern.permute.xlu0 2
    %716 = vperm.xlu0 %715, %v68
    %v717 = vpop.permute.xlu0 %716
    %719 = vset.pattern.permute.xlu0 2
    %720 = vperm.xlu0 %719, %v69
    %v721 = vpop.permute.xlu0 %720
    %723 = vset.pattern.permute.xlu0 2
    %724 = vperm.xlu0 %723, %v70
    %v725 = vpop.permute.xlu0 %724
    %727 = vset.pattern.permute.xlu0 2
    %728 = vperm.xlu0 %727, %v71
    %v729 = vpop.permute.xlu0 %728
    %731 = vset.pattern.permute.xlu0 2
    %732 = vperm.xlu0 %731, %v72
    %v733 = vpop.permute.xlu0 %732
    %735 = vset.pattern.permute.xlu0 2
    %736 = vperm.xlu0 %735, %v73
    %v737 = vpop.permute.xlu0 %736
    %739 = vset.pattern.permute.xlu0 2
    %740 = vperm.xlu0 %739, %v74
    %v741 = vpop.permute.xlu0 %740
    %743 = vset.pattern.permute.xlu0 2
    %744 = vperm.xlu0 %743, %v75
    %v745 = vpop.permute.xlu0 %744
    %747 = vset.pattern.permute.xlu0 2
    %748 = vperm.xlu0 %747, %v76
    %v749 = vpop.permute.xlu0 %748
    %751 = vset.pattern.permute.xlu0 2
    %752 = vperm.xlu0 %751, %v77
    %v753 = vpop.permute.xlu0 %752
    %755 = vset.pattern.permute.xlu0 2
    %756 = vperm.xlu0 %755, %v78
    %v757 = vpop.permute.xlu0 %756
    %759 = vset.pattern.permute.xlu0 2
    %760 = vperm.xlu0 %759, %v79
    %v761 = vpop.permute.xlu0 %760
    %v779 = vunpack.c.l.b16 %v683
    %v780 = vunpack.c.l.b16 %v684
    %v781 = vunpack.c.l.b16 %v685
    %v782 = vunpack.c.l.b16 %v686
    %v783 = vunpack.c.l.b16 %v687
    %v784 = vunpack.c.l.b16 %v688
    %v785 = vunpack.c.l.b16 %v689
    %v786 = vunpack.c.l.b16 %v690
    %v787 = vunpack.c.l.b16 %v691
    %v788 = vunpack.c.l.b16 %v692
    %v789 = vunpack.c.l.b16 %v693
    %v790 = vunpack.c.l.b16 %v694
    %v791 = vunpack.c.l.b16 %v695
    %v792 = vunpack.c.l.b16 %v696
    %v793 = vunpack.c.l.b16 %v697
    %v794 = vunpack.c.l.b16 %v698
    %v795 = vpack.c.b16 %v780, %v779
    %v796 = vpack.c.b16 %v782, %v781
    %v797 = vpack.c.b16 %v784, %v783
    %v798 = vpack.c.b16 %v786, %v785
    %v799 = vpack.c.b16 %v788, %v787
    %v800 = vpack.c.b16 %v790, %v789
    %v801 = vpack.c.b16 %v792, %v791
    %v802 = vpack.c.b16 %v794, %v793
    %811 = vmatprep.subr.bf16.mxu0 %v681
    %812 = vmatpush1.bf16.msra.mxu0 %v680
    %813 = vmatprep.subr.bf16.mxu0 %v679
    %814 = vmatpush1.bf16.msra.mxu0 %v678
    %815 = vmatprep.subr.bf16.mxu0 %v677
    %816 = vmatpush1.bf16.msra.mxu0 %v676
    %817 = vmatprep.subr.bf16.mxu0 %v675
    %818 = vmatpush1.bf16.msra.mxu0 %v674
    %819 = vmatprep.subr.bf16.mxu0 %v673
    %820 = vmatpush1.bf16.msra.mxu0 %v672
    %821 = vmatprep.subr.bf16.mxu0 %v671
    %822 = vmatpush1.bf16.msra.mxu0 %v670
    %823 = vmatprep.subr.bf16.mxu0 %v669
    %824 = vmatpush1.bf16.msra.mxu0 %v668
    %825 = vmatprep.subr.bf16.mxu0 %v667
    %826 = vmatpush1.bf16.msra.mxu0 %v666
    %827 = vmatprep.subr.bf16.mxu0 0
    %828 = vmatpush2.bf16.msra.mxu0 0
    %829 = vmatprep.subr.bf16.mxu0 0
    %830 = vmatpush2.bf16.msra.mxu0 0
    %831 = vmatprep.subr.bf16.mxu0 0
    %832 = vmatpush2.bf16.msra.mxu0 0
    %833 = vmatprep.subr.bf16.mxu0 0
    %834 = vmatpush2.bf16.msra.mxu0 0
    %835 = vmatprep.subr.bf16.mxu0 0
    %836 = vmatpush2.bf16.msra.mxu0 0
    %837 = vmatprep.subr.bf16.mxu0 0
    %838 = vmatpush2.bf16.msra.mxu0 0
    %839 = vmatprep.subr.bf16.mxu0 0
    %840 = vmatpush2.bf16.msra.mxu0 0
    %841 = vmatprep.subr.bf16.mxu0 0
    %842 = vmatpush2.bf16.msra.mxu0 0
    %843 = vmatprep.mubr.bf16.mxu0 0
    %844 = vmatmul.mubr.bf16.gmra.mxu0 %v795
    %v845 = vpop.f32.mrf.mxu0
    %v846 = vadd.f32 %v701, %v845
    %v847 = vpop.f32.mrf.mxu0
    %v848 = vadd.f32 %v701, %v847
    %v849 = vpop.f32.mrf.mxu0
    %v850 = vadd.f32 %v705, %v849
    %v851 = vpop.f32.mrf.mxu0
    %v852 = vadd.f32 %v705, %v851
    %853 = vmatprep.mubr.bf16.mxu0 0
    %854 = vmatmul.mubr.bf16.gmra.mxu0 %v796
    %v855 = vpop.f32.mrf.mxu0
    %v856 = vadd.f32 %v709, %v855
    %v857 = vpop.f32.mrf.mxu0
    %v858 = vadd.f32 %v709, %v857
    %v859 = vpop.f32.mrf.mxu0
    %v860 = vadd.f32 %v713, %v859
    %v861 = vpop.f32.mrf.mxu0
    %v862 = vadd.f32 %v713, %v861
    %863 = vmatprep.mubr.bf16.mxu0 0
    %864 = vmatmul.mubr.bf16.gmra.mxu0 %v797
    %v865 = vpop.f32.mrf.mxu0
    %v866 = vadd.f32 %v717, %v865
    %v867 = vpop.f32.mrf.mxu0
    %v868 = vadd.f32 %v717, %v867
    %v869 = vpop.f32.mrf.mxu0
    %v870 = vadd.f32 %v721, %v869
    %v871 = vpop.f32.mrf.mxu0
    %v872 = vadd.f32 %v721, %v871
    %873 = vmatprep.mubr.bf16.mxu0 0
    %874 = vmatmul.mubr.bf16.gmra.mxu0 %v798
    %v875 = vpop.f32.mrf.mxu0
    %v876 = vadd.f32 %v725, %v875
    %v877 = vpop.f32.mrf.mxu0
    %v878 = vadd.f32 %v725, %v877
    %v879 = vpop.f32.mrf.mxu0
    %v880 = vadd.f32 %v729, %v879
    %v881 = vpop.f32.mrf.mxu0
    %v882 = vadd.f32 %v729, %v881
    %883 = vmatprep.mubr.bf16.mxu0 0
    %884 = vmatmul.mubr.bf16.gmra.mxu0 %v799
    %v885 = vpop.f32.mrf.mxu0
    %v886 = vadd.f32 %v733, %v885
    %v887 = vpop.f32.mrf.mxu0
    %v888 = vadd.f32 %v733, %v887
    %v889 = vpop.f32.mrf.mxu0
    %v890 = vadd.f32 %v737, %v889
    %v891 = vpop.f32.mrf.mxu0
    %v892 = vadd.f32 %v737, %v891
    %893 = vmatprep.mubr.bf16.mxu0 0
    %894 = vmatmul.mubr.bf16.gmra.mxu0 %v800
    %v895 = vpop.f32.mrf.mxu0
    %v896 = vadd.f32 %v741, %v895
    %v897 = vpop.f32.mrf.mxu0
    %v898 = vadd.f32 %v741, %v897
    %v899 = vpop.f32.mrf.mxu0
    %v900 = vadd.f32 %v745, %v899
    %v901 = vpop.f32.mrf.mxu0
    %v902 = vadd.f32 %v745, %v901
    %903 = vmatprep.mubr.bf16.mxu0 0
    %904 = vmatmul.mubr.bf16.gmra.mxu0 %v801
    %v905 = vpop.f32.mrf.mxu0
    %v906 = vadd.f32 %v749, %v905
    %v907 = vpop.f32.mrf.mxu0
    %v908 = vadd.f32 %v749, %v907
    %v909 = vpop.f32.mrf.mxu0
    %v910 = vadd.f32 %v753, %v909
    %v911 = vpop.f32.mrf.mxu0
    %v912 = vadd.f32 %v753, %v911
    %913 = vmatprep.mubr.bf16.mxu0 0
    %914 = vmatmul.mubr.bf16.gmra.mxu0 %v802
    %v915 = vpop.f32.mrf.mxu0
    %v916 = vadd.f32 %v757, %v915
    %v917 = vpop.f32.mrf.mxu0
    %v918 = vadd.f32 %v757, %v917
    %v919 = vpop.f32.mrf.mxu0
    %v920 = vadd.f32 %v761, %v919
    %v921 = vpop.f32.mrf.mxu0
    %v922 = vadd.f32 %v761, %v921
    %923 = vdwg.mxu0
    %v924 = vmax.f32 %v846, 0.0
    %v925 = vmax.f32 %v848, 0.0
    %v926 = vmax.f32 %v850, 0.0
    %v927 = vmax.f32 %v852, 0.0
    %v928 = vmax.f32 %v856, 0.0
    %v929 = vmax.f32 %v858, 0.0
    %v930 = vmax.f32 %v860, 0.0
    %v931 = vmax.f32 %v862, 0.0
    %v932 = vmax.f32 %v866, 0.0
    %v933 = vmax.f32 %v868, 0.0
    %v934 = vmax.f32 %v870, 0.0
    %v935 = vmax.f32 %v872, 0.0
    %v936 = vmax.f32 %v876, 0.0
    %v937 = vmax.f32 %v878, 0.0
    %v938 = vmax.f32 %v880, 0.0
    %v939 = vmax.f32 %v882, 0.0
    %v940 = vmax.f32 %v886, 0.0
    %v941 = vmax.f32 %v888, 0.0
    %v942 = vmax.f32 %v890, 0.0
    %v943 = vmax.f32 %v892, 0.0
    %v944 = vmax.f32 %v896, 0.0
    %v945 = vmax.f32 %v898, 0.0
    %v946 = vmax.f32 %v900, 0.0
    %v947 = vmax.f32 %v902, 0.0
    %v948 = vmax.f32 %v906, 0.0
    %v949 = vmax.f32 %v908, 0.0
    %v950 = vmax.f32 %v910, 0.0
    %v951 = vmax.f32 %v912, 0.0
    %v952 = vmax.f32 %v916, 0.0
    %v953 = vmax.f32 %v918, 0.0
    %v954 = vmax.f32 %v920, 0.0
    %v955 = vmax.f32 %v922, 0.0
    %v956 = vpack.c.bf16 %v926, %v924
    %v957 = vpack.c.bf16 %v927, %v925
    %v958 = vpack.c.bf16 %v930, %v928
    %v959 = vpack.c.bf16 %v931, %v929
    %v960 = vpack.c.bf16 %v934, %v932
    %v961 = vpack.c.bf16 %v935, %v933
    %v962 = vpack.c.bf16 %v938, %v936
    %v963 = vpack.c.bf16 %v939, %v937
    %v964 = vpack.c.bf16 %v942, %v940
    %v965 = vpack.c.bf16 %v943, %v941
    %v966 = vpack.c.bf16 %v946, %v944
    %v967 = vpack.c.bf16 %v947, %v945
    %v968 = vpack.c.bf16 %v950, %v948
    %v969 = vpack.c.bf16 %v951, %v949
    %v970 = vpack.c.bf16 %v954, %v952
    %v971 = vpack.c.bf16 %v955, %v953
    %s972 = scalar_lea.vmem [#allocation2], 128
    %v973 = vld [vmem:[%s972] sm:$0xf]
    %v974 = vld [vmem:[%s972 + $0x4] sm:$0xf]
    %v975 = vld [vmem:[%s972 + $0x8] sm:$0xf]
    %v976 = vld [vmem:[%s972 + $0xc] sm:$0xf]
    %v977 = vld [vmem:[%s972 + $0x10] sm:$0xf]
    %v978 = vld [vmem:[%s972 + $0x14] sm:$0xf]
    %v979 = vld [vmem:[%s972 + $0x18] sm:$0xf]
    %v980 = vld [vmem:[%s972 + $0x1c] sm:$0xf]
    %v981 = vld [vmem:[%s972 + $0x20] sm:$0xf]
    %v982 = vld [vmem:[%s972 + $0x24] sm:$0xf]
    %v983 = vld [vmem:[%s972 + $0x28] sm:$0xf]
    %v984 = vld [vmem:[%s972 + $0x2c] sm:$0xf]
    %v985 = vld [vmem:[%s972 + $0x30] sm:$0xf]
    %v986 = vld [vmem:[%s972 + $0x34] sm:$0xf]
    %v987 = vld [vmem:[%s972 + $0x38] sm:$0xf]
    %v988 = vld [vmem:[%s972 + $0x3c] sm:$0xf]
    %989 = vset.pattern.permute.xlu0 3
    %990 = vperm.xlu0 %989, %v64
    %v991 = vpop.permute.xlu0 %990
    %993 = vset.pattern.permute.xlu0 3
    %994 = vperm.xlu0 %993, %v65
    %v995 = vpop.permute.xlu0 %994
    %997 = vset.pattern.permute.xlu0 3
    %998 = vperm.xlu0 %997, %v66
    %v999 = vpop.permute.xlu0 %998
    %1001 = vset.pattern.permute.xlu0 3
    %1002 = vperm.xlu0 %1001, %v67
    %v1003 = vpop.permute.xlu0 %1002
    %1005 = vset.pattern.permute.xlu0 3
    %1006 = vperm.xlu0 %1005, %v68
    %v1007 = vpop.permute.xlu0 %1006
    %1009 = vset.pattern.permute.xlu0 3
    %1010 = vperm.xlu0 %1009, %v69
    %v1011 = vpop.permute.xlu0 %1010
    %1013 = vset.pattern.permute.xlu0 3
    %1014 = vperm.xlu0 %1013, %v70
    %v1015 = vpop.permute.xlu0 %1014
    %1017 = vset.pattern.permute.xlu0 3
    %1018 = vperm.xlu0 %1017, %v71
    %v1019 = vpop.permute.xlu0 %1018
    %1021 = vset.pattern.permute.xlu0 3
    %1022 = vperm.xlu0 %1021, %v72
    %v1023 = vpop.permute.xlu0 %1022
    %1025 = vset.pattern.permute.xlu0 3
    %1026 = vperm.xlu0 %1025, %v73
    %v1027 = vpop.permute.xlu0 %1026
    %1029 = vset.pattern.permute.xlu0 3
    %1030 = vperm.xlu0 %1029, %v74
    %v1031 = vpop.permute.xlu0 %1030
    %1033 = vset.pattern.permute.xlu0 3
    %1034 = vperm.xlu0 %1033, %v75
    %v1035 = vpop.permute.xlu0 %1034
    %1037 = vset.pattern.permute.xlu0 3
    %1038 = vperm.xlu0 %1037, %v76
    %v1039 = vpop.permute.xlu0 %1038
    %1041 = vset.pattern.permute.xlu0 3
    %1042 = vperm.xlu0 %1041, %v77
    %v1043 = vpop.permute.xlu0 %1042
    %1045 = vset.pattern.permute.xlu0 3
    %1046 = vperm.xlu0 %1045, %v78
    %v1047 = vpop.permute.xlu0 %1046
    %1049 = vset.pattern.permute.xlu0 3
    %1050 = vperm.xlu0 %1049, %v79
    %v1051 = vpop.permute.xlu0 %1050
    %v1069 = vunpack.c.l.b16 %v973
    %v1070 = vunpack.c.l.b16 %v974
    %v1071 = vunpack.c.l.b16 %v975
    %v1072 = vunpack.c.l.b16 %v976
    %v1073 = vunpack.c.l.b16 %v977
    %v1074 = vunpack.c.l.b16 %v978
    %v1075 = vunpack.c.l.b16 %v979
    %v1076 = vunpack.c.l.b16 %v980
    %v1077 = vunpack.c.l.b16 %v981
    %v1078 = vunpack.c.l.b16 %v982
    %v1079 = vunpack.c.l.b16 %v983
    %v1080 = vunpack.c.l.b16 %v984
    %v1081 = vunpack.c.l.b16 %v985
    %v1082 = vunpack.c.l.b16 %v986
    %v1083 = vunpack.c.l.b16 %v987
    %v1084 = vunpack.c.l.b16 %v988
    %v1085 = vpack.c.b16 %v1070, %v1069
    %v1086 = vpack.c.b16 %v1072, %v1071
    %v1087 = vpack.c.b16 %v1074, %v1073
    %v1088 = vpack.c.b16 %v1076, %v1075
    %v1089 = vpack.c.b16 %v1078, %v1077
    %v1090 = vpack.c.b16 %v1080, %v1079
    %v1091 = vpack.c.b16 %v1082, %v1081
    %v1092 = vpack.c.b16 %v1084, %v1083
    %1101 = vmatprep.subr.bf16.mxu0 %v971
    %1102 = vmatpush1.bf16.msra.mxu0 %v970
    %1103 = vmatprep.subr.bf16.mxu0 %v969
    %1104 = vmatpush1.bf16.msra.mxu0 %v968
    %1105 = vmatprep.subr.bf16.mxu0 %v967
    %1106 = vmatpush1.bf16.msra.mxu0 %v966
    %1107 = vmatprep.subr.bf16.mxu0 %v965
    %1108 = vmatpush1.bf16.msra.mxu0 %v964
    %1109 = vmatprep.subr.bf16.mxu0 %v963
    %1110 = vmatpush1.bf16.msra.mxu0 %v962
    %1111 = vmatprep.subr.bf16.mxu0 %v961
    %1112 = vmatpush1.bf16.msra.mxu0 %v960
    %1113 = vmatprep.subr.bf16.mxu0 %v959
    %1114 = vmatpush1.bf16.msra.mxu0 %v958
    %1115 = vmatprep.subr.bf16.mxu0 %v957
    %1116 = vmatpush1.bf16.msra.mxu0 %v956
    %1117 = vmatprep.subr.bf16.mxu0 0
    %1118 = vmatpush2.bf16.msra.mxu0 0
    %1119 = vmatprep.subr.bf16.mxu0 0
    %1120 = vmatpush2.bf16.msra.mxu0 0
    %1121 = vmatprep.subr.bf16.mxu0 0
    %1122 = vmatpush2.bf16.msra.mxu0 0
    %1123 = vmatprep.subr.bf16.mxu0 0
    %1124 = vmatpush2.bf16.msra.mxu0 0
    %1125 = vmatprep.subr.bf16.mxu0 0
    %1126 = vmatpush2.bf16.msra.mxu0 0
    %1127 = vmatprep.subr.bf16.mxu0 0
    %1128 = vmatpush2.bf16.msra.mxu0 0
    %1129 = vmatprep.subr.bf16.mxu0 0
    %1130 = vmatpush2.bf16.msra.mxu0 0
    %1131 = vmatprep.subr.bf16.mxu0 0
    %1132 = vmatpush2.bf16.msra.mxu0 0
    %1133 = vmatprep.mubr.bf16.mxu0 0
    %1134 = vmatmul.mubr.bf16.gmra.mxu0 %v1085
    %v1135 = vpop.f32.mrf.mxu0
    %v1136 = vadd.f32 %v991, %v1135
    %v1137 = vpop.f32.mrf.mxu0
    %v1138 = vadd.f32 %v991, %v1137
    %v1139 = vpop.f32.mrf.mxu0
    %v1140 = vadd.f32 %v995, %v1139
    %v1141 = vpop.f32.mrf.mxu0
    %v1142 = vadd.f32 %v995, %v1141
    %1143 = vmatprep.mubr.bf16.mxu0 0
    %1144 = vmatmul.mubr.bf16.gmra.mxu0 %v1086
    %v1145 = vpop.f32.mrf.mxu0
    %v1146 = vadd.f32 %v999, %v1145
    %v1147 = vpop.f32.mrf.mxu0
    %v1148 = vadd.f32 %v999, %v1147
    %v1149 = vpop.f32.mrf.mxu0
    %v1150 = vadd.f32 %v1003, %v1149
    %v1151 = vpop.f32.mrf.mxu0
    %v1152 = vadd.f32 %v1003, %v1151
    %1153 = vmatprep.mubr.bf16.mxu0 0
    %1154 = vmatmul.mubr.bf16.gmra.mxu0 %v1087
    %v1155 = vpop.f32.mrf.mxu0
    %v1156 = vadd.f32 %v1007, %v1155
    %v1157 = vpop.f32.mrf.mxu0
    %v1158 = vadd.f32 %v1007, %v1157
    %v1159 = vpop.f32.mrf.mxu0
    %v1160 = vadd.f32 %v1011, %v1159
    %v1161 = vpop.f32.mrf.mxu0
    %v1162 = vadd.f32 %v1011, %v1161
    %1163 = vmatprep.mubr.bf16.mxu0 0
    %1164 = vmatmul.mubr.bf16.gmra.mxu0 %v1088
    %v1165 = vpop.f32.mrf.mxu0
    %v1166 = vadd.f32 %v1015, %v1165
    %v1167 = vpop.f32.mrf.mxu0
    %v1168 = vadd.f32 %v1015, %v1167
    %v1169 = vpop.f32.mrf.mxu0
    %v1170 = vadd.f32 %v1019, %v1169
    %v1171 = vpop.f32.mrf.mxu0
    %v1172 = vadd.f32 %v1019, %v1171
    %1173 = vmatprep.mubr.bf16.mxu0 0
    %1174 = vmatmul.mubr.bf16.gmra.mxu0 %v1089
    %v1175 = vpop.f32.mrf.mxu0
    %v1176 = vadd.f32 %v1023, %v1175
    %v1177 = vpop.f32.mrf.mxu0
    %v1178 = vadd.f32 %v1023, %v1177
    %v1179 = vpop.f32.mrf.mxu0
    %v1180 = vadd.f32 %v1027, %v1179
    %v1181 = vpop.f32.mrf.mxu0
    %v1182 = vadd.f32 %v1027, %v1181
    %1183 = vmatprep.mubr.bf16.mxu0 0
    %1184 = vmatmul.mubr.bf16.gmra.mxu0 %v1090
    %v1185 = vpop.f32.mrf.mxu0
    %v1186 = vadd.f32 %v1031, %v1185
    %v1187 = vpop.f32.mrf.mxu0
    %v1188 = vadd.f32 %v1031, %v1187
    %v1189 = vpop.f32.mrf.mxu0
    %v1190 = vadd.f32 %v1035, %v1189
    %v1191 = vpop.f32.mrf.mxu0
    %v1192 = vadd.f32 %v1035, %v1191
    %1193 = vmatprep.mubr.bf16.mxu0 0
    %1194 = vmatmul.mubr.bf16.gmra.mxu0 %v1091
    %v1195 = vpop.f32.mrf.mxu0
    %v1196 = vadd.f32 %v1039, %v1195
    %v1197 = vpop.f32.mrf.mxu0
    %v1198 = vadd.f32 %v1039, %v1197
    %v1199 = vpop.f32.mrf.mxu0
    %v1200 = vadd.f32 %v1043, %v1199
    %v1201 = vpop.f32.mrf.mxu0
    %v1202 = vadd.f32 %v1043, %v1201
    %1203 = vmatprep.mubr.bf16.mxu0 0
    %1204 = vmatmul.mubr.bf16.gmra.mxu0 %v1092
    %v1205 = vpop.f32.mrf.mxu0
    %v1206 = vadd.f32 %v1047, %v1205
    %v1207 = vpop.f32.mrf.mxu0
    %v1208 = vadd.f32 %v1047, %v1207
    %v1209 = vpop.f32.mrf.mxu0
    %v1210 = vadd.f32 %v1051, %v1209
    %v1211 = vpop.f32.mrf.mxu0
    %v1212 = vadd.f32 %v1051, %v1211
    %1213 = vdwg.mxu0
    %v1214 = vmax.f32 %v1136, 0.0
    %v1215 = vmax.f32 %v1138, 0.0
    %v1216 = vmax.f32 %v1140, 0.0
    %v1217 = vmax.f32 %v1142, 0.0
    %v1218 = vmax.f32 %v1146, 0.0
    %v1219 = vmax.f32 %v1148, 0.0
    %v1220 = vmax.f32 %v1150, 0.0
    %v1221 = vmax.f32 %v1152, 0.0
    %v1222 = vmax.f32 %v1156, 0.0
    %v1223 = vmax.f32 %v1158, 0.0
    %v1224 = vmax.f32 %v1160, 0.0
    %v1225 = vmax.f32 %v1162, 0.0
    %v1226 = vmax.f32 %v1166, 0.0
    %v1227 = vmax.f32 %v1168, 0.0
    %v1228 = vmax.f32 %v1170, 0.0
    %v1229 = vmax.f32 %v1172, 0.0
    %v1230 = vmax.f32 %v1176, 0.0
    %v1231 = vmax.f32 %v1178, 0.0
    %v1232 = vmax.f32 %v1180, 0.0
    %v1233 = vmax.f32 %v1182, 0.0
    %v1234 = vmax.f32 %v1186, 0.0
    %v1235 = vmax.f32 %v1188, 0.0
    %v1236 = vmax.f32 %v1190, 0.0
    %v1237 = vmax.f32 %v1192, 0.0
    %v1238 = vmax.f32 %v1196, 0.0
    %v1239 = vmax.f32 %v1198, 0.0
    %v1240 = vmax.f32 %v1200, 0.0
    %v1241 = vmax.f32 %v1202, 0.0
    %v1242 = vmax.f32 %v1206, 0.0
    %v1243 = vmax.f32 %v1208, 0.0
    %v1244 = vmax.f32 %v1210, 0.0
    %v1245 = vmax.f32 %v1212, 0.0
    %v1246 = vpack.c.bf16 %v1216, %v1214
    %v1247 = vpack.c.bf16 %v1217, %v1215
    %v1248 = vpack.c.bf16 %v1220, %v1218
    %v1249 = vpack.c.bf16 %v1221, %v1219
    %v1250 = vpack.c.bf16 %v1224, %v1222
    %v1251 = vpack.c.bf16 %v1225, %v1223
    %v1252 = vpack.c.bf16 %v1228, %v1226
    %v1253 = vpack.c.bf16 %v1229, %v1227
    %v1254 = vpack.c.bf16 %v1232, %v1230
    %v1255 = vpack.c.bf16 %v1233, %v1231
    %v1256 = vpack.c.bf16 %v1236, %v1234
    %v1257 = vpack.c.bf16 %v1237, %v1235
    %v1258 = vpack.c.bf16 %v1240, %v1238
    %v1259 = vpack.c.bf16 %v1241, %v1239
    %v1260 = vpack.c.bf16 %v1244, %v1242
    %v1261 = vpack.c.bf16 %v1245, %v1243
    %s1262 = scalar_lea.vmem [#allocation2], 192
    %v1263 = vld [vmem:[%s1262] sm:$0xf]
    %v1264 = vld [vmem:[%s1262 + $0x4] sm:$0xf]
    %v1265 = vld [vmem:[%s1262 + $0x8] sm:$0xf]
    %v1266 = vld [vmem:[%s1262 + $0xc] sm:$0xf]
    %v1267 = vld [vmem:[%s1262 + $0x10] sm:$0xf]
    %v1268 = vld [vmem:[%s1262 + $0x14] sm:$0xf]
    %v1269 = vld [vmem:[%s1262 + $0x18] sm:$0xf]
    %v1270 = vld [vmem:[%s1262 + $0x1c] sm:$0xf]
    %v1271 = vld [vmem:[%s1262 + $0x20] sm:$0xf]
    %v1272 = vld [vmem:[%s1262 + $0x24] sm:$0xf]
    %v1273 = vld [vmem:[%s1262 + $0x28] sm:$0xf]
    %v1274 = vld [vmem:[%s1262 + $0x2c] sm:$0xf]
    %v1275 = vld [vmem:[%s1262 + $0x30] sm:$0xf]
    %v1276 = vld [vmem:[%s1262 + $0x34] sm:$0xf]
    %v1277 = vld [vmem:[%s1262 + $0x38] sm:$0xf]
    %v1278 = vld [vmem:[%s1262 + $0x3c] sm:$0xf]
    %1279 = vset.pattern.permute.xlu0 4
    %1280 = vperm.xlu0 %1279, %v64
    %v1281 = vpop.permute.xlu0 %1280
    %1283 = vset.pattern.permute.xlu0 4
    %1284 = vperm.xlu0 %1283, %v65
    %v1285 = vpop.permute.xlu0 %1284
    %1287 = vset.pattern.permute.xlu0 4
    %1288 = vperm.xlu0 %1287, %v66
    %v1289 = vpop.permute.xlu0 %1288
    %1291 = vset.pattern.permute.xlu0 4
    %1292 = vperm.xlu0 %1291, %v67
    %v1293 = vpop.permute.xlu0 %1292
    %1295 = vset.pattern.permute.xlu0 4
    %1296 = vperm.xlu0 %1295, %v68
    %v1297 = vpop.permute.xlu0 %1296
    %1299 = vset.pattern.permute.xlu0 4
    %1300 = vperm.xlu0 %1299, %v69
    %v1301 = vpop.permute.xlu0 %1300
    %1303 = vset.pattern.permute.xlu0 4
    %1304 = vperm.xlu0 %1303, %v70
    %v1305 = vpop.permute.xlu0 %1304
    %1307 = vset.pattern.permute.xlu0 4
    %1308 = vperm.xlu0 %1307, %v71
    %v1309 = vpop.permute.xlu0 %1308
    %1311 = vset.pattern.permute.xlu0 4
    %1312 = vperm.xlu0 %1311, %v72
    %v1313 = vpop.permute.xlu0 %1312
    %1315 = vset.pattern.permute.xlu0 4
    %1316 = vperm.xlu0 %1315, %v73
    %v1317 = vpop.permute.xlu0 %1316
    %1319 = vset.pattern.permute.xlu0 4
    %1320 = vperm.xlu0 %1319, %v74
    %v1321 = vpop.permute.xlu0 %1320
    %1323 = vset.pattern.permute.xlu0 4
    %1324 = vperm.xlu0 %1323, %v75
    %v1325 = vpop.permute.xlu0 %1324
    %1327 = vset.pattern.permute.xlu0 4
    %1328 = vperm.xlu0 %1327, %v76
    %v1329 = vpop.permute.xlu0 %1328
    %1331 = vset.pattern.permute.xlu0 4
    %1332 = vperm.xlu0 %1331, %v77
    %v1333 = vpop.permute.xlu0 %1332
    %1335 = vset.pattern.permute.xlu0 4
    %1336 = vperm.xlu0 %1335, %v78
    %v1337 = vpop.permute.xlu0 %1336
    %1339 = vset.pattern.permute.xlu0 4
    %1340 = vperm.xlu0 %1339, %v79
    %v1341 = vpop.permute.xlu0 %1340
    %v1359 = vunpack.c.l.b16 %v1263
    %v1360 = vunpack.c.l.b16 %v1264
    %v1361 = vunpack.c.l.b16 %v1265
    %v1362 = vunpack.c.l.b16 %v1266
    %v1363 = vunpack.c.l.b16 %v1267
    %v1364 = vunpack.c.l.b16 %v1268
    %v1365 = vunpack.c.l.b16 %v1269
    %v1366 = vunpack.c.l.b16 %v1270
    %v1367 = vunpack.c.l.b16 %v1271
    %v1368 = vunpack.c.l.b16 %v1272
    %v1369 = vunpack.c.l.b16 %v1273
    %v1370 = vunpack.c.l.b16 %v1274
    %v1371 = vunpack.c.l.b16 %v1275
    %v1372 = vunpack.c.l.b16 %v1276
    %v1373 = vunpack.c.l.b16 %v1277
    %v1374 = vunpack.c.l.b16 %v1278
    %v1375 = vpack.c.b16 %v1360, %v1359
    %v1376 = vpack.c.b16 %v1362, %v1361
    %v1377 = vpack.c.b16 %v1364, %v1363
    %v1378 = vpack.c.b16 %v1366, %v1365
    %v1379 = vpack.c.b16 %v1368, %v1367
    %v1380 = vpack.c.b16 %v1370, %v1369
    %v1381 = vpack.c.b16 %v1372, %v1371
    %v1382 = vpack.c.b16 %v1374, %v1373
    %1391 = vmatprep.subr.bf16.mxu0 %v1261
    %1392 = vmatpush1.bf16.msra.mxu0 %v1260
    %1393 = vmatprep.subr.bf16.mxu0 %v1259
    %1394 = vmatpush1.bf16.msra.mxu0 %v1258
    %1395 = vmatprep.subr.bf16.mxu0 %v1257
    %1396 = vmatpush1.bf16.msra.mxu0 %v1256
    %1397 = vmatprep.subr.bf16.mxu0 %v1255
    %1398 = vmatpush1.bf16.msra.mxu0 %v1254
    %1399 = vmatprep.subr.bf16.mxu0 %v1253
    %1400 = vmatpush1.bf16.msra.mxu0 %v1252
    %1401 = vmatprep.subr.bf16.mxu0 %v1251
    %1402 = vmatpush1.bf16.msra.mxu0 %v1250
    %1403 = vmatprep.subr.bf16.mxu0 %v1249
    %1404 = vmatpush1.bf16.msra.mxu0 %v1248
    %1405 = vmatprep.subr.bf16.mxu0 %v1247
    %1406 = vmatpush1.bf16.msra.mxu0 %v1246
    %1407 = vmatprep.subr.bf16.mxu0 0
    %1408 = vmatpush2.bf16.msra.mxu0 0
    %1409 = vmatprep.subr.bf16.mxu0 0
    %1410 = vmatpush2.bf16.msra.mxu0 0
    %1411 = vmatprep.subr.bf16.mxu0 0
    %1412 = vmatpush2.bf16.msra.mxu0 0
    %1413 = vmatprep.subr.bf16.mxu0 0
    %1414 = vmatpush2.bf16.msra.mxu0 0
    %1415 = vmatprep.subr.bf16.mxu0 0
    %1416 = vmatpush2.bf16.msra.mxu0 0
    %1417 = vmatprep.subr.bf16.mxu0 0
    %1418 = vmatpush2.bf16.msra.mxu0 0
    %1419 = vmatprep.subr.bf16.mxu0 0
    %1420 = vmatpush2.bf16.msra.mxu0 0
    %1421 = vmatprep.subr.bf16.mxu0 0
    %1422 = vmatpush2.bf16.msra.mxu0 0
    %1423 = vmatprep.mubr.bf16.mxu0 0
    %1424 = vmatmul.mubr.bf16.gmra.mxu0 %v1375
    %v1425 = vpop.f32.mrf.mxu0
    %v1426 = vadd.f32 %v1281, %v1425
    %v1427 = vpop.f32.mrf.mxu0
    %v1428 = vadd.f32 %v1281, %v1427
    %v1429 = vpop.f32.mrf.mxu0
    %v1430 = vadd.f32 %v1285, %v1429
    %v1431 = vpop.f32.mrf.mxu0
    %v1432 = vadd.f32 %v1285, %v1431
    %1433 = vmatprep.mubr.bf16.mxu0 0
    %1434 = vmatmul.mubr.bf16.gmra.mxu0 %v1376
    %v1435 = vpop.f32.mrf.mxu0
    %v1436 = vadd.f32 %v1289, %v1435
    %v1437 = vpop.f32.mrf.mxu0
    %v1438 = vadd.f32 %v1289, %v1437
    %v1439 = vpop.f32.mrf.mxu0
    %v1440 = vadd.f32 %v1293, %v1439
    %v1441 = vpop.f32.mrf.mxu0
    %v1442 = vadd.f32 %v1293, %v1441
    %1443 = vmatprep.mubr.bf16.mxu0 0
    %1444 = vmatmul.mubr.bf16.gmra.mxu0 %v1377
    %v1445 = vpop.f32.mrf.mxu0
    %v1446 = vadd.f32 %v1297, %v1445
    %v1447 = vpop.f32.mrf.mxu0
    %v1448 = vadd.f32 %v1297, %v1447
    %v1449 = vpop.f32.mrf.mxu0
    %v1450 = vadd.f32 %v1301, %v1449
    %v1451 = vpop.f32.mrf.mxu0
    %v1452 = vadd.f32 %v1301, %v1451
    %1453 = vmatprep.mubr.bf16.mxu0 0
    %1454 = vmatmul.mubr.bf16.gmra.mxu0 %v1378
    %v1455 = vpop.f32.mrf.mxu0
    %v1456 = vadd.f32 %v1305, %v1455
    %v1457 = vpop.f32.mrf.mxu0
    %v1458 = vadd.f32 %v1305, %v1457
    %v1459 = vpop.f32.mrf.mxu0
    %v1460 = vadd.f32 %v1309, %v1459
    %v1461 = vpop.f32.mrf.mxu0
    %v1462 = vadd.f32 %v1309, %v1461
    %1463 = vmatprep.mubr.bf16.mxu0 0
    %1464 = vmatmul.mubr.bf16.gmra.mxu0 %v1379
    %v1465 = vpop.f32.mrf.mxu0
    %v1466 = vadd.f32 %v1313, %v1465
    %v1467 = vpop.f32.mrf.mxu0
    %v1468 = vadd.f32 %v1313, %v1467
    %v1469 = vpop.f32.mrf.mxu0
    %v1470 = vadd.f32 %v1317, %v1469
    %v1471 = vpop.f32.mrf.mxu0
    %v1472 = vadd.f32 %v1317, %v1471
    %1473 = vmatprep.mubr.bf16.mxu0 0
    %1474 = vmatmul.mubr.bf16.gmra.mxu0 %v1380
    %v1475 = vpop.f32.mrf.mxu0
    %v1476 = vadd.f32 %v1321, %v1475
    %v1477 = vpop.f32.mrf.mxu0
    %v1478 = vadd.f32 %v1321, %v1477
    %v1479 = vpop.f32.mrf.mxu0
    %v1480 = vadd.f32 %v1325, %v1479
    %v1481 = vpop.f32.mrf.mxu0
    %v1482 = vadd.f32 %v1325, %v1481
    %1483 = vmatprep.mubr.bf16.mxu0 0
    %1484 = vmatmul.mubr.bf16.gmra.mxu0 %v1381
    %v1485 = vpop.f32.mrf.mxu0
    %v1486 = vadd.f32 %v1329, %v1485
    %v1487 = vpop.f32.mrf.mxu0
    %v1488 = vadd.f32 %v1329, %v1487
    %v1489 = vpop.f32.mrf.mxu0
    %v1490 = vadd.f32 %v1333, %v1489
    %v1491 = vpop.f32.mrf.mxu0
    %v1492 = vadd.f32 %v1333, %v1491
    %1493 = vmatprep.mubr.bf16.mxu0 0
    %1494 = vmatmul.mubr.bf16.gmra.mxu0 %v1382
    %v1495 = vpop.f32.mrf.mxu0
    %v1496 = vadd.f32 %v1337, %v1495
    %v1497 = vpop.f32.mrf.mxu0
    %v1498 = vadd.f32 %v1337, %v1497
    %v1499 = vpop.f32.mrf.mxu0
    %v1500 = vadd.f32 %v1341, %v1499
    %v1501 = vpop.f32.mrf.mxu0
    %v1502 = vadd.f32 %v1341, %v1501
    %1503 = vdwg.mxu0
    %v1504 = vmax.f32 %v1426, 0.0
    %v1505 = vmax.f32 %v1428, 0.0
    %v1506 = vmax.f32 %v1430, 0.0
    %v1507 = vmax.f32 %v1432, 0.0
    %v1508 = vmax.f32 %v1436, 0.0
    %v1509 = vmax.f32 %v1438, 0.0
    %v1510 = vmax.f32 %v1440, 0.0
    %v1511 = vmax.f32 %v1442, 0.0
    %v1512 = vmax.f32 %v1446, 0.0
    %v1513 = vmax.f32 %v1448, 0.0
    %v1514 = vmax.f32 %v1450, 0.0
    %v1515 = vmax.f32 %v1452, 0.0
    %v1516 = vmax.f32 %v1456, 0.0
    %v1517 = vmax.f32 %v1458, 0.0
    %v1518 = vmax.f32 %v1460, 0.0
    %v1519 = vmax.f32 %v1462, 0.0
    %v1520 = vmax.f32 %v1466, 0.0
    %v1521 = vmax.f32 %v1468, 0.0
    %v1522 = vmax.f32 %v1470, 0.0
    %v1523 = vmax.f32 %v1472, 0.0
    %v1524 = vmax.f32 %v1476, 0.0
    %v1525 = vmax.f32 %v1478, 0.0
    %v1526 = vmax.f32 %v1480, 0.0
    %v1527 = vmax.f32 %v1482, 0.0
    %v1528 = vmax.f32 %v1486, 0.0
    %v1529 = vmax.f32 %v1488, 0.0
    %v1530 = vmax.f32 %v1490, 0.0
    %v1531 = vmax.f32 %v1492, 0.0
    %v1532 = vmax.f32 %v1496, 0.0
    %v1533 = vmax.f32 %v1498, 0.0
    %v1534 = vmax.f32 %v1500, 0.0
    %v1535 = vmax.f32 %v1502, 0.0
    %v1536 = vpack.c.bf16 %v1506, %v1504
    %v1537 = vpack.c.bf16 %v1507, %v1505
    %v1538 = vpack.c.bf16 %v1510, %v1508
    %v1539 = vpack.c.bf16 %v1511, %v1509
    %v1540 = vpack.c.bf16 %v1514, %v1512
    %v1541 = vpack.c.bf16 %v1515, %v1513
    %v1542 = vpack.c.bf16 %v1518, %v1516
    %v1543 = vpack.c.bf16 %v1519, %v1517
    %v1544 = vpack.c.bf16 %v1522, %v1520
    %v1545 = vpack.c.bf16 %v1523, %v1521
    %v1546 = vpack.c.bf16 %v1526, %v1524
    %v1547 = vpack.c.bf16 %v1527, %v1525
    %v1548 = vpack.c.bf16 %v1530, %v1528
    %v1549 = vpack.c.bf16 %v1531, %v1529
    %v1550 = vpack.c.bf16 %v1534, %v1532
    %v1551 = vpack.c.bf16 %v1535, %v1533
    %v1552 = vld [vmem:[%s3] sm:$0xf]
    %v1553 = vld [vmem:[%s3 + $0x4] sm:$0xf]
    %v1554 = vld [vmem:[%s3 + $0x8] sm:$0xf]
    %v1555 = vld [vmem:[%s3 + $0xc] sm:$0xf]
    %v1556 = vld [vmem:[%s3 + $0x10] sm:$0xf]
    %v1557 = vld [vmem:[%s3 + $0x14] sm:$0xf]
    %v1558 = vld [vmem:[%s3 + $0x18] sm:$0xf]
    %v1559 = vld [vmem:[%s3 + $0x1c] sm:$0xf]
    %v1560 = vld [vmem:[%s3 + $0x20] sm:$0xf]
    %v1561 = vld [vmem:[%s3 + $0x24] sm:$0xf]
    %v1562 = vld [vmem:[%s3 + $0x28] sm:$0xf]
    %v1563 = vld [vmem:[%s3 + $0x2c] sm:$0xf]
    %v1564 = vld [vmem:[%s3 + $0x30] sm:$0xf]
    %v1565 = vld [vmem:[%s3 + $0x34] sm:$0xf]
    %v1566 = vld [vmem:[%s3 + $0x38] sm:$0xf]
    %v1567 = vld [vmem:[%s3 + $0x3c] sm:$0xf]
    %v1568 = vld [vmem:[%s3 + $0x40] sm:$0xf]
    %v1569 = vld [vmem:[%s3 + $0x44] sm:$0xf]
    %v1570 = vld [vmem:[%s3 + $0x48] sm:$0xf]
    %v1571 = vld [vmem:[%s3 + $0x4c] sm:$0xf]
    %v1572 = vld [vmem:[%s3 + $0x50] sm:$0xf]
    %v1573 = vld [vmem:[%s3 + $0x54] sm:$0xf]
    %v1574 = vld [vmem:[%s3 + $0x58] sm:$0xf]
    %v1575 = vld [vmem:[%s3 + $0x5c] sm:$0xf]
    %v1576 = vld [vmem:[%s3 + $0x60] sm:$0xf]
    %v1577 = vld [vmem:[%s3 + $0x64] sm:$0xf]
    %v1578 = vld [vmem:[%s3 + $0x68] sm:$0xf]
    %v1579 = vld [vmem:[%s3 + $0x6c] sm:$0xf]
    %v1580 = vld [vmem:[%s3 + $0x70] sm:$0xf]
    %v1581 = vld [vmem:[%s3 + $0x74] sm:$0xf]
    %v1582 = vld [vmem:[%s3 + $0x78] sm:$0xf]
    %v1583 = vld [vmem:[%s3 + $0x7c] sm:$0xf]
    %v1584 = vld [vmem:[%s6] sm:$0xff]
    %v1585 = vld [vmem:[%s6 + $0x8] sm:$0xff]
    %v1586 = vld [vmem:[%s6 + $0x10] sm:$0xff]
    %v1587 = vld [vmem:[%s6 + $0x18] sm:$0xff]
    %v1588 = vld [vmem:[%s6 + $0x20] sm:$0xff]
    %v1589 = vld [vmem:[%s6 + $0x28] sm:$0xff]
    %v1590 = vld [vmem:[%s6 + $0x30] sm:$0xff]
    %v1591 = vld [vmem:[%s6 + $0x38] sm:$0xff]
    %v1592 = vld [vmem:[%s6 + $0x40] sm:$0xff]
    %v1593 = vld [vmem:[%s6 + $0x48] sm:$0xff]
    %v1594 = vld [vmem:[%s6 + $0x50] sm:$0xff]
    %v1595 = vld [vmem:[%s6 + $0x58] sm:$0xff]
    %v1596 = vld [vmem:[%s6 + $0x60] sm:$0xff]
    %v1597 = vld [vmem:[%s6 + $0x68] sm:$0xff]
    %v1598 = vld [vmem:[%s6 + $0x70] sm:$0xff]
    %v1599 = vld [vmem:[%s6 + $0x78] sm:$0xff]
    %v1600 = vld [vmem:[%s6 + $0x80] sm:$0xff]
    %v1601 = vld [vmem:[%s6 + $0x88] sm:$0xff]
    %v1602 = vld [vmem:[%s6 + $0x90] sm:$0xff]
    %v1603 = vld [vmem:[%s6 + $0x98] sm:$0xff]
    %v1604 = vld [vmem:[%s6 + $0xa0] sm:$0xff]
    %v1605 = vld [vmem:[%s6 + $0xa8] sm:$0xff]
    %v1606 = vld [vmem:[%s6 + $0xb0] sm:$0xff]
    %v1607 = vld [vmem:[%s6 + $0xb8] sm:$0xff]
    %v1608 = vld [vmem:[%s6 + $0xc0] sm:$0xff]
    %v1609 = vld [vmem:[%s6 + $0xc8] sm:$0xff]
    %v1610 = vld [vmem:[%s6 + $0xd0] sm:$0xff]
    %v1611 = vld [vmem:[%s6 + $0xd8] sm:$0xff]
    %v1612 = vld [vmem:[%s6 + $0xe0] sm:$0xff]
    %v1613 = vld [vmem:[%s6 + $0xe8] sm:$0xff]
    %v1614 = vld [vmem:[%s6 + $0xf0] sm:$0xff]
    %v1615 = vld [vmem:[%s6 + $0xf8] sm:$0xff]
    %1617 = vset.pattern.permute.xlu0 5
    %1618 = vperm.xlu0 %1617, %v1584
    %v1619 = vpop.permute.xlu0 %1618
    %1622 = vset.pattern.permute.xlu0 5
    %1623 = vperm.xlu0 %1622, %v1585
    %v1624 = vpop.permute.xlu0 %1623
    %1627 = vset.pattern.permute.xlu0 5
    %1628 = vperm.xlu0 %1627, %v1586
    %v1629 = vpop.permute.xlu0 %1628
    %1632 = vset.pattern.permute.xlu0 5
    %1633 = vperm.xlu0 %1632, %v1587
    %v1634 = vpop.permute.xlu0 %1633
    %1637 = vset.pattern.permute.xlu0 5
    %1638 = vperm.xlu0 %1637, %v1588
    %v1639 = vpop.permute.xlu0 %1638
    %1642 = vset.pattern.permute.xlu0 5
    %1643 = vperm.xlu0 %1642, %v1589
    %v1644 = vpop.permute.xlu0 %1643
    %1647 = vset.pattern.permute.xlu0 5
    %1648 = vperm.xlu0 %1647, %v1590
    %v1649 = vpop.permute.xlu0 %1648
    %1652 = vset.pattern.permute.xlu0 5
    %1653 = vperm.xlu0 %1652, %v1591
    %v1654 = vpop.permute.xlu0 %1653
    %1657 = vset.pattern.permute.xlu0 5
    %1658 = vperm.xlu0 %1657, %v1592
    %v1659 = vpop.permute.xlu0 %1658
    %1662 = vset.pattern.permute.xlu0 5
    %1663 = vperm.xlu0 %1662, %v1593
    %v1664 = vpop.permute.xlu0 %1663
    %1667 = vset.pattern.permute.xlu0 5
    %1668 = vperm.xlu0 %1667, %v1594
    %v1669 = vpop.permute.xlu0 %1668
    %1672 = vset.pattern.permute.xlu0 5
    %1673 = vperm.xlu0 %1672, %v1595
    %v1674 = vpop.permute.xlu0 %1673
    %1677 = vset.pattern.permute.xlu0 5
    %1678 = vperm.xlu0 %1677, %v1596
    %v1679 = vpop.permute.xlu0 %1678
    %1682 = vset.pattern.permute.xlu0 5
    %1683 = vperm.xlu0 %1682, %v1597
    %v1684 = vpop.permute.xlu0 %1683
    %1687 = vset.pattern.permute.xlu0 5
    %1688 = vperm.xlu0 %1687, %v1598
    %v1689 = vpop.permute.xlu0 %1688
    %1692 = vset.pattern.permute.xlu0 5
    %1693 = vperm.xlu0 %1692, %v1599
    %v1694 = vpop.permute.xlu0 %1693
    %1697 = vset.pattern.permute.xlu0 5
    %1698 = vperm.xlu0 %1697, %v1600
    %v1699 = vpop.permute.xlu0 %1698
    %1702 = vset.pattern.permute.xlu0 5
    %1703 = vperm.xlu0 %1702, %v1601
    %v1704 = vpop.permute.xlu0 %1703
    %1707 = vset.pattern.permute.xlu0 5
    %1708 = vperm.xlu0 %1707, %v1602
    %v1709 = vpop.permute.xlu0 %1708
    %1712 = vset.pattern.permute.xlu0 5
    %1713 = vperm.xlu0 %1712, %v1603
    %v1714 = vpop.permute.xlu0 %1713
    %1717 = vset.pattern.permute.xlu0 5
    %1718 = vperm.xlu0 %1717, %v1604
    %v1719 = vpop.permute.xlu0 %1718
    %1722 = vset.pattern.permute.xlu0 5
    %1723 = vperm.xlu0 %1722, %v1605
    %v1724 = vpop.permute.xlu0 %1723
    %1727 = vset.pattern.permute.xlu0 5
    %1728 = vperm.xlu0 %1727, %v1606
    %v1729 = vpop.permute.xlu0 %1728
    %1732 = vset.pattern.permute.xlu0 5
    %1733 = vperm.xlu0 %1732, %v1607
    %v1734 = vpop.permute.xlu0 %1733
    %1737 = vset.pattern.permute.xlu0 5
    %1738 = vperm.xlu0 %1737, %v1608
    %v1739 = vpop.permute.xlu0 %1738
    %1742 = vset.pattern.permute.xlu0 5
    %1743 = vperm.xlu0 %1742, %v1609
    %v1744 = vpop.permute.xlu0 %1743
    %1747 = vset.pattern.permute.xlu0 5
    %1748 = vperm.xlu0 %1747, %v1610
    %v1749 = vpop.permute.xlu0 %1748
    %1752 = vset.pattern.permute.xlu0 5
    %1753 = vperm.xlu0 %1752, %v1611
    %v1754 = vpop.permute.xlu0 %1753
    %1757 = vset.pattern.permute.xlu0 5
    %1758 = vperm.xlu0 %1757, %v1612
    %v1759 = vpop.permute.xlu0 %1758
    %1762 = vset.pattern.permute.xlu0 5
    %1763 = vperm.xlu0 %1762, %v1613
    %v1764 = vpop.permute.xlu0 %1763
    %1767 = vset.pattern.permute.xlu0 5
    %1768 = vperm.xlu0 %1767, %v1614
    %v1769 = vpop.permute.xlu0 %1768
    %1772 = vset.pattern.permute.xlu0 5
    %1773 = vperm.xlu0 %1772, %v1615
    %v1774 = vpop.permute.xlu0 %1773
    %v1808 = vunpack.c.l.b16 %v1552
    %v1809 = vunpack.c.l.b16 %v1553
    %v1810 = vunpack.c.l.b16 %v1554
    %v1811 = vunpack.c.l.b16 %v1555
    %v1812 = vunpack.c.l.b16 %v1556
    %v1813 = vunpack.c.l.b16 %v1557
    %v1814 = vunpack.c.l.b16 %v1558
    %v1815 = vunpack.c.l.b16 %v1559
    %v1816 = vunpack.c.l.b16 %v1560
    %v1817 = vunpack.c.l.b16 %v1561
    %v1818 = vunpack.c.l.b16 %v1562
    %v1819 = vunpack.c.l.b16 %v1563
    %v1820 = vunpack.c.l.b16 %v1564
    %v1821 = vunpack.c.l.b16 %v1565
    %v1822 = vunpack.c.l.b16 %v1566
    %v1823 = vunpack.c.l.b16 %v1567
    %v1824 = vunpack.c.l.b16 %v1568
    %v1825 = vunpack.c.l.b16 %v1569
    %v1826 = vunpack.c.l.b16 %v1570
    %v1827 = vunpack.c.l.b16 %v1571
    %v1828 = vunpack.c.l.b16 %v1572
    %v1829 = vunpack.c.l.b16 %v1573
    %v1830 = vunpack.c.l.b16 %v1574
    %v1831 = vunpack.c.l.b16 %v1575
    %v1832 = vunpack.c.l.b16 %v1576
    %v1833 = vunpack.c.l.b16 %v1577
    %v1834 = vunpack.c.l.b16 %v1578
    %v1835 = vunpack.c.l.b16 %v1579
    %v1836 = vunpack.c.l.b16 %v1580
    %v1837 = vunpack.c.l.b16 %v1581
    %v1838 = vunpack.c.l.b16 %v1582
    %v1839 = vunpack.c.l.b16 %v1583
    %v1840 = vpack.c.b16 %v1809, %v1808
    %v1841 = vpack.c.b16 %v1811, %v1810
    %v1842 = vpack.c.b16 %v1813, %v1812
    %v1843 = vpack.c.b16 %v1815, %v1814
    %v1844 = vpack.c.b16 %v1817, %v1816
    %v1845 = vpack.c.b16 %v1819, %v1818
    %v1846 = vpack.c.b16 %v1821, %v1820
    %v1847 = vpack.c.b16 %v1823, %v1822
    %v1848 = vpack.c.b16 %v1825, %v1824
    %v1849 = vpack.c.b16 %v1827, %v1826
    %v1850 = vpack.c.b16 %v1829, %v1828
    %v1851 = vpack.c.b16 %v1831, %v1830
    %v1852 = vpack.c.b16 %v1833, %v1832
    %v1853 = vpack.c.b16 %v1835, %v1834
    %v1854 = vpack.c.b16 %v1837, %v1836
    %v1855 = vpack.c.b16 %v1839, %v1838
    %1872 = vmatprep.subr.bf16.mxu0 %v1551
    %1873 = vmatpush1.bf16.msra.mxu0 %v1550
    %1874 = vmatprep.subr.bf16.mxu0 %v1549
    %1875 = vmatpush1.bf16.msra.mxu0 %v1548
    %1876 = vmatprep.subr.bf16.mxu0 %v1547
    %1877 = vmatpush1.bf16.msra.mxu0 %v1546
    %1878 = vmatprep.subr.bf16.mxu0 %v1545
    %1879 = vmatpush1.bf16.msra.mxu0 %v1544
    %1880 = vmatprep.subr.bf16.mxu0 %v1543
    %1881 = vmatpush1.bf16.msra.mxu0 %v1542
    %1882 = vmatprep.subr.bf16.mxu0 %v1541
    %1883 = vmatpush1.bf16.msra.mxu0 %v1540
    %1884 = vmatprep.subr.bf16.mxu0 %v1539
    %1885 = vmatpush1.bf16.msra.mxu0 %v1538
    %1886 = vmatprep.subr.bf16.mxu0 %v1537
    %1887 = vmatpush1.bf16.msra.mxu0 %v1536
    %1888 = vmatprep.subr.bf16.mxu0 0
    %1889 = vmatpush2.bf16.msra.mxu0 0
    %1890 = vmatprep.subr.bf16.mxu0 0
    %1891 = vmatpush2.bf16.msra.mxu0 0
    %1892 = vmatprep.subr.bf16.mxu0 0
    %1893 = vmatpush2.bf16.msra.mxu0 0
    %1894 = vmatprep.subr.bf16.mxu0 0
    %1895 = vmatpush2.bf16.msra.mxu0 0
    %1896 = vmatprep.subr.bf16.mxu0 0
    %1897 = vmatpush2.bf16.msra.mxu0 0
    %1898 = vmatprep.subr.bf16.mxu0 0
    %1899 = vmatpush2.bf16.msra.mxu0 0
    %1900 = vmatprep.subr.bf16.mxu0 0
    %1901 = vmatpush2.bf16.msra.mxu0 0
    %1902 = vmatprep.subr.bf16.mxu0 0
    %1903 = vmatpush2.bf16.msra.mxu0 0
    %1904 = vmatprep.mubr.bf16.mxu0 0
    %1905 = vmatmul.mubr.bf16.gmra.mxu0 %v1840
    %v1906 = vpop.f32.mrf.mxu0
    %v1907 = vadd.f32 %v1619, %v1906
    %v1908 = vpop.f32.mrf.mxu0
    %v1909 = vadd.f32 %v1619, %v1908
    %v1910 = vpop.f32.mrf.mxu0
    %v1911 = vadd.f32 %v1624, %v1910
    %v1912 = vpop.f32.mrf.mxu0
    %v1913 = vadd.f32 %v1624, %v1912
    %1914 = vmatprep.mubr.bf16.mxu0 0
    %1915 = vmatmul.mubr.bf16.gmra.mxu0 %v1841
    %v1916 = vpop.f32.mrf.mxu0
    %v1917 = vadd.f32 %v1629, %v1916
    %v1918 = vpop.f32.mrf.mxu0
    %v1919 = vadd.f32 %v1629, %v1918
    %v1920 = vpop.f32.mrf.mxu0
    %v1921 = vadd.f32 %v1634, %v1920
    %v1922 = vpop.f32.mrf.mxu0
    %v1923 = vadd.f32 %v1634, %v1922
    %1924 = vmatprep.mubr.bf16.mxu0 0
    %1925 = vmatmul.mubr.bf16.gmra.mxu0 %v1842
    %v1926 = vpop.f32.mrf.mxu0
    %v1927 = vadd.f32 %v1639, %v1926
    %v1928 = vpop.f32.mrf.mxu0
    %v1929 = vadd.f32 %v1639, %v1928
    %v1930 = vpop.f32.mrf.mxu0
    %v1931 = vadd.f32 %v1644, %v1930
    %v1932 = vpop.f32.mrf.mxu0
    %v1933 = vadd.f32 %v1644, %v1932
    %1934 = vmatprep.mubr.bf16.mxu0 0
    %1935 = vmatmul.mubr.bf16.gmra.mxu0 %v1843
    %v1936 = vpop.f32.mrf.mxu0
    %v1937 = vadd.f32 %v1649, %v1936
    %v1938 = vpop.f32.mrf.mxu0
    %v1939 = vadd.f32 %v1649, %v1938
    %v1940 = vpop.f32.mrf.mxu0
    %v1941 = vadd.f32 %v1654, %v1940
    %v1942 = vpop.f32.mrf.mxu0
    %v1943 = vadd.f32 %v1654, %v1942
    %1944 = vmatprep.mubr.bf16.mxu0 0
    %1945 = vmatmul.mubr.bf16.gmra.mxu0 %v1844
    %v1946 = vpop.f32.mrf.mxu0
    %v1947 = vadd.f32 %v1659, %v1946
    %v1948 = vpop.f32.mrf.mxu0
    %v1949 = vadd.f32 %v1659, %v1948
    %v1950 = vpop.f32.mrf.mxu0
    %v1951 = vadd.f32 %v1664, %v1950
    %v1952 = vpop.f32.mrf.mxu0
    %v1953 = vadd.f32 %v1664, %v1952
    %1954 = vmatprep.mubr.bf16.mxu0 0
    %1955 = vmatmul.mubr.bf16.gmra.mxu0 %v1845
    %v1956 = vpop.f32.mrf.mxu0
    %v1957 = vadd.f32 %v1669, %v1956
    %v1958 = vpop.f32.mrf.mxu0
    %v1959 = vadd.f32 %v1669, %v1958
    %v1960 = vpop.f32.mrf.mxu0
    %v1961 = vadd.f32 %v1674, %v1960
    %v1962 = vpop.f32.mrf.mxu0
    %v1963 = vadd.f32 %v1674, %v1962
    %1964 = vmatprep.mubr.bf16.mxu0 0
    %1965 = vmatmul.mubr.bf16.gmra.mxu0 %v1846
    %v1966 = vpop.f32.mrf.mxu0
    %v1967 = vadd.f32 %v1679, %v1966
    %v1968 = vpop.f32.mrf.mxu0
    %v1969 = vadd.f32 %v1679, %v1968
    %v1970 = vpop.f32.mrf.mxu0
    %v1971 = vadd.f32 %v1684, %v1970
    %v1972 = vpop.f32.mrf.mxu0
    %v1973 = vadd.f32 %v1684, %v1972
    %1974 = vmatprep.mubr.bf16.mxu0 0
    %1975 = vmatmul.mubr.bf16.gmra.mxu0 %v1847
    %v1976 = vpop.f32.mrf.mxu0
    %v1977 = vadd.f32 %v1689, %v1976
    %v1978 = vpop.f32.mrf.mxu0
    %v1979 = vadd.f32 %v1689, %v1978
    %v1980 = vpop.f32.mrf.mxu0
    %v1981 = vadd.f32 %v1694, %v1980
    %v1982 = vpop.f32.mrf.mxu0
    %v1983 = vadd.f32 %v1694, %v1982
    %1984 = vmatprep.mubr.bf16.mxu0 0
    %1985 = vmatmul.mubr.bf16.gmra.mxu0 %v1848
    %v1986 = vpop.f32.mrf.mxu0
    %v1987 = vadd.f32 %v1699, %v1986
    %v1988 = vpop.f32.mrf.mxu0
    %v1989 = vadd.f32 %v1699, %v1988
    %v1990 = vpop.f32.mrf.mxu0
    %v1991 = vadd.f32 %v1704, %v1990
    %v1992 = vpop.f32.mrf.mxu0
    %v1993 = vadd.f32 %v1704, %v1992
    %1994 = vmatprep.mubr.bf16.mxu0 0
    %1995 = vmatmul.mubr.bf16.gmra.mxu0 %v1849
    %v1996 = vpop.f32.mrf.mxu0
    %v1997 = vadd.f32 %v1709, %v1996
    %v1998 = vpop.f32.mrf.mxu0
    %v1999 = vadd.f32 %v1709, %v1998
    %v2000 = vpop.f32.mrf.mxu0
    %v2001 = vadd.f32 %v1714, %v2000
    %v2002 = vpop.f32.mrf.mxu0
    %v2003 = vadd.f32 %v1714, %v2002
    %2004 = vmatprep.mubr.bf16.mxu0 0
    %2005 = vmatmul.mubr.bf16.gmra.mxu0 %v1850
    %v2006 = vpop.f32.mrf.mxu0
    %v2007 = vadd.f32 %v1719, %v2006
    %v2008 = vpop.f32.mrf.mxu0
    %v2009 = vadd.f32 %v1719, %v2008
    %v2010 = vpop.f32.mrf.mxu0
    %v2011 = vadd.f32 %v1724, %v2010
    %v2012 = vpop.f32.mrf.mxu0
    %v2013 = vadd.f32 %v1724, %v2012
    %2014 = vmatprep.mubr.bf16.mxu0 0
    %2015 = vmatmul.mubr.bf16.gmra.mxu0 %v1851
    %v2016 = vpop.f32.mrf.mxu0
    %v2017 = vadd.f32 %v1729, %v2016
    %v2018 = vpop.f32.mrf.mxu0
    %v2019 = vadd.f32 %v1729, %v2018
    %v2020 = vpop.f32.mrf.mxu0
    %v2021 = vadd.f32 %v1734, %v2020
    %v2022 = vpop.f32.mrf.mxu0
    %v2023 = vadd.f32 %v1734, %v2022
    %2024 = vmatprep.mubr.bf16.mxu0 0
    %2025 = vmatmul.mubr.bf16.gmra.mxu0 %v1852
    %v2026 = vpop.f32.mrf.mxu0
    %v2027 = vadd.f32 %v1739, %v2026
    %v2028 = vpop.f32.mrf.mxu0
    %v2029 = vadd.f32 %v1739, %v2028
    %v2030 = vpop.f32.mrf.mxu0
    %v2031 = vadd.f32 %v1744, %v2030
    %v2032 = vpop.f32.mrf.mxu0
    %v2033 = vadd.f32 %v1744, %v2032
    %2034 = vmatprep.mubr.bf16.mxu0 0
    %2035 = vmatmul.mubr.bf16.gmra.mxu0 %v1853
    %v2036 = vpop.f32.mrf.mxu0
    %v2037 = vadd.f32 %v1749, %v2036
    %v2038 = vpop.f32.mrf.mxu0
    %v2039 = vadd.f32 %v1749, %v2038
    %v2040 = vpop.f32.mrf.mxu0
    %v2041 = vadd.f32 %v1754, %v2040
    %v2042 = vpop.f32.mrf.mxu0
    %v2043 = vadd.f32 %v1754, %v2042
    %2044 = vmatprep.mubr.bf16.mxu0 0
    %2045 = vmatmul.mubr.bf16.gmra.mxu0 %v1854
    %v2046 = vpop.f32.mrf.mxu0
    %v2047 = vadd.f32 %v1759, %v2046
    %v2048 = vpop.f32.mrf.mxu0
    %v2049 = vadd.f32 %v1759, %v2048
    %v2050 = vpop.f32.mrf.mxu0
    %v2051 = vadd.f32 %v1764, %v2050
    %v2052 = vpop.f32.mrf.mxu0
    %v2053 = vadd.f32 %v1764, %v2052
    %2054 = vmatprep.mubr.bf16.mxu0 0
    %2055 = vmatmul.mubr.bf16.gmra.mxu0 %v1855
    %v2056 = vpop.f32.mrf.mxu0
    %v2057 = vadd.f32 %v1769, %v2056
    %v2058 = vpop.f32.mrf.mxu0
    %v2059 = vadd.f32 %v1769, %v2058
    %v2060 = vpop.f32.mrf.mxu0
    %v2061 = vadd.f32 %v1774, %v2060
    %v2062 = vpop.f32.mrf.mxu0
    %v2063 = vadd.f32 %v1774, %v2062
    %2064 = vdwg.mxu0
    %v2065 = vmax.f32 %v1907, 0.0
    %v2066 = vmax.f32 %v1909, 0.0
    %v2067 = vmax.f32 %v1911, 0.0
    %v2068 = vmax.f32 %v1913, 0.0
    %v2069 = vmax.f32 %v1917, 0.0
    %v2070 = vmax.f32 %v1919, 0.0
    %v2071 = vmax.f32 %v1921, 0.0
    %v2072 = vmax.f32 %v1923, 0.0
    %v2073 = vmax.f32 %v1927, 0.0
    %v2074 = vmax.f32 %v1929, 0.0
    %v2075 = vmax.f32 %v1931, 0.0
    %v2076 = vmax.f32 %v1933, 0.0
    %v2077 = vmax.f32 %v1937, 0.0
    %v2078 = vmax.f32 %v1939, 0.0
    %v2079 = vmax.f32 %v1941, 0.0
    %v2080 = vmax.f32 %v1943, 0.0
    %v2081 = vmax.f32 %v1947, 0.0
    %v2082 = vmax.f32 %v1949, 0.0
    %v2083 = vmax.f32 %v1951, 0.0
    %v2084 = vmax.f32 %v1953, 0.0
    %v2085 = vmax.f32 %v1957, 0.0
    %v2086 = vmax.f32 %v1959, 0.0
    %v2087 = vmax.f32 %v1961, 0.0
    %v2088 = vmax.f32 %v1963, 0.0
    %v2089 = vmax.f32 %v1967, 0.0
    %v2090 = vmax.f32 %v1969, 0.0
    %v2091 = vmax.f32 %v1971, 0.0
    %v2092 = vmax.f32 %v1973, 0.0
    %v2093 = vmax.f32 %v1977, 0.0
    %v2094 = vmax.f32 %v1979, 0.0
    %v2095 = vmax.f32 %v1981, 0.0
    %v2096 = vmax.f32 %v1983, 0.0
    %v2097 = vmax.f32 %v1987, 0.0
    %v2098 = vmax.f32 %v1989, 0.0
    %v2099 = vmax.f32 %v1991, 0.0
    %v2100 = vmax.f32 %v1993, 0.0
    %v2101 = vmax.f32 %v1997, 0.0
    %v2102 = vmax.f32 %v1999, 0.0
    %v2103 = vmax.f32 %v2001, 0.0
    %v2104 = vmax.f32 %v2003, 0.0
    %v2105 = vmax.f32 %v2007, 0.0
    %v2106 = vmax.f32 %v2009, 0.0
    %v2107 = vmax.f32 %v2011, 0.0
    %v2108 = vmax.f32 %v2013, 0.0
    %v2109 = vmax.f32 %v2017, 0.0
    %v2110 = vmax.f32 %v2019, 0.0
    %v2111 = vmax.f32 %v2021, 0.0
    %v2112 = vmax.f32 %v2023, 0.0
    %v2113 = vmax.f32 %v2027, 0.0
    %v2114 = vmax.f32 %v2029, 0.0
    %v2115 = vmax.f32 %v2031, 0.0
    %v2116 = vmax.f32 %v2033, 0.0
    %v2117 = vmax.f32 %v2037, 0.0
    %v2118 = vmax.f32 %v2039, 0.0
    %v2119 = vmax.f32 %v2041, 0.0
    %v2120 = vmax.f32 %v2043, 0.0
    %v2121 = vmax.f32 %v2047, 0.0
    %v2122 = vmax.f32 %v2049, 0.0
    %v2123 = vmax.f32 %v2051, 0.0
    %v2124 = vmax.f32 %v2053, 0.0
    %v2125 = vmax.f32 %v2057, 0.0
    %v2126 = vmax.f32 %v2059, 0.0
    %v2127 = vmax.f32 %v2061, 0.0
    %v2128 = vmax.f32 %v2063, 0.0
    %v2129 = vpack.c.bf16 %v2067, %v2065
    %v2130 = vpack.c.bf16 %v2068, %v2066
    %v2131 = vpack.c.bf16 %v2071, %v2069
    %v2132 = vpack.c.bf16 %v2072, %v2070
    %v2133 = vpack.c.bf16 %v2075, %v2073
    %v2134 = vpack.c.bf16 %v2076, %v2074
    %v2135 = vpack.c.bf16 %v2079, %v2077
    %v2136 = vpack.c.bf16 %v2080, %v2078
    %v2137 = vpack.c.bf16 %v2083, %v2081
    %v2138 = vpack.c.bf16 %v2084, %v2082
    %v2139 = vpack.c.bf16 %v2087, %v2085
    %v2140 = vpack.c.bf16 %v2088, %v2086
    %v2141 = vpack.c.bf16 %v2091, %v2089
    %v2142 = vpack.c.bf16 %v2092, %v2090
    %v2143 = vpack.c.bf16 %v2095, %v2093
    %v2144 = vpack.c.bf16 %v2096, %v2094
    %v2145 = vpack.c.bf16 %v2099, %v2097
    %v2146 = vpack.c.bf16 %v2100, %v2098
    %v2147 = vpack.c.bf16 %v2103, %v2101
    %v2148 = vpack.c.bf16 %v2104, %v2102
    %v2149 = vpack.c.bf16 %v2107, %v2105
    %v2150 = vpack.c.bf16 %v2108, %v2106
    %v2151 = vpack.c.bf16 %v2111, %v2109
    %v2152 = vpack.c.bf16 %v2112, %v2110
    %v2153 = vpack.c.bf16 %v2115, %v2113
    %v2154 = vpack.c.bf16 %v2116, %v2114
    %v2155 = vpack.c.bf16 %v2119, %v2117
    %v2156 = vpack.c.bf16 %v2120, %v2118
    %v2157 = vpack.c.bf16 %v2123, %v2121
    %v2158 = vpack.c.bf16 %v2124, %v2122
    %v2159 = vpack.c.bf16 %v2127, %v2125
    %v2160 = vpack.c.bf16 %v2128, %v2126
    %v2161 = vld [vmem:[%s4] sm:$0xff]
    %v2162 = vld [vmem:[%s4 + $0x8] sm:$0xff]
    %v2163 = vld [vmem:[%s4 + $0x10] sm:$0xff]
    %v2164 = vld [vmem:[%s4 + $0x18] sm:$0xff]
    %v2165 = vld [vmem:[%s4 + $0x20] sm:$0xff]
    %v2166 = vld [vmem:[%s4 + $0x28] sm:$0xff]
    %v2167 = vld [vmem:[%s4 + $0x30] sm:$0xff]
    %v2168 = vld [vmem:[%s4 + $0x38] sm:$0xff]
    %v2169 = vld [vmem:[%s4 + $0x40] sm:$0xff]
    %v2170 = vld [vmem:[%s4 + $0x48] sm:$0xff]
    %v2171 = vld [vmem:[%s4 + $0x50] sm:$0xff]
    %v2172 = vld [vmem:[%s4 + $0x58] sm:$0xff]
    %v2173 = vld [vmem:[%s4 + $0x60] sm:$0xff]
    %v2174 = vld [vmem:[%s4 + $0x68] sm:$0xff]
    %v2175 = vld [vmem:[%s4 + $0x70] sm:$0xff]
    %v2176 = vld [vmem:[%s4 + $0x78] sm:$0xff]
    %2177 = vset.pattern.permute.xlu0 6
    %2178 = vperm.xlu0 %2177, %v64
    %v2179 = vpop.permute.xlu0 %2178
    %2181 = vset.pattern.permute.xlu0 6
    %2182 = vperm.xlu0 %2181, %v65
    %v2183 = vpop.permute.xlu0 %2182
    %2185 = vset.pattern.permute.xlu0 6
    %2186 = vperm.xlu0 %2185, %v66
    %v2187 = vpop.permute.xlu0 %2186
    %2189 = vset.pattern.permute.xlu0 6
    %2190 = vperm.xlu0 %2189, %v67
    %v2191 = vpop.permute.xlu0 %2190
    %2193 = vset.pattern.permute.xlu0 6
    %2194 = vperm.xlu0 %2193, %v68
    %v2195 = vpop.permute.xlu0 %2194
    %2197 = vset.pattern.permute.xlu0 6
    %2198 = vperm.xlu0 %2197, %v69
    %v2199 = vpop.permute.xlu0 %2198
    %2201 = vset.pattern.permute.xlu0 6
    %2202 = vperm.xlu0 %2201, %v70
    %v2203 = vpop.permute.xlu0 %2202
    %2205 = vset.pattern.permute.xlu0 6
    %2206 = vperm.xlu0 %2205, %v71
    %v2207 = vpop.permute.xlu0 %2206
    %2209 = vset.pattern.permute.xlu0 6
    %2210 = vperm.xlu0 %2209, %v72
    %v2211 = vpop.permute.xlu0 %2210
    %2213 = vset.pattern.permute.xlu0 6
    %2214 = vperm.xlu0 %2213, %v73
    %v2215 = vpop.permute.xlu0 %2214
    %2217 = vset.pattern.permute.xlu0 6
    %2218 = vperm.xlu0 %2217, %v74
    %v2219 = vpop.permute.xlu0 %2218
    %2221 = vset.pattern.permute.xlu0 6
    %2222 = vperm.xlu0 %2221, %v75
    %v2223 = vpop.permute.xlu0 %2222
    %2225 = vset.pattern.permute.xlu0 6
    %2226 = vperm.xlu0 %2225, %v76
    %v2227 = vpop.permute.xlu0 %2226
    %2229 = vset.pattern.permute.xlu0 6
    %2230 = vperm.xlu0 %2229, %v77
    %v2231 = vpop.permute.xlu0 %2230
    %2233 = vset.pattern.permute.xlu0 6
    %2234 = vperm.xlu0 %2233, %v78
    %v2235 = vpop.permute.xlu0 %2234
    %2237 = vset.pattern.permute.xlu0 6
    %2238 = vperm.xlu0 %2237, %v79
    %v2239 = vpop.permute.xlu0 %2238
    %v2257 = vunpack.c.l.b16 %v2161
    %v2258 = vunpack.c.h.b16 %v2161
    %v2259 = vunpack.c.l.b16 %v2162
    %v2260 = vunpack.c.h.b16 %v2162
    %v2261 = vunpack.c.l.b16 %v2163
    %v2262 = vunpack.c.h.b16 %v2163
    %v2263 = vunpack.c.l.b16 %v2164
    %v2264 = vunpack.c.h.b16 %v2164
    %v2265 = vunpack.c.l.b16 %v2165
    %v2266 = vunpack.c.h.b16 %v2165
    %v2267 = vunpack.c.l.b16 %v2166
    %v2268 = vunpack.c.h.b16 %v2166
    %v2269 = vunpack.c.l.b16 %v2167
    %v2270 = vunpack.c.h.b16 %v2167
    %v2271 = vunpack.c.l.b16 %v2168
    %v2272 = vunpack.c.h.b16 %v2168
    %v2273 = vunpack.c.l.b16 %v2169
    %v2274 = vunpack.c.h.b16 %v2169
    %v2275 = vunpack.c.l.b16 %v2170
    %v2276 = vunpack.c.h.b16 %v2170
    %v2277 = vunpack.c.l.b16 %v2171
    %v2278 = vunpack.c.h.b16 %v2171
    %v2279 = vunpack.c.l.b16 %v2172
    %v2280 = vunpack.c.h.b16 %v2172
    %v2281 = vunpack.c.l.b16 %v2173
    %v2282 = vunpack.c.h.b16 %v2173
    %v2283 = vunpack.c.l.b16 %v2174
    %v2284 = vunpack.c.h.b16 %v2174
    %v2285 = vunpack.c.l.b16 %v2175
    %v2286 = vunpack.c.h.b16 %v2175
    %v2287 = vunpack.c.l.b16 %v2176
    %v2288 = vunpack.c.h.b16 %v2176
    %v2289 = vpack.c.b16 %v2259, %v2257
    %v2290 = vpack.c.b16 %v2260, %v2258
    %v2291 = vpack.c.b16 %v2263, %v2261
    %v2292 = vpack.c.b16 %v2264, %v2262
    %v2293 = vpack.c.b16 %v2267, %v2265
    %v2294 = vpack.c.b16 %v2268, %v2266
    %v2295 = vpack.c.b16 %v2271, %v2269
    %v2296 = vpack.c.b16 %v2272, %v2270
    %v2297 = vpack.c.b16 %v2275, %v2273
    %v2298 = vpack.c.b16 %v2276, %v2274
    %v2299 = vpack.c.b16 %v2279, %v2277
    %v2300 = vpack.c.b16 %v2280, %v2278
    %v2301 = vpack.c.b16 %v2283, %v2281
    %v2302 = vpack.c.b16 %v2284, %v2282
    %v2303 = vpack.c.b16 %v2287, %v2285
    %v2304 = vpack.c.b16 %v2288, %v2286
    %2321 = vmatprep.subr.bf16.mxu0 %v2144
    %2322 = vmatpush1.bf16.msra.mxu0 %v2143
    %2323 = vmatprep.subr.bf16.mxu0 %v2142
    %2324 = vmatpush1.bf16.msra.mxu0 %v2141
    %2325 = vmatprep.subr.bf16.mxu0 %v2140
    %2326 = vmatpush1.bf16.msra.mxu0 %v2139
    %2327 = vmatprep.subr.bf16.mxu0 %v2138
    %2328 = vmatpush1.bf16.msra.mxu0 %v2137
    %2329 = vmatprep.subr.bf16.mxu0 %v2136
    %2330 = vmatpush1.bf16.msra.mxu0 %v2135
    %2331 = vmatprep.subr.bf16.mxu0 %v2134
    %2332 = vmatpush1.bf16.msra.mxu0 %v2133
    %2333 = vmatprep.subr.bf16.mxu0 %v2132
    %2334 = vmatpush1.bf16.msra.mxu0 %v2131
    %2335 = vmatprep.subr.bf16.mxu0 %v2130
    %2336 = vmatpush1.bf16.msra.mxu0 %v2129
    %2337 = vmatprep.subr.bf16.mxu0 %v2160
    %2338 = vmatpush2.bf16.msra.mxu0 %v2159
    %2339 = vmatprep.subr.bf16.mxu0 %v2158
    %2340 = vmatpush2.bf16.msra.mxu0 %v2157
    %2341 = vmatprep.subr.bf16.mxu0 %v2156
    %2342 = vmatpush2.bf16.msra.mxu0 %v2155
    %2343 = vmatprep.subr.bf16.mxu0 %v2154
    %2344 = vmatpush2.bf16.msra.mxu0 %v2153
    %2345 = vmatprep.subr.bf16.mxu0 %v2152
    %2346 = vmatpush2.bf16.msra.mxu0 %v2151
    %2347 = vmatprep.subr.bf16.mxu0 %v2150
    %2348 = vmatpush2.bf16.msra.mxu0 %v2149
    %2349 = vmatprep.subr.bf16.mxu0 %v2148
    %2350 = vmatpush2.bf16.msra.mxu0 %v2147
    %2351 = vmatprep.subr.bf16.mxu0 %v2146
    %2352 = vmatpush2.bf16.msra.mxu0 %v2145
    %2353 = vmatprep.mubr.bf16.mxu0 %v2290
    %2354 = vmatmul.mubr.bf16.gmra.mxu0 %v2289
    %v2355 = vpop.f32.mrf.mxu0
    %v2356 = vadd.f32 %v2179, %v2355
    %v2357 = vpop.f32.mrf.mxu0
    %v2358 = vadd.f32 %v2179, %v2357
    %v2359 = vpop.f32.mrf.mxu0
    %v2360 = vadd.f32 %v2183, %v2359
    %v2361 = vpop.f32.mrf.mxu0
    %v2362 = vadd.f32 %v2183, %v2361
    %2363 = vmatprep.mubr.bf16.mxu0 %v2292
    %2364 = vmatmul.mubr.bf16.gmra.mxu0 %v2291
    %v2365 = vpop.f32.mrf.mxu0
    %v2366 = vadd.f32 %v2187, %v2365
    %v2367 = vpop.f32.mrf.mxu0
    %v2368 = vadd.f32 %v2187, %v2367
    %v2369 = vpop.f32.mrf.mxu0
    %v2370 = vadd.f32 %v2191, %v2369
    %v2371 = vpop.f32.mrf.mxu0
    %v2372 = vadd.f32 %v2191, %v2371
    %2373 = vmatprep.mubr.bf16.mxu0 %v2294
    %2374 = vmatmul.mubr.bf16.gmra.mxu0 %v2293
    %v2375 = vpop.f32.mrf.mxu0
    %v2376 = vadd.f32 %v2195, %v2375
    %v2377 = vpop.f32.mrf.mxu0
    %v2378 = vadd.f32 %v2195, %v2377
    %v2379 = vpop.f32.mrf.mxu0
    %v2380 = vadd.f32 %v2199, %v2379
    %v2381 = vpop.f32.mrf.mxu0
    %v2382 = vadd.f32 %v2199, %v2381
    %2383 = vmatprep.mubr.bf16.mxu0 %v2296
    %2384 = vmatmul.mubr.bf16.gmra.mxu0 %v2295
    %v2385 = vpop.f32.mrf.mxu0
    %v2386 = vadd.f32 %v2203, %v2385
    %v2387 = vpop.f32.mrf.mxu0
    %v2388 = vadd.f32 %v2203, %v2387
    %v2389 = vpop.f32.mrf.mxu0
    %v2390 = vadd.f32 %v2207, %v2389
    %v2391 = vpop.f32.mrf.mxu0
    %v2392 = vadd.f32 %v2207, %v2391
    %2393 = vmatprep.mubr.bf16.mxu0 %v2298
    %2394 = vmatmul.mubr.bf16.gmra.mxu0 %v2297
    %v2395 = vpop.f32.mrf.mxu0
    %v2396 = vadd.f32 %v2211, %v2395
    %v2397 = vpop.f32.mrf.mxu0
    %v2398 = vadd.f32 %v2211, %v2397
    %v2399 = vpop.f32.mrf.mxu0
    %v2400 = vadd.f32 %v2215, %v2399
    %v2401 = vpop.f32.mrf.mxu0
    %v2402 = vadd.f32 %v2215, %v2401
    %2403 = vmatprep.mubr.bf16.mxu0 %v2300
    %2404 = vmatmul.mubr.bf16.gmra.mxu0 %v2299
    %v2405 = vpop.f32.mrf.mxu0
    %v2406 = vadd.f32 %v2219, %v2405
    %v2407 = vpop.f32.mrf.mxu0
    %v2408 = vadd.f32 %v2219, %v2407
    %v2409 = vpop.f32.mrf.mxu0
    %v2410 = vadd.f32 %v2223, %v2409
    %v2411 = vpop.f32.mrf.mxu0
    %v2412 = vadd.f32 %v2223, %v2411
    %2413 = vmatprep.mubr.bf16.mxu0 %v2302
    %2414 = vmatmul.mubr.bf16.gmra.mxu0 %v2301
    %v2415 = vpop.f32.mrf.mxu0
    %v2416 = vadd.f32 %v2227, %v2415
    %v2417 = vpop.f32.mrf.mxu0
    %v2418 = vadd.f32 %v2227, %v2417
    %v2419 = vpop.f32.mrf.mxu0
    %v2420 = vadd.f32 %v2231, %v2419
    %v2421 = vpop.f32.mrf.mxu0
    %v2422 = vadd.f32 %v2231, %v2421
    %2423 = vmatprep.mubr.bf16.mxu0 %v2304
    %2424 = vmatmul.mubr.bf16.gmra.mxu0 %v2303
    %v2425 = vpop.f32.mrf.mxu0
    %v2426 = vadd.f32 %v2235, %v2425
    %v2427 = vpop.f32.mrf.mxu0
    %v2428 = vadd.f32 %v2235, %v2427
    %v2429 = vpop.f32.mrf.mxu0
    %v2430 = vadd.f32 %v2239, %v2429
    %v2431 = vpop.f32.mrf.mxu0
    %v2432 = vadd.f32 %v2239, %v2431
    %2433 = vdwg.mxu0
    %v2434 = vmax.f32 %v2356, 0.0
    %v2435 = vmax.f32 %v2358, 0.0
    %v2436 = vmax.f32 %v2360, 0.0
    %v2437 = vmax.f32 %v2362, 0.0
    %v2438 = vmax.f32 %v2366, 0.0
    %v2439 = vmax.f32 %v2368, 0.0
    %v2440 = vmax.f32 %v2370, 0.0
    %v2441 = vmax.f32 %v2372, 0.0
    %v2442 = vmax.f32 %v2376, 0.0
    %v2443 = vmax.f32 %v2378, 0.0
    %v2444 = vmax.f32 %v2380, 0.0
    %v2445 = vmax.f32 %v2382, 0.0
    %v2446 = vmax.f32 %v2386, 0.0
    %v2447 = vmax.f32 %v2388, 0.0
    %v2448 = vmax.f32 %v2390, 0.0
    %v2449 = vmax.f32 %v2392, 0.0
    %v2450 = vmax.f32 %v2396, 0.0
    %v2451 = vmax.f32 %v2398, 0.0
    %v2452 = vmax.f32 %v2400, 0.0
    %v2453 = vmax.f32 %v2402, 0.0
    %v2454 = vmax.f32 %v2406, 0.0
    %v2455 = vmax.f32 %v2408, 0.0
    %v2456 = vmax.f32 %v2410, 0.0
    %v2457 = vmax.f32 %v2412, 0.0
    %v2458 = vmax.f32 %v2416, 0.0
    %v2459 = vmax.f32 %v2418, 0.0
    %v2460 = vmax.f32 %v2420, 0.0
    %v2461 = vmax.f32 %v2422, 0.0
    %v2462 = vmax.f32 %v2426, 0.0
    %v2463 = vmax.f32 %v2428, 0.0
    %v2464 = vmax.f32 %v2430, 0.0
    %v2465 = vmax.f32 %v2432, 0.0
    %v2466 = vpack.c.bf16 %v2436, %v2434
    %v2467 = vpack.c.bf16 %v2437, %v2435
    %v2468 = vpack.c.bf16 %v2440, %v2438
    %v2469 = vpack.c.bf16 %v2441, %v2439
    %v2470 = vpack.c.bf16 %v2444, %v2442
    %v2471 = vpack.c.bf16 %v2445, %v2443
    %v2472 = vpack.c.bf16 %v2448, %v2446
    %v2473 = vpack.c.bf16 %v2449, %v2447
    %v2474 = vpack.c.bf16 %v2452, %v2450
    %v2475 = vpack.c.bf16 %v2453, %v2451
    %v2476 = vpack.c.bf16 %v2456, %v2454
    %v2477 = vpack.c.bf16 %v2457, %v2455
    %v2478 = vpack.c.bf16 %v2460, %v2458
    %v2479 = vpack.c.bf16 %v2461, %v2459
    %v2480 = vpack.c.bf16 %v2464, %v2462
    %v2481 = vpack.c.bf16 %v2465, %v2463
    %s2482 = scalar_lea.vmem [#allocation2], 256
    %v2483 = vld [vmem:[%s2482] sm:$0xf]
    %v2484 = vld [vmem:[%s2482 + $0x4] sm:$0xf]
    %v2485 = vld [vmem:[%s2482 + $0x8] sm:$0xf]
    %v2486 = vld [vmem:[%s2482 + $0xc] sm:$0xf]
    %v2487 = vld [vmem:[%s2482 + $0x10] sm:$0xf]
    %v2488 = vld [vmem:[%s2482 + $0x14] sm:$0xf]
    %v2489 = vld [vmem:[%s2482 + $0x18] sm:$0xf]
    %v2490 = vld [vmem:[%s2482 + $0x1c] sm:$0xf]
    %v2491 = vld [vmem:[%s2482 + $0x20] sm:$0xf]
    %v2492 = vld [vmem:[%s2482 + $0x24] sm:$0xf]
    %v2493 = vld [vmem:[%s2482 + $0x28] sm:$0xf]
    %v2494 = vld [vmem:[%s2482 + $0x2c] sm:$0xf]
    %v2495 = vld [vmem:[%s2482 + $0x30] sm:$0xf]
    %v2496 = vld [vmem:[%s2482 + $0x34] sm:$0xf]
    %v2497 = vld [vmem:[%s2482 + $0x38] sm:$0xf]
    %v2498 = vld [vmem:[%s2482 + $0x3c] sm:$0xf]
    %2499 = vset.pattern.permute.xlu0 7
    %2500 = vperm.xlu0 %2499, %v64
    %v2501 = vpop.permute.xlu0 %2500
    %2503 = vset.pattern.permute.xlu0 7
    %2504 = vperm.xlu0 %2503, %v65
    %v2505 = vpop.permute.xlu0 %2504
    %2507 = vset.pattern.permute.xlu0 7
    %2508 = vperm.xlu0 %2507, %v66
    %v2509 = vpop.permute.xlu0 %2508
    %2511 = vset.pattern.permute.xlu0 7
    %2512 = vperm.xlu0 %2511, %v67
    %v2513 = vpop.permute.xlu0 %2512
    %2515 = vset.pattern.permute.xlu0 7
    %2516 = vperm.xlu0 %2515, %v68
    %v2517 = vpop.permute.xlu0 %2516
    %2519 = vset.pattern.permute.xlu0 7
    %2520 = vperm.xlu0 %2519, %v69
    %v2521 = vpop.permute.xlu0 %2520
    %2523 = vset.pattern.permute.xlu0 7
    %2524 = vperm.xlu0 %2523, %v70
    %v2525 = vpop.permute.xlu0 %2524
    %2527 = vset.pattern.permute.xlu0 7
    %2528 = vperm.xlu0 %2527, %v71
    %v2529 = vpop.permute.xlu0 %2528
    %2531 = vset.pattern.permute.xlu0 7
    %2532 = vperm.xlu0 %2531, %v72
    %v2533 = vpop.permute.xlu0 %2532
    %2535 = vset.pattern.permute.xlu0 7
    %2536 = vperm.xlu0 %2535, %v73
    %v2537 = vpop.permute.xlu0 %2536
    %2539 = vset.pattern.permute.xlu0 7
    %2540 = vperm.xlu0 %2539, %v74
    %v2541 = vpop.permute.xlu0 %2540
    %2543 = vset.pattern.permute.xlu0 7
    %2544 = vperm.xlu0 %2543, %v75
    %v2545 = vpop.permute.xlu0 %2544
    %2547 = vset.pattern.permute.xlu0 7
    %2548 = vperm.xlu0 %2547, %v76
    %v2549 = vpop.permute.xlu0 %2548
    %2551 = vset.pattern.permute.xlu0 7
    %2552 = vperm.xlu0 %2551, %v77
    %v2553 = vpop.permute.xlu0 %2552
    %2555 = vset.pattern.permute.xlu0 7
    %2556 = vperm.xlu0 %2555, %v78
    %v2557 = vpop.permute.xlu0 %2556
    %2559 = vset.pattern.permute.xlu0 7
    %2560 = vperm.xlu0 %2559, %v79
    %v2561 = vpop.permute.xlu0 %2560
    %v2579 = vunpack.c.l.b16 %v2483
    %v2580 = vunpack.c.l.b16 %v2484
    %v2581 = vunpack.c.l.b16 %v2485
    %v2582 = vunpack.c.l.b16 %v2486
    %v2583 = vunpack.c.l.b16 %v2487
    %v2584 = vunpack.c.l.b16 %v2488
    %v2585 = vunpack.c.l.b16 %v2489
    %v2586 = vunpack.c.l.b16 %v2490
    %v2587 = vunpack.c.l.b16 %v2491
    %v2588 = vunpack.c.l.b16 %v2492
    %v2589 = vunpack.c.l.b16 %v2493
    %v2590 = vunpack.c.l.b16 %v2494
    %v2591 = vunpack.c.l.b16 %v2495
    %v2592 = vunpack.c.l.b16 %v2496
    %v2593 = vunpack.c.l.b16 %v2497
    %v2594 = vunpack.c.l.b16 %v2498
    %v2595 = vpack.c.b16 %v2580, %v2579
    %v2596 = vpack.c.b16 %v2582, %v2581
    %v2597 = vpack.c.b16 %v2584, %v2583
    %v2598 = vpack.c.b16 %v2586, %v2585
    %v2599 = vpack.c.b16 %v2588, %v2587
    %v2600 = vpack.c.b16 %v2590, %v2589
    %v2601 = vpack.c.b16 %v2592, %v2591
    %v2602 = vpack.c.b16 %v2594, %v2593
    %2611 = vmatprep.subr.bf16.mxu0 %v2481
    %2612 = vmatpush1.bf16.msra.mxu0 %v2480
    %2613 = vmatprep.subr.bf16.mxu0 %v2479
    %2614 = vmatpush1.bf16.msra.mxu0 %v2478
    %2615 = vmatprep.subr.bf16.mxu0 %v2477
    %2616 = vmatpush1.bf16.msra.mxu0 %v2476
    %2617 = vmatprep.subr.bf16.mxu0 %v2475
    %2618 = vmatpush1.bf16.msra.mxu0 %v2474
    %2619 = vmatprep.subr.bf16.mxu0 %v2473
    %2620 = vmatpush1.bf16.msra.mxu0 %v2472
    %2621 = vmatprep.subr.bf16.mxu0 %v2471
    %2622 = vmatpush1.bf16.msra.mxu0 %v2470
    %2623 = vmatprep.subr.bf16.mxu0 %v2469
    %2624 = vmatpush1.bf16.msra.mxu0 %v2468
    %2625 = vmatprep.subr.bf16.mxu0 %v2467
    %2626 = vmatpush1.bf16.msra.mxu0 %v2466
    %2627 = vmatprep.subr.bf16.mxu0 0
    %2628 = vmatpush2.bf16.msra.mxu0 0
    %2629 = vmatprep.subr.bf16.mxu0 0
    %2630 = vmatpush2.bf16.msra.mxu0 0
    %2631 = vmatprep.subr.bf16.mxu0 0
    %2632 = vmatpush2.bf16.msra.mxu0 0
    %2633 = vmatprep.subr.bf16.mxu0 0
    %2634 = vmatpush2.bf16.msra.mxu0 0
    %2635 = vmatprep.subr.bf16.mxu0 0
    %2636 = vmatpush2.bf16.msra.mxu0 0
    %2637 = vmatprep.subr.bf16.mxu0 0
    %2638 = vmatpush2.bf16.msra.mxu0 0
    %2639 = vmatprep.subr.bf16.mxu0 0
    %2640 = vmatpush2.bf16.msra.mxu0 0
    %2641 = vmatprep.subr.bf16.mxu0 0
    %2642 = vmatpush2.bf16.msra.mxu0 0
    %2643 = vmatprep.mubr.bf16.mxu0 0
    %2644 = vmatmul.mubr.bf16.gmra.mxu0 %v2595
    %v2645 = vpop.f32.mrf.mxu0
    %v2646 = vadd.f32 %v2501, %v2645
    %v2647 = vpop.f32.mrf.mxu0
    %v2648 = vadd.f32 %v2501, %v2647
    %v2649 = vpop.f32.mrf.mxu0
    %v2650 = vadd.f32 %v2505, %v2649
    %v2651 = vpop.f32.mrf.mxu0
    %v2652 = vadd.f32 %v2505, %v2651
    %2653 = vmatprep.mubr.bf16.mxu0 0
    %2654 = vmatmul.mubr.bf16.gmra.mxu0 %v2596
    %v2655 = vpop.f32.mrf.mxu0
    %v2656 = vadd.f32 %v2509, %v2655
    %v2657 = vpop.f32.mrf.mxu0
    %v2658 = vadd.f32 %v2509, %v2657
    %v2659 = vpop.f32.mrf.mxu0
    %v2660 = vadd.f32 %v2513, %v2659
    %v2661 = vpop.f32.mrf.mxu0
    %v2662 = vadd.f32 %v2513, %v2661
    %2663 = vmatprep.mubr.bf16.mxu0 0
    %2664 = vmatmul.mubr.bf16.gmra.mxu0 %v2597
    %v2665 = vpop.f32.mrf.mxu0
    %v2666 = vadd.f32 %v2517, %v2665
    %v2667 = vpop.f32.mrf.mxu0
    %v2668 = vadd.f32 %v2517, %v2667
    %v2669 = vpop.f32.mrf.mxu0
    %v2670 = vadd.f32 %v2521, %v2669
    %v2671 = vpop.f32.mrf.mxu0
    %v2672 = vadd.f32 %v2521, %v2671
    %2673 = vmatprep.mubr.bf16.mxu0 0
    %2674 = vmatmul.mubr.bf16.gmra.mxu0 %v2598
    %v2675 = vpop.f32.mrf.mxu0
    %v2676 = vadd.f32 %v2525, %v2675
    %v2677 = vpop.f32.mrf.mxu0
    %v2678 = vadd.f32 %v2525, %v2677
    %v2679 = vpop.f32.mrf.mxu0
    %v2680 = vadd.f32 %v2529, %v2679
    %v2681 = vpop.f32.mrf.mxu0
    %v2682 = vadd.f32 %v2529, %v2681
    %2683 = vmatprep.mubr.bf16.mxu0 0
    %2684 = vmatmul.mubr.bf16.gmra.mxu0 %v2599
    %v2685 = vpop.f32.mrf.mxu0
    %v2686 = vadd.f32 %v2533, %v2685
    %v2687 = vpop.f32.mrf.mxu0
    %v2688 = vadd.f32 %v2533, %v2687
    %v2689 = vpop.f32.mrf.mxu0
    %v2690 = vadd.f32 %v2537, %v2689
    %v2691 = vpop.f32.mrf.mxu0
    %v2692 = vadd.f32 %v2537, %v2691
    %2693 = vmatprep.mubr.bf16.mxu0 0
    %2694 = vmatmul.mubr.bf16.gmra.mxu0 %v2600
    %v2695 = vpop.f32.mrf.mxu0
    %v2696 = vadd.f32 %v2541, %v2695
    %v2697 = vpop.f32.mrf.mxu0
    %v2698 = vadd.f32 %v2541, %v2697
    %v2699 = vpop.f32.mrf.mxu0
    %v2700 = vadd.f32 %v2545, %v2699
    %v2701 = vpop.f32.mrf.mxu0
    %v2702 = vadd.f32 %v2545, %v2701
    %2703 = vmatprep.mubr.bf16.mxu0 0
    %2704 = vmatmul.mubr.bf16.gmra.mxu0 %v2601
    %v2705 = vpop.f32.mrf.mxu0
    %v2706 = vadd.f32 %v2549, %v2705
    %v2707 = vpop.f32.mrf.mxu0
    %v2708 = vadd.f32 %v2549, %v2707
    %v2709 = vpop.f32.mrf.mxu0
    %v2710 = vadd.f32 %v2553, %v2709
    %v2711 = vpop.f32.mrf.mxu0
    %v2712 = vadd.f32 %v2553, %v2711
    %2713 = vmatprep.mubr.bf16.mxu0 0
    %2714 = vmatmul.mubr.bf16.gmra.mxu0 %v2602
    %v2715 = vpop.f32.mrf.mxu0
    %v2716 = vadd.f32 %v2557, %v2715
    %v2717 = vpop.f32.mrf.mxu0
    %v2718 = vadd.f32 %v2557, %v2717
    %v2719 = vpop.f32.mrf.mxu0
    %v2720 = vadd.f32 %v2561, %v2719
    %v2721 = vpop.f32.mrf.mxu0
    %v2722 = vadd.f32 %v2561, %v2721
    %2723 = vdwg.mxu0
    %v2724 = vmax.f32 %v2646, 0.0
    %v2725 = vmax.f32 %v2648, 0.0
    %v2726 = vmax.f32 %v2650, 0.0
    %v2727 = vmax.f32 %v2652, 0.0
    %v2728 = vmax.f32 %v2656, 0.0
    %v2729 = vmax.f32 %v2658, 0.0
    %v2730 = vmax.f32 %v2660, 0.0
    %v2731 = vmax.f32 %v2662, 0.0
    %v2732 = vmax.f32 %v2666, 0.0
    %v2733 = vmax.f32 %v2668, 0.0
    %v2734 = vmax.f32 %v2670, 0.0
    %v2735 = vmax.f32 %v2672, 0.0
    %v2736 = vmax.f32 %v2676, 0.0
    %v2737 = vmax.f32 %v2678, 0.0
    %v2738 = vmax.f32 %v2680, 0.0
    %v2739 = vmax.f32 %v2682, 0.0
    %v2740 = vmax.f32 %v2686, 0.0
    %v2741 = vmax.f32 %v2688, 0.0
    %v2742 = vmax.f32 %v2690, 0.0
    %v2743 = vmax.f32 %v2692, 0.0
    %v2744 = vmax.f32 %v2696, 0.0
    %v2745 = vmax.f32 %v2698, 0.0
    %v2746 = vmax.f32 %v2700, 0.0
    %v2747 = vmax.f32 %v2702, 0.0
    %v2748 = vmax.f32 %v2706, 0.0
    %v2749 = vmax.f32 %v2708, 0.0
    %v2750 = vmax.f32 %v2710, 0.0
    %v2751 = vmax.f32 %v2712, 0.0
    %v2752 = vmax.f32 %v2716, 0.0
    %v2753 = vmax.f32 %v2718, 0.0
    %v2754 = vmax.f32 %v2720, 0.0
    %v2755 = vmax.f32 %v2722, 0.0
    %v2756 = vpack.c.bf16 %v2726, %v2724
    %v2757 = vpack.c.bf16 %v2727, %v2725
    %v2758 = vpack.c.bf16 %v2730, %v2728
    %v2759 = vpack.c.bf16 %v2731, %v2729
    %v2760 = vpack.c.bf16 %v2734, %v2732
    %v2761 = vpack.c.bf16 %v2735, %v2733
    %v2762 = vpack.c.bf16 %v2738, %v2736
    %v2763 = vpack.c.bf16 %v2739, %v2737
    %v2764 = vpack.c.bf16 %v2742, %v2740
    %v2765 = vpack.c.bf16 %v2743, %v2741
    %v2766 = vpack.c.bf16 %v2746, %v2744
    %v2767 = vpack.c.bf16 %v2747, %v2745
    %v2768 = vpack.c.bf16 %v2750, %v2748
    %v2769 = vpack.c.bf16 %v2751, %v2749
    %v2770 = vpack.c.bf16 %v2754, %v2752
    %v2771 = vpack.c.bf16 %v2755, %v2753
    %s2772 = scalar_lea.vmem [#allocation2], 320
    %v2773 = vld [vmem:[%s2772] sm:$0xf]
    %v2774 = vld [vmem:[%s2772 + $0x4] sm:$0xf]
    %v2775 = vld [vmem:[%s2772 + $0x8] sm:$0xf]
    %v2776 = vld [vmem:[%s2772 + $0xc] sm:$0xf]
    %v2777 = vld [vmem:[%s2772 + $0x10] sm:$0xf]
    %v2778 = vld [vmem:[%s2772 + $0x14] sm:$0xf]
    %v2779 = vld [vmem:[%s2772 + $0x18] sm:$0xf]
    %v2780 = vld [vmem:[%s2772 + $0x1c] sm:$0xf]
    %v2781 = vld [vmem:[%s2772 + $0x20] sm:$0xf]
    %v2782 = vld [vmem:[%s2772 + $0x24] sm:$0xf]
    %v2783 = vld [vmem:[%s2772 + $0x28] sm:$0xf]
    %v2784 = vld [vmem:[%s2772 + $0x2c] sm:$0xf]
    %v2785 = vld [vmem:[%s2772 + $0x30] sm:$0xf]
    %v2786 = vld [vmem:[%s2772 + $0x34] sm:$0xf]
    %v2787 = vld [vmem:[%s2772 + $0x38] sm:$0xf]
    %v2788 = vld [vmem:[%s2772 + $0x3c] sm:$0xf]
    %2789 = vset.pattern.permute.xlu0 8
    %2790 = vperm.xlu0 %2789, %v64
    %v2791 = vpop.permute.xlu0 %2790
    %2793 = vset.pattern.permute.xlu0 8
    %2794 = vperm.xlu0 %2793, %v65
    %v2795 = vpop.permute.xlu0 %2794
    %2797 = vset.pattern.permute.xlu0 8
    %2798 = vperm.xlu0 %2797, %v66
    %v2799 = vpop.permute.xlu0 %2798
    %2801 = vset.pattern.permute.xlu0 8
    %2802 = vperm.xlu0 %2801, %v67
    %v2803 = vpop.permute.xlu0 %2802
    %2805 = vset.pattern.permute.xlu0 8
    %2806 = vperm.xlu0 %2805, %v68
    %v2807 = vpop.permute.xlu0 %2806
    %2809 = vset.pattern.permute.xlu0 8
    %2810 = vperm.xlu0 %2809, %v69
    %v2811 = vpop.permute.xlu0 %2810
    %2813 = vset.pattern.permute.xlu0 8
    %2814 = vperm.xlu0 %2813, %v70
    %v2815 = vpop.permute.xlu0 %2814
    %2817 = vset.pattern.permute.xlu0 8
    %2818 = vperm.xlu0 %2817, %v71
    %v2819 = vpop.permute.xlu0 %2818
    %2821 = vset.pattern.permute.xlu0 8
    %2822 = vperm.xlu0 %2821, %v72
    %v2823 = vpop.permute.xlu0 %2822
    %2825 = vset.pattern.permute.xlu0 8
    %2826 = vperm.xlu0 %2825, %v73
    %v2827 = vpop.permute.xlu0 %2826
    %2829 = vset.pattern.permute.xlu0 8
    %2830 = vperm.xlu0 %2829, %v74
    %v2831 = vpop.permute.xlu0 %2830
    %2833 = vset.pattern.permute.xlu0 8
    %2834 = vperm.xlu0 %2833, %v75
    %v2835 = vpop.permute.xlu0 %2834
    %2837 = vset.pattern.permute.xlu0 8
    %2838 = vperm.xlu0 %2837, %v76
    %v2839 = vpop.permute.xlu0 %2838
    %2841 = vset.pattern.permute.xlu0 8
    %2842 = vperm.xlu0 %2841, %v77
    %v2843 = vpop.permute.xlu0 %2842
    %2845 = vset.pattern.permute.xlu0 8
    %2846 = vperm.xlu0 %2845, %v78
    %v2847 = vpop.permute.xlu0 %2846
    %2849 = vset.pattern.permute.xlu0 8
    %2850 = vperm.xlu0 %2849, %v79
    %v2851 = vpop.permute.xlu0 %2850
    %v2869 = vunpack.c.l.b16 %v2773
    %v2870 = vunpack.c.l.b16 %v2774
    %v2871 = vunpack.c.l.b16 %v2775
    %v2872 = vunpack.c.l.b16 %v2776
    %v2873 = vunpack.c.l.b16 %v2777
    %v2874 = vunpack.c.l.b16 %v2778
    %v2875 = vunpack.c.l.b16 %v2779
    %v2876 = vunpack.c.l.b16 %v2780
    %v2877 = vunpack.c.l.b16 %v2781
    %v2878 = vunpack.c.l.b16 %v2782
    %v2879 = vunpack.c.l.b16 %v2783
    %v2880 = vunpack.c.l.b16 %v2784
    %v2881 = vunpack.c.l.b16 %v2785
    %v2882 = vunpack.c.l.b16 %v2786
    %v2883 = vunpack.c.l.b16 %v2787
    %v2884 = vunpack.c.l.b16 %v2788
    %v2885 = vpack.c.b16 %v2870, %v2869
    %v2886 = vpack.c.b16 %v2872, %v2871
    %v2887 = vpack.c.b16 %v2874, %v2873
    %v2888 = vpack.c.b16 %v2876, %v2875
    %v2889 = vpack.c.b16 %v2878, %v2877
    %v2890 = vpack.c.b16 %v2880, %v2879
    %v2891 = vpack.c.b16 %v2882, %v2881
    %v2892 = vpack.c.b16 %v2884, %v2883
    %2901 = vmatprep.subr.bf16.mxu0 %v2771
    %2902 = vmatpush1.bf16.msra.mxu0 %v2770
    %2903 = vmatprep.subr.bf16.mxu0 %v2769
    %2904 = vmatpush1.bf16.msra.mxu0 %v2768
    %2905 = vmatprep.subr.bf16.mxu0 %v2767
    %2906 = vmatpush1.bf16.msra.mxu0 %v2766
    %2907 = vmatprep.subr.bf16.mxu0 %v2765
    %2908 = vmatpush1.bf16.msra.mxu0 %v2764
    %2909 = vmatprep.subr.bf16.mxu0 %v2763
    %2910 = vmatpush1.bf16.msra.mxu0 %v2762
    %2911 = vmatprep.subr.bf16.mxu0 %v2761
    %2912 = vmatpush1.bf16.msra.mxu0 %v2760
    %2913 = vmatprep.subr.bf16.mxu0 %v2759
    %2914 = vmatpush1.bf16.msra.mxu0 %v2758
    %2915 = vmatprep.subr.bf16.mxu0 %v2757
    %2916 = vmatpush1.bf16.msra.mxu0 %v2756
    %2917 = vmatprep.subr.bf16.mxu0 0
    %2918 = vmatpush2.bf16.msra.mxu0 0
    %2919 = vmatprep.subr.bf16.mxu0 0
    %2920 = vmatpush2.bf16.msra.mxu0 0
    %2921 = vmatprep.subr.bf16.mxu0 0
    %2922 = vmatpush2.bf16.msra.mxu0 0
    %2923 = vmatprep.subr.bf16.mxu0 0
    %2924 = vmatpush2.bf16.msra.mxu0 0
    %2925 = vmatprep.subr.bf16.mxu0 0
    %2926 = vmatpush2.bf16.msra.mxu0 0
    %2927 = vmatprep.subr.bf16.mxu0 0
    %2928 = vmatpush2.bf16.msra.mxu0 0
    %2929 = vmatprep.subr.bf16.mxu0 0
    %2930 = vmatpush2.bf16.msra.mxu0 0
    %2931 = vmatprep.subr.bf16.mxu0 0
    %2932 = vmatpush2.bf16.msra.mxu0 0
    %2933 = vmatprep.mubr.bf16.mxu0 0
    %2934 = vmatmul.mubr.bf16.gmra.mxu0 %v2885
    %v2935 = vpop.f32.mrf.mxu0
    %v2936 = vadd.f32 %v2791, %v2935
    %v2937 = vpop.f32.mrf.mxu0
    %v2938 = vadd.f32 %v2791, %v2937
    %v2939 = vpop.f32.mrf.mxu0
    %v2940 = vadd.f32 %v2795, %v2939
    %v2941 = vpop.f32.mrf.mxu0
    %v2942 = vadd.f32 %v2795, %v2941
    %2943 = vmatprep.mubr.bf16.mxu0 0
    %2944 = vmatmul.mubr.bf16.gmra.mxu0 %v2886
    %v2945 = vpop.f32.mrf.mxu0
    %v2946 = vadd.f32 %v2799, %v2945
    %v2947 = vpop.f32.mrf.mxu0
    %v2948 = vadd.f32 %v2799, %v2947
    %v2949 = vpop.f32.mrf.mxu0
    %v2950 = vadd.f32 %v2803, %v2949
    %v2951 = vpop.f32.mrf.mxu0
    %v2952 = vadd.f32 %v2803, %v2951
    %2953 = vmatprep.mubr.bf16.mxu0 0
    %2954 = vmatmul.mubr.bf16.gmra.mxu0 %v2887
    %v2955 = vpop.f32.mrf.mxu0
    %v2956 = vadd.f32 %v2807, %v2955
    %v2957 = vpop.f32.mrf.mxu0
    %v2958 = vadd.f32 %v2807, %v2957
    %v2959 = vpop.f32.mrf.mxu0
    %v2960 = vadd.f32 %v2811, %v2959
    %v2961 = vpop.f32.mrf.mxu0
    %v2962 = vadd.f32 %v2811, %v2961
    %2963 = vmatprep.mubr.bf16.mxu0 0
    %2964 = vmatmul.mubr.bf16.gmra.mxu0 %v2888
    %v2965 = vpop.f32.mrf.mxu0
    %v2966 = vadd.f32 %v2815, %v2965
    %v2967 = vpop.f32.mrf.mxu0
    %v2968 = vadd.f32 %v2815, %v2967
    %v2969 = vpop.f32.mrf.mxu0
    %v2970 = vadd.f32 %v2819, %v2969
    %v2971 = vpop.f32.mrf.mxu0
    %v2972 = vadd.f32 %v2819, %v2971
    %2973 = vmatprep.mubr.bf16.mxu0 0
    %2974 = vmatmul.mubr.bf16.gmra.mxu0 %v2889
    %v2975 = vpop.f32.mrf.mxu0
    %v2976 = vadd.f32 %v2823, %v2975
    %v2977 = vpop.f32.mrf.mxu0
    %v2978 = vadd.f32 %v2823, %v2977
    %v2979 = vpop.f32.mrf.mxu0
    %v2980 = vadd.f32 %v2827, %v2979
    %v2981 = vpop.f32.mrf.mxu0
    %v2982 = vadd.f32 %v2827, %v2981
    %2983 = vmatprep.mubr.bf16.mxu0 0
    %2984 = vmatmul.mubr.bf16.gmra.mxu0 %v2890
    %v2985 = vpop.f32.mrf.mxu0
    %v2986 = vadd.f32 %v2831, %v2985
    %v2987 = vpop.f32.mrf.mxu0
    %v2988 = vadd.f32 %v2831, %v2987
    %v2989 = vpop.f32.mrf.mxu0
    %v2990 = vadd.f32 %v2835, %v2989
    %v2991 = vpop.f32.mrf.mxu0
    %v2992 = vadd.f32 %v2835, %v2991
    %2993 = vmatprep.mubr.bf16.mxu0 0
    %2994 = vmatmul.mubr.bf16.gmra.mxu0 %v2891
    %v2995 = vpop.f32.mrf.mxu0
    %v2996 = vadd.f32 %v2839, %v2995
    %v2997 = vpop.f32.mrf.mxu0
    %v2998 = vadd.f32 %v2839, %v2997
    %v2999 = vpop.f32.mrf.mxu0
    %v3000 = vadd.f32 %v2843, %v2999
    %v3001 = vpop.f32.mrf.mxu0
    %v3002 = vadd.f32 %v2843, %v3001
    %3003 = vmatprep.mubr.bf16.mxu0 0
    %3004 = vmatmul.mubr.bf16.gmra.mxu0 %v2892
    %v3005 = vpop.f32.mrf.mxu0
    %v3006 = vadd.f32 %v2847, %v3005
    %v3007 = vpop.f32.mrf.mxu0
    %v3008 = vadd.f32 %v2847, %v3007
    %v3009 = vpop.f32.mrf.mxu0
    %v3010 = vadd.f32 %v2851, %v3009
    %v3011 = vpop.f32.mrf.mxu0
    %v3012 = vadd.f32 %v2851, %v3011
    %3013 = vdwg.mxu0
    %v3014 = vmax.f32 %v2936, 0.0
    %v3015 = vmax.f32 %v2938, 0.0
    %v3016 = vmax.f32 %v2940, 0.0
    %v3017 = vmax.f32 %v2942, 0.0
    %v3018 = vmax.f32 %v2946, 0.0
    %v3019 = vmax.f32 %v2948, 0.0
    %v3020 = vmax.f32 %v2950, 0.0
    %v3021 = vmax.f32 %v2952, 0.0
    %v3022 = vmax.f32 %v2956, 0.0
    %v3023 = vmax.f32 %v2958, 0.0
    %v3024 = vmax.f32 %v2960, 0.0
    %v3025 = vmax.f32 %v2962, 0.0
    %v3026 = vmax.f32 %v2966, 0.0
    %v3027 = vmax.f32 %v2968, 0.0
    %v3028 = vmax.f32 %v2970, 0.0
    %v3029 = vmax.f32 %v2972, 0.0
    %v3030 = vmax.f32 %v2976, 0.0
    %v3031 = vmax.f32 %v2978, 0.0
    %v3032 = vmax.f32 %v2980, 0.0
    %v3033 = vmax.f32 %v2982, 0.0
    %v3034 = vmax.f32 %v2986, 0.0
    %v3035 = vmax.f32 %v2988, 0.0
    %v3036 = vmax.f32 %v2990, 0.0
    %v3037 = vmax.f32 %v2992, 0.0
    %v3038 = vmax.f32 %v2996, 0.0
    %v3039 = vmax.f32 %v2998, 0.0
    %v3040 = vmax.f32 %v3000, 0.0
    %v3041 = vmax.f32 %v3002, 0.0
    %v3042 = vmax.f32 %v3006, 0.0
    %v3043 = vmax.f32 %v3008, 0.0
    %v3044 = vmax.f32 %v3010, 0.0
    %v3045 = vmax.f32 %v3012, 0.0
    %v3046 = vpack.c.bf16 %v3016, %v3014
    %v3047 = vpack.c.bf16 %v3017, %v3015
    %v3048 = vpack.c.bf16 %v3020, %v3018
    %v3049 = vpack.c.bf16 %v3021, %v3019
    %v3050 = vpack.c.bf16 %v3024, %v3022
    %v3051 = vpack.c.bf16 %v3025, %v3023
    %v3052 = vpack.c.bf16 %v3028, %v3026
    %v3053 = vpack.c.bf16 %v3029, %v3027
    %v3054 = vpack.c.bf16 %v3032, %v3030
    %v3055 = vpack.c.bf16 %v3033, %v3031
    %v3056 = vpack.c.bf16 %v3036, %v3034
    %v3057 = vpack.c.bf16 %v3037, %v3035
    %v3058 = vpack.c.bf16 %v3040, %v3038
    %v3059 = vpack.c.bf16 %v3041, %v3039
    %v3060 = vpack.c.bf16 %v3044, %v3042
    %v3061 = vpack.c.bf16 %v3045, %v3043
    %s3062 = scalar_lea.vmem [#allocation2], 384
    %v3063 = vld [vmem:[%s3062] sm:$0xf]
    %v3064 = vld [vmem:[%s3062 + $0x4] sm:$0xf]
    %v3065 = vld [vmem:[%s3062 + $0x8] sm:$0xf]
    %v3066 = vld [vmem:[%s3062 + $0xc] sm:$0xf]
    %v3067 = vld [vmem:[%s3062 + $0x10] sm:$0xf]
    %v3068 = vld [vmem:[%s3062 + $0x14] sm:$0xf]
    %v3069 = vld [vmem:[%s3062 + $0x18] sm:$0xf]
    %v3070 = vld [vmem:[%s3062 + $0x1c] sm:$0xf]
    %v3071 = vld [vmem:[%s3062 + $0x20] sm:$0xf]
    %v3072 = vld [vmem:[%s3062 + $0x24] sm:$0xf]
    %v3073 = vld [vmem:[%s3062 + $0x28] sm:$0xf]
    %v3074 = vld [vmem:[%s3062 + $0x2c] sm:$0xf]
    %v3075 = vld [vmem:[%s3062 + $0x30] sm:$0xf]
    %v3076 = vld [vmem:[%s3062 + $0x34] sm:$0xf]
    %v3077 = vld [vmem:[%s3062 + $0x38] sm:$0xf]
    %v3078 = vld [vmem:[%s3062 + $0x3c] sm:$0xf]
    %3079 = vset.pattern.permute.xlu0 9
    %3080 = vperm.xlu0 %3079, %v64
    %v3081 = vpop.permute.xlu0 %3080
    %3083 = vset.pattern.permute.xlu0 9
    %3084 = vperm.xlu0 %3083, %v65
    %v3085 = vpop.permute.xlu0 %3084
    %3087 = vset.pattern.permute.xlu0 9
    %3088 = vperm.xlu0 %3087, %v66
    %v3089 = vpop.permute.xlu0 %3088
    %3091 = vset.pattern.permute.xlu0 9
    %3092 = vperm.xlu0 %3091, %v67
    %v3093 = vpop.permute.xlu0 %3092
    %3095 = vset.pattern.permute.xlu0 9
    %3096 = vperm.xlu0 %3095, %v68
    %v3097 = vpop.permute.xlu0 %3096
    %3099 = vset.pattern.permute.xlu0 9
    %3100 = vperm.xlu0 %3099, %v69
    %v3101 = vpop.permute.xlu0 %3100
    %3103 = vset.pattern.permute.xlu0 9
    %3104 = vperm.xlu0 %3103, %v70
    %v3105 = vpop.permute.xlu0 %3104
    %3107 = vset.pattern.permute.xlu0 9
    %3108 = vperm.xlu0 %3107, %v71
    %v3109 = vpop.permute.xlu0 %3108
    %3111 = vset.pattern.permute.xlu0 9
    %3112 = vperm.xlu0 %3111, %v72
    %v3113 = vpop.permute.xlu0 %3112
    %3115 = vset.pattern.permute.xlu0 9
    %3116 = vperm.xlu0 %3115, %v73
    %v3117 = vpop.permute.xlu0 %3116
    %3119 = vset.pattern.permute.xlu0 9
    %3120 = vperm.xlu0 %3119, %v74
    %v3121 = vpop.permute.xlu0 %3120
    %3123 = vset.pattern.permute.xlu0 9
    %3124 = vperm.xlu0 %3123, %v75
    %v3125 = vpop.permute.xlu0 %3124
    %3127 = vset.pattern.permute.xlu0 9
    %3128 = vperm.xlu0 %3127, %v76
    %v3129 = vpop.permute.xlu0 %3128
    %3131 = vset.pattern.permute.xlu0 9
    %3132 = vperm.xlu0 %3131, %v77
    %v3133 = vpop.permute.xlu0 %3132
    %3135 = vset.pattern.permute.xlu0 9
    %3136 = vperm.xlu0 %3135, %v78
    %v3137 = vpop.permute.xlu0 %3136
    %3139 = vset.pattern.permute.xlu0 9
    %3140 = vperm.xlu0 %3139, %v79
    %v3141 = vpop.permute.xlu0 %3140
    %v3159 = vunpack.c.l.b16 %v3063
    %v3160 = vunpack.c.l.b16 %v3064
    %v3161 = vunpack.c.l.b16 %v3065
    %v3162 = vunpack.c.l.b16 %v3066
    %v3163 = vunpack.c.l.b16 %v3067
    %v3164 = vunpack.c.l.b16 %v3068
    %v3165 = vunpack.c.l.b16 %v3069
    %v3166 = vunpack.c.l.b16 %v3070
    %v3167 = vunpack.c.l.b16 %v3071
    %v3168 = vunpack.c.l.b16 %v3072
    %v3169 = vunpack.c.l.b16 %v3073
    %v3170 = vunpack.c.l.b16 %v3074
    %v3171 = vunpack.c.l.b16 %v3075
    %v3172 = vunpack.c.l.b16 %v3076
    %v3173 = vunpack.c.l.b16 %v3077
    %v3174 = vunpack.c.l.b16 %v3078
    %v3175 = vpack.c.b16 %v3160, %v3159
    %v3176 = vpack.c.b16 %v3162, %v3161
    %v3177 = vpack.c.b16 %v3164, %v3163
    %v3178 = vpack.c.b16 %v3166, %v3165
    %v3179 = vpack.c.b16 %v3168, %v3167
    %v3180 = vpack.c.b16 %v3170, %v3169
    %v3181 = vpack.c.b16 %v3172, %v3171
    %v3182 = vpack.c.b16 %v3174, %v3173
    %3191 = vmatprep.subr.bf16.mxu0 %v3061
    %3192 = vmatpush1.bf16.msra.mxu0 %v3060
    %3193 = vmatprep.subr.bf16.mxu0 %v3059
    %3194 = vmatpush1.bf16.msra.mxu0 %v3058
    %3195 = vmatprep.subr.bf16.mxu0 %v3057
    %3196 = vmatpush1.bf16.msra.mxu0 %v3056
    %3197 = vmatprep.subr.bf16.mxu0 %v3055
    %3198 = vmatpush1.bf16.msra.mxu0 %v3054
    %3199 = vmatprep.subr.bf16.mxu0 %v3053
    %3200 = vmatpush1.bf16.msra.mxu0 %v3052
    %3201 = vmatprep.subr.bf16.mxu0 %v3051
    %3202 = vmatpush1.bf16.msra.mxu0 %v3050
    %3203 = vmatprep.subr.bf16.mxu0 %v3049
    %3204 = vmatpush1.bf16.msra.mxu0 %v3048
    %3205 = vmatprep.subr.bf16.mxu0 %v3047
    %3206 = vmatpush1.bf16.msra.mxu0 %v3046
    %3207 = vmatprep.subr.bf16.mxu0 0
    %3208 = vmatpush2.bf16.msra.mxu0 0
    %3209 = vmatprep.subr.bf16.mxu0 0
    %3210 = vmatpush2.bf16.msra.mxu0 0
    %3211 = vmatprep.subr.bf16.mxu0 0
    %3212 = vmatpush2.bf16.msra.mxu0 0
    %3213 = vmatprep.subr.bf16.mxu0 0
    %3214 = vmatpush2.bf16.msra.mxu0 0
    %3215 = vmatprep.subr.bf16.mxu0 0
    %3216 = vmatpush2.bf16.msra.mxu0 0
    %3217 = vmatprep.subr.bf16.mxu0 0
    %3218 = vmatpush2.bf16.msra.mxu0 0
    %3219 = vmatprep.subr.bf16.mxu0 0
    %3220 = vmatpush2.bf16.msra.mxu0 0
    %3221 = vmatprep.subr.bf16.mxu0 0
    %3222 = vmatpush2.bf16.msra.mxu0 0
    %3223 = vmatprep.mubr.bf16.mxu0 0
    %3224 = vmatmul.mubr.bf16.gmra.mxu0 %v3175
    %v3225 = vpop.f32.mrf.mxu0
    %v3226 = vadd.f32 %v3081, %v3225
    %v3227 = vpop.f32.mrf.mxu0
    %v3228 = vadd.f32 %v3081, %v3227
    %v3229 = vpop.f32.mrf.mxu0
    %v3230 = vadd.f32 %v3085, %v3229
    %v3231 = vpop.f32.mrf.mxu0
    %v3232 = vadd.f32 %v3085, %v3231
    %3233 = vmatprep.mubr.bf16.mxu0 0
    %3234 = vmatmul.mubr.bf16.gmra.mxu0 %v3176
    %v3235 = vpop.f32.mrf.mxu0
    %v3236 = vadd.f32 %v3089, %v3235
    %v3237 = vpop.f32.mrf.mxu0
    %v3238 = vadd.f32 %v3089, %v3237
    %v3239 = vpop.f32.mrf.mxu0
    %v3240 = vadd.f32 %v3093, %v3239
    %v3241 = vpop.f32.mrf.mxu0
    %v3242 = vadd.f32 %v3093, %v3241
    %3243 = vmatprep.mubr.bf16.mxu0 0
    %3244 = vmatmul.mubr.bf16.gmra.mxu0 %v3177
    %v3245 = vpop.f32.mrf.mxu0
    %v3246 = vadd.f32 %v3097, %v3245
    %v3247 = vpop.f32.mrf.mxu0
    %v3248 = vadd.f32 %v3097, %v3247
    %v3249 = vpop.f32.mrf.mxu0
    %v3250 = vadd.f32 %v3101, %v3249
    %v3251 = vpop.f32.mrf.mxu0
    %v3252 = vadd.f32 %v3101, %v3251
    %3253 = vmatprep.mubr.bf16.mxu0 0
    %3254 = vmatmul.mubr.bf16.gmra.mxu0 %v3178
    %v3255 = vpop.f32.mrf.mxu0
    %v3256 = vadd.f32 %v3105, %v3255
    %v3257 = vpop.f32.mrf.mxu0
    %v3258 = vadd.f32 %v3105, %v3257
    %v3259 = vpop.f32.mrf.mxu0
    %v3260 = vadd.f32 %v3109, %v3259
    %v3261 = vpop.f32.mrf.mxu0
    %v3262 = vadd.f32 %v3109, %v3261
    %3263 = vmatprep.mubr.bf16.mxu0 0
    %3264 = vmatmul.mubr.bf16.gmra.mxu0 %v3179
    %v3265 = vpop.f32.mrf.mxu0
    %v3266 = vadd.f32 %v3113, %v3265
    %v3267 = vpop.f32.mrf.mxu0
    %v3268 = vadd.f32 %v3113, %v3267
    %v3269 = vpop.f32.mrf.mxu0
    %v3270 = vadd.f32 %v3117, %v3269
    %v3271 = vpop.f32.mrf.mxu0
    %v3272 = vadd.f32 %v3117, %v3271
    %3273 = vmatprep.mubr.bf16.mxu0 0
    %3274 = vmatmul.mubr.bf16.gmra.mxu0 %v3180
    %v3275 = vpop.f32.mrf.mxu0
    %v3276 = vadd.f32 %v3121, %v3275
    %v3277 = vpop.f32.mrf.mxu0
    %v3278 = vadd.f32 %v3121, %v3277
    %v3279 = vpop.f32.mrf.mxu0
    %v3280 = vadd.f32 %v3125, %v3279
    %v3281 = vpop.f32.mrf.mxu0
    %v3282 = vadd.f32 %v3125, %v3281
    %3283 = vmatprep.mubr.bf16.mxu0 0
    %3284 = vmatmul.mubr.bf16.gmra.mxu0 %v3181
    %v3285 = vpop.f32.mrf.mxu0
    %v3286 = vadd.f32 %v3129, %v3285
    %v3287 = vpop.f32.mrf.mxu0
    %v3288 = vadd.f32 %v3129, %v3287
    %v3289 = vpop.f32.mrf.mxu0
    %v3290 = vadd.f32 %v3133, %v3289
    %v3291 = vpop.f32.mrf.mxu0
    %v3292 = vadd.f32 %v3133, %v3291
    %3293 = vmatprep.mubr.bf16.mxu0 0
    %3294 = vmatmul.mubr.bf16.gmra.mxu0 %v3182
    %v3295 = vpop.f32.mrf.mxu0
    %v3296 = vadd.f32 %v3137, %v3295
    %v3297 = vpop.f32.mrf.mxu0
    %v3298 = vadd.f32 %v3137, %v3297
    %v3299 = vpop.f32.mrf.mxu0
    %v3300 = vadd.f32 %v3141, %v3299
    %v3301 = vpop.f32.mrf.mxu0
    %v3302 = vadd.f32 %v3141, %v3301
    %3303 = vdwg.mxu0
    %v3304 = vmax.f32 %v3226, 0.0
    %v3305 = vmax.f32 %v3228, 0.0
    %v3306 = vmax.f32 %v3230, 0.0
    %v3307 = vmax.f32 %v3232, 0.0
    %v3308 = vmax.f32 %v3236, 0.0
    %v3309 = vmax.f32 %v3238, 0.0
    %v3310 = vmax.f32 %v3240, 0.0
    %v3311 = vmax.f32 %v3242, 0.0
    %v3312 = vmax.f32 %v3246, 0.0
    %v3313 = vmax.f32 %v3248, 0.0
    %v3314 = vmax.f32 %v3250, 0.0
    %v3315 = vmax.f32 %v3252, 0.0
    %v3316 = vmax.f32 %v3256, 0.0
    %v3317 = vmax.f32 %v3258, 0.0
    %v3318 = vmax.f32 %v3260, 0.0
    %v3319 = vmax.f32 %v3262, 0.0
    %v3320 = vmax.f32 %v3266, 0.0
    %v3321 = vmax.f32 %v3268, 0.0
    %v3322 = vmax.f32 %v3270, 0.0
    %v3323 = vmax.f32 %v3272, 0.0
    %v3324 = vmax.f32 %v3276, 0.0
    %v3325 = vmax.f32 %v3278, 0.0
    %v3326 = vmax.f32 %v3280, 0.0
    %v3327 = vmax.f32 %v3282, 0.0
    %v3328 = vmax.f32 %v3286, 0.0
    %v3329 = vmax.f32 %v3288, 0.0
    %v3330 = vmax.f32 %v3290, 0.0
    %v3331 = vmax.f32 %v3292, 0.0
    %v3332 = vmax.f32 %v3296, 0.0
    %v3333 = vmax.f32 %v3298, 0.0
    %v3334 = vmax.f32 %v3300, 0.0
    %v3335 = vmax.f32 %v3302, 0.0
    %v3336 = vpack.c.bf16 %v3306, %v3304
    %v3337 = vpack.c.bf16 %v3307, %v3305
    %v3338 = vpack.c.bf16 %v3310, %v3308
    %v3339 = vpack.c.bf16 %v3311, %v3309
    %v3340 = vpack.c.bf16 %v3314, %v3312
    %v3341 = vpack.c.bf16 %v3315, %v3313
    %v3342 = vpack.c.bf16 %v3318, %v3316
    %v3343 = vpack.c.bf16 %v3319, %v3317
    %v3344 = vpack.c.bf16 %v3322, %v3320
    %v3345 = vpack.c.bf16 %v3323, %v3321
    %v3346 = vpack.c.bf16 %v3326, %v3324
    %v3347 = vpack.c.bf16 %v3327, %v3325
    %v3348 = vpack.c.bf16 %v3330, %v3328
    %v3349 = vpack.c.bf16 %v3331, %v3329
    %v3350 = vpack.c.bf16 %v3334, %v3332
    %v3351 = vpack.c.bf16 %v3335, %v3333
    %s3352 = scalar_lea.vmem [#allocation2], 448
    %v3353 = vld [vmem:[%s3352] sm:$0xf]
    %v3354 = vld [vmem:[%s3352 + $0x4] sm:$0xf]
    %v3355 = vld [vmem:[%s3352 + $0x8] sm:$0xf]
    %v3356 = vld [vmem:[%s3352 + $0xc] sm:$0xf]
    %v3357 = vld [vmem:[%s3352 + $0x10] sm:$0xf]
    %v3358 = vld [vmem:[%s3352 + $0x14] sm:$0xf]
    %v3359 = vld [vmem:[%s3352 + $0x18] sm:$0xf]
    %v3360 = vld [vmem:[%s3352 + $0x1c] sm:$0xf]
    %v3361 = vld [vmem:[%s3352 + $0x20] sm:$0xf]
    %v3362 = vld [vmem:[%s3352 + $0x24] sm:$0xf]
    %v3363 = vld [vmem:[%s3352 + $0x28] sm:$0xf]
    %v3364 = vld [vmem:[%s3352 + $0x2c] sm:$0xf]
    %v3365 = vld [vmem:[%s3352 + $0x30] sm:$0xf]
    %v3366 = vld [vmem:[%s3352 + $0x34] sm:$0xf]
    %v3367 = vld [vmem:[%s3352 + $0x38] sm:$0xf]
    %v3368 = vld [vmem:[%s3352 + $0x3c] sm:$0xf]
    %3369 = vset.pattern.permute.xlu0 10
    %3370 = vperm.xlu0 %3369, %v64
    %v3371 = vpop.permute.xlu0 %3370
    %3373 = vset.pattern.permute.xlu0 10
    %3374 = vperm.xlu0 %3373, %v65
    %v3375 = vpop.permute.xlu0 %3374
    %3377 = vset.pattern.permute.xlu0 10
    %3378 = vperm.xlu0 %3377, %v66
    %v3379 = vpop.permute.xlu0 %3378
    %3381 = vset.pattern.permute.xlu0 10
    %3382 = vperm.xlu0 %3381, %v67
    %v3383 = vpop.permute.xlu0 %3382
    %3385 = vset.pattern.permute.xlu0 10
    %3386 = vperm.xlu0 %3385, %v68
    %v3387 = vpop.permute.xlu0 %3386
    %3389 = vset.pattern.permute.xlu0 10
    %3390 = vperm.xlu0 %3389, %v69
    %v3391 = vpop.permute.xlu0 %3390
    %3393 = vset.pattern.permute.xlu0 10
    %3394 = vperm.xlu0 %3393, %v70
    %v3395 = vpop.permute.xlu0 %3394
    %3397 = vset.pattern.permute.xlu0 10
    %3398 = vperm.xlu0 %3397, %v71
    %v3399 = vpop.permute.xlu0 %3398
    %3401 = vset.pattern.permute.xlu0 10
    %3402 = vperm.xlu0 %3401, %v72
    %v3403 = vpop.permute.xlu0 %3402
    %3405 = vset.pattern.permute.xlu0 10
    %3406 = vperm.xlu0 %3405, %v73
    %v3407 = vpop.permute.xlu0 %3406
    %3409 = vset.pattern.permute.xlu0 10
    %3410 = vperm.xlu0 %3409, %v74
    %v3411 = vpop.permute.xlu0 %3410
    %3413 = vset.pattern.permute.xlu0 10
    %3414 = vperm.xlu0 %3413, %v75
    %v3415 = vpop.permute.xlu0 %3414
    %3417 = vset.pattern.permute.xlu0 10
    %3418 = vperm.xlu0 %3417, %v76
    %v3419 = vpop.permute.xlu0 %3418
    %3421 = vset.pattern.permute.xlu0 10
    %3422 = vperm.xlu0 %3421, %v77
    %v3423 = vpop.permute.xlu0 %3422
    %3425 = vset.pattern.permute.xlu0 10
    %3426 = vperm.xlu0 %3425, %v78
    %v3427 = vpop.permute.xlu0 %3426
    %3429 = vset.pattern.permute.xlu0 10
    %3430 = vperm.xlu0 %3429, %v79
    %v3431 = vpop.permute.xlu0 %3430
    %v3449 = vunpack.c.l.b16 %v3353
    %v3450 = vunpack.c.l.b16 %v3354
    %v3451 = vunpack.c.l.b16 %v3355
    %v3452 = vunpack.c.l.b16 %v3356
    %v3453 = vunpack.c.l.b16 %v3357
    %v3454 = vunpack.c.l.b16 %v3358
    %v3455 = vunpack.c.l.b16 %v3359
    %v3456 = vunpack.c.l.b16 %v3360
    %v3457 = vunpack.c.l.b16 %v3361
    %v3458 = vunpack.c.l.b16 %v3362
    %v3459 = vunpack.c.l.b16 %v3363
    %v3460 = vunpack.c.l.b16 %v3364
    %v3461 = vunpack.c.l.b16 %v3365
    %v3462 = vunpack.c.l.b16 %v3366
    %v3463 = vunpack.c.l.b16 %v3367
    %v3464 = vunpack.c.l.b16 %v3368
    %v3465 = vpack.c.b16 %v3450, %v3449
    %v3466 = vpack.c.b16 %v3452, %v3451
    %v3467 = vpack.c.b16 %v3454, %v3453
    %v3468 = vpack.c.b16 %v3456, %v3455
    %v3469 = vpack.c.b16 %v3458, %v3457
    %v3470 = vpack.c.b16 %v3460, %v3459
    %v3471 = vpack.c.b16 %v3462, %v3461
    %v3472 = vpack.c.b16 %v3464, %v3463
    %3481 = vmatprep.subr.bf16.mxu0 %v3351
    %3482 = vmatpush1.bf16.msra.mxu0 %v3350
    %3483 = vmatprep.subr.bf16.mxu0 %v3349
    %3484 = vmatpush1.bf16.msra.mxu0 %v3348
    %3485 = vmatprep.subr.bf16.mxu0 %v3347
    %3486 = vmatpush1.bf16.msra.mxu0 %v3346
    %3487 = vmatprep.subr.bf16.mxu0 %v3345
    %3488 = vmatpush1.bf16.msra.mxu0 %v3344
    %3489 = vmatprep.subr.bf16.mxu0 %v3343
    %3490 = vmatpush1.bf16.msra.mxu0 %v3342
    %3491 = vmatprep.subr.bf16.mxu0 %v3341
    %3492 = vmatpush1.bf16.msra.mxu0 %v3340
    %3493 = vmatprep.subr.bf16.mxu0 %v3339
    %3494 = vmatpush1.bf16.msra.mxu0 %v3338
    %3495 = vmatprep.subr.bf16.mxu0 %v3337
    %3496 = vmatpush1.bf16.msra.mxu0 %v3336
    %3497 = vmatprep.subr.bf16.mxu0 0
    %3498 = vmatpush2.bf16.msra.mxu0 0
    %3499 = vmatprep.subr.bf16.mxu0 0
    %3500 = vmatpush2.bf16.msra.mxu0 0
    %3501 = vmatprep.subr.bf16.mxu0 0
    %3502 = vmatpush2.bf16.msra.mxu0 0
    %3503 = vmatprep.subr.bf16.mxu0 0
    %3504 = vmatpush2.bf16.msra.mxu0 0
    %3505 = vmatprep.subr.bf16.mxu0 0
    %3506 = vmatpush2.bf16.msra.mxu0 0
    %3507 = vmatprep.subr.bf16.mxu0 0
    %3508 = vmatpush2.bf16.msra.mxu0 0
    %3509 = vmatprep.subr.bf16.mxu0 0
    %3510 = vmatpush2.bf16.msra.mxu0 0
    %3511 = vmatprep.subr.bf16.mxu0 0
    %3512 = vmatpush2.bf16.msra.mxu0 0
    %3513 = vmatprep.mubr.bf16.mxu0 0
    %3514 = vmatmul.mubr.bf16.gmra.mxu0 %v3465
    %v3515 = vpop.f32.mrf.mxu0
    %v3516 = vadd.f32 %v3371, %v3515
    %v3517 = vpop.f32.mrf.mxu0
    %v3518 = vadd.f32 %v3371, %v3517
    %v3519 = vpop.f32.mrf.mxu0
    %v3520 = vadd.f32 %v3375, %v3519
    %v3521 = vpop.f32.mrf.mxu0
    %v3522 = vadd.f32 %v3375, %v3521
    %3523 = vmatprep.mubr.bf16.mxu0 0
    %3524 = vmatmul.mubr.bf16.gmra.mxu0 %v3466
    %v3525 = vpop.f32.mrf.mxu0
    %v3526 = vadd.f32 %v3379, %v3525
    %v3527 = vpop.f32.mrf.mxu0
    %v3528 = vadd.f32 %v3379, %v3527
    %v3529 = vpop.f32.mrf.mxu0
    %v3530 = vadd.f32 %v3383, %v3529
    %v3531 = vpop.f32.mrf.mxu0
    %v3532 = vadd.f32 %v3383, %v3531
    %3533 = vmatprep.mubr.bf16.mxu0 0
    %3534 = vmatmul.mubr.bf16.gmra.mxu0 %v3467
    %v3535 = vpop.f32.mrf.mxu0
    %v3536 = vadd.f32 %v3387, %v3535
    %v3537 = vpop.f32.mrf.mxu0
    %v3538 = vadd.f32 %v3387, %v3537
    %v3539 = vpop.f32.mrf.mxu0
    %v3540 = vadd.f32 %v3391, %v3539
    %v3541 = vpop.f32.mrf.mxu0
    %v3542 = vadd.f32 %v3391, %v3541
    %3543 = vmatprep.mubr.bf16.mxu0 0
    %3544 = vmatmul.mubr.bf16.gmra.mxu0 %v3468
    %v3545 = vpop.f32.mrf.mxu0
    %v3546 = vadd.f32 %v3395, %v3545
    %v3547 = vpop.f32.mrf.mxu0
    %v3548 = vadd.f32 %v3395, %v3547
    %v3549 = vpop.f32.mrf.mxu0
    %v3550 = vadd.f32 %v3399, %v3549
    %v3551 = vpop.f32.mrf.mxu0
    %v3552 = vadd.f32 %v3399, %v3551
    %3553 = vmatprep.mubr.bf16.mxu0 0
    %3554 = vmatmul.mubr.bf16.gmra.mxu0 %v3469
    %v3555 = vpop.f32.mrf.mxu0
    %v3556 = vadd.f32 %v3403, %v3555
    %v3557 = vpop.f32.mrf.mxu0
    %v3558 = vadd.f32 %v3403, %v3557
    %v3559 = vpop.f32.mrf.mxu0
    %v3560 = vadd.f32 %v3407, %v3559
    %v3561 = vpop.f32.mrf.mxu0
    %v3562 = vadd.f32 %v3407, %v3561
    %3563 = vmatprep.mubr.bf16.mxu0 0
    %3564 = vmatmul.mubr.bf16.gmra.mxu0 %v3470
    %v3565 = vpop.f32.mrf.mxu0
    %v3566 = vadd.f32 %v3411, %v3565
    %v3567 = vpop.f32.mrf.mxu0
    %v3568 = vadd.f32 %v3411, %v3567
    %v3569 = vpop.f32.mrf.mxu0
    %v3570 = vadd.f32 %v3415, %v3569
    %v3571 = vpop.f32.mrf.mxu0
    %v3572 = vadd.f32 %v3415, %v3571
    %3573 = vmatprep.mubr.bf16.mxu0 0
    %3574 = vmatmul.mubr.bf16.gmra.mxu0 %v3471
    %v3575 = vpop.f32.mrf.mxu0
    %v3576 = vadd.f32 %v3419, %v3575
    %v3577 = vpop.f32.mrf.mxu0
    %v3578 = vadd.f32 %v3419, %v3577
    %v3579 = vpop.f32.mrf.mxu0
    %v3580 = vadd.f32 %v3423, %v3579
    %v3581 = vpop.f32.mrf.mxu0
    %v3582 = vadd.f32 %v3423, %v3581
    %3583 = vmatprep.mubr.bf16.mxu0 0
    %3584 = vmatmul.mubr.bf16.gmra.mxu0 %v3472
    %v3585 = vpop.f32.mrf.mxu0
    %v3586 = vadd.f32 %v3427, %v3585
    %v3587 = vpop.f32.mrf.mxu0
    %v3588 = vadd.f32 %v3427, %v3587
    %v3589 = vpop.f32.mrf.mxu0
    %v3590 = vadd.f32 %v3431, %v3589
    %v3591 = vpop.f32.mrf.mxu0
    %v3592 = vadd.f32 %v3431, %v3591
    %3593 = vdwg.mxu0
    %v3594 = vmax.f32 %v3516, 0.0
    %v3595 = vmax.f32 %v3518, 0.0
    %v3596 = vmax.f32 %v3520, 0.0
    %v3597 = vmax.f32 %v3522, 0.0
    %v3598 = vmax.f32 %v3526, 0.0
    %v3599 = vmax.f32 %v3528, 0.0
    %v3600 = vmax.f32 %v3530, 0.0
    %v3601 = vmax.f32 %v3532, 0.0
    %v3602 = vmax.f32 %v3536, 0.0
    %v3603 = vmax.f32 %v3538, 0.0
    %v3604 = vmax.f32 %v3540, 0.0
    %v3605 = vmax.f32 %v3542, 0.0
    %v3606 = vmax.f32 %v3546, 0.0
    %v3607 = vmax.f32 %v3548, 0.0
    %v3608 = vmax.f32 %v3550, 0.0
    %v3609 = vmax.f32 %v3552, 0.0
    %v3610 = vmax.f32 %v3556, 0.0
    %v3611 = vmax.f32 %v3558, 0.0
    %v3612 = vmax.f32 %v3560, 0.0
    %v3613 = vmax.f32 %v3562, 0.0
    %v3614 = vmax.f32 %v3566, 0.0
    %v3615 = vmax.f32 %v3568, 0.0
    %v3616 = vmax.f32 %v3570, 0.0
    %v3617 = vmax.f32 %v3572, 0.0
    %v3618 = vmax.f32 %v3576, 0.0
    %v3619 = vmax.f32 %v3578, 0.0
    %v3620 = vmax.f32 %v3580, 0.0
    %v3621 = vmax.f32 %v3582, 0.0
    %v3622 = vmax.f32 %v3586, 0.0
    %v3623 = vmax.f32 %v3588, 0.0
    %v3624 = vmax.f32 %v3590, 0.0
    %v3625 = vmax.f32 %v3592, 0.0
    %v3626 = vpack.c.bf16 %v3596, %v3594
    %v3627 = vpack.c.bf16 %v3597, %v3595
    %v3628 = vpack.c.bf16 %v3600, %v3598
    %v3629 = vpack.c.bf16 %v3601, %v3599
    %v3630 = vpack.c.bf16 %v3604, %v3602
    %v3631 = vpack.c.bf16 %v3605, %v3603
    %v3632 = vpack.c.bf16 %v3608, %v3606
    %v3633 = vpack.c.bf16 %v3609, %v3607
    %v3634 = vpack.c.bf16 %v3612, %v3610
    %v3635 = vpack.c.bf16 %v3613, %v3611
    %v3636 = vpack.c.bf16 %v3616, %v3614
    %v3637 = vpack.c.bf16 %v3617, %v3615
    %v3638 = vpack.c.bf16 %v3620, %v3618
    %v3639 = vpack.c.bf16 %v3621, %v3619
    %v3640 = vpack.c.bf16 %v3624, %v3622
    %v3641 = vpack.c.bf16 %v3625, %v3623
    %v3642 = vld [vmem:[%s5] sm:$0xf]
    %v3643 = vld [vmem:[%s5 + $0x4] sm:$0xf]
    %v3646 = vunpack.c.l.b16 %v3642
    %v3647 = vunpack.c.l.b16 %v3643
    %v3648 = vpack.c.b16 %v3647, %v3646
    %3650 = vmatprep.subr.bf16.mxu0 %v3641
    %3651 = vmatpush1.bf16.msra.mxu0 %v3640
    %3652 = vmatprep.subr.bf16.mxu0 %v3639
    %3653 = vmatpush1.bf16.msra.mxu0 %v3638
    %3654 = vmatprep.subr.bf16.mxu0 %v3637
    %3655 = vmatpush1.bf16.msra.mxu0 %v3636
    %3656 = vmatprep.subr.bf16.mxu0 %v3635
    %3657 = vmatpush1.bf16.msra.mxu0 %v3634
    %3658 = vmatprep.subr.bf16.mxu0 %v3633
    %3659 = vmatpush1.bf16.msra.mxu0 %v3632
    %3660 = vmatprep.subr.bf16.mxu0 %v3631
    %3661 = vmatpush1.bf16.msra.mxu0 %v3630
    %3662 = vmatprep.subr.bf16.mxu0 %v3629
    %3663 = vmatpush1.bf16.msra.mxu0 %v3628
    %3664 = vmatprep.subr.bf16.mxu0 %v3627
    %3665 = vmatpush1.bf16.msra.mxu0 %v3626
    %3666 = vmatprep.subr.bf16.mxu0 0
    %3667 = vmatpush2.bf16.msra.mxu0 0
    %3668 = vmatprep.subr.bf16.mxu0 0
    %3669 = vmatpush2.bf16.msra.mxu0 0
    %3670 = vmatprep.subr.bf16.mxu0 0
    %3671 = vmatpush2.bf16.msra.mxu0 0
    %3672 = vmatprep.subr.bf16.mxu0 0
    %3673 = vmatpush2.bf16.msra.mxu0 0
    %3674 = vmatprep.subr.bf16.mxu0 0
    %3675 = vmatpush2.bf16.msra.mxu0 0
    %3676 = vmatprep.subr.bf16.mxu0 0
    %3677 = vmatpush2.bf16.msra.mxu0 0
    %3678 = vmatprep.subr.bf16.mxu0 0
    %3679 = vmatpush2.bf16.msra.mxu0 0
    %3680 = vmatprep.subr.bf16.mxu0 0
    %3681 = vmatpush2.bf16.msra.mxu0 0
    %3682 = vmatprep.mubr.bf16.mxu0 0
    %3683 = vmatmul.mubr.bf16.gmra.mxu0 %v3648
    %v3684 = vpop.f32.mrf.mxu0
    %v3685 = vadd.f32 0.0, %v3684
    %v3686 = vpop.f32.mrf.mxu0
    %v3687 = vadd.f32 0.0, %v3686
    %v3688 = vpop.f32.mrf.mxu0
    %v3689 = vpop.f32.mrf.mxu0
    %3690 = vdwg.mxu0
    %v3691 = vld [vmem:[%s6] sm:$0x1]
    %3693 = vset.pattern.permute.xlu0 11
    %3694 = vperm.xlu0 %3693, %v3691
    %v3695 = vpop.permute.xlu0 %3694
    %v3697 = vadd.f32 %v3685, %v3695
    %v3698 = vadd.f32 %v3687, %v3695
    %v3701 = vcombine.low %v3697, %v3698
    %v3703 = vunpack.c.l.s4 1966171168
    %v3704 = vunpack.c.0.s8 %v3703
    %v3705 = vlaneseq
    %v3706 = vshrl.u32 %v3705, 7
    %v3707 = vsub.s32 %v3704, %v3706
    %v3708 = vrot.slane %v3701, %v3707
    %v3710 = vunpack.c.l.s4 1966171168
    %v3711 = vunpack.c.0.s8 %v3710
    %v3712 = vlaneseq
    %v3713 = vshrl.u32 %v3712, 7
    %v3714 = vsub.s32 %v3711, %v3713
    %v3715 = vrot.slane %v3708, %v3714
    %v3717 = vlaneseq
    %vm3718 = vcmp.ge.s32.totalorder %v3717, 0
    %vm3719 = vcmp.lt.s32.totalorder %v3717, 256
    %vm3720 = vmand %vm3718, %vm3719
    %3721 = vst.msk [vmem:[#allocation5] sm:$0x3] %vm3720, %v3715
    // Predicated region
    $region34: #{tpu_custom_call.1} parent=1 // pred_check
      _
    $region35: #{tpu_custom_call.1} parent=1 // pred_check_branch
      %3723 = sbr.rel (0) target = $region37
    $region36: #{tpu_custom_call.1} parent=1 // pred_region
      %s3725 = ssub.s32 32, 32
      %3726 = vsyncadd [#allocation4], %s3725
      %s3728 = sshll.u32 [#allocation5], 4
      %s3729 = int_to_ptr.vmem [resolvable:$true] %s3728
      %3731 = dma.vmem_to_hbm [thread:$0]  %s3729, 32, %s7, [#allocation4]
    $region37: #{tpu_custom_call.1} parent=1 // pred_fallthru
      _
    // Predicated region
    $region38: #{tpu_custom_call.1} parent=1 // pred_check
      _
    $region39: #{tpu_custom_call.1} parent=1 // pred_check_branch
      %3733 = sbr.rel (0) target = $region41
    $region40: #{tpu_custom_call.1} parent=1 // pred_region
      %3734 = dma.done [#allocation4], 32
    $region41: #{tpu_custom_call.1} parent=1 // pred_fallthru
      _
    %3735 = vsyncpa [#allocation3], 1
    %3736 = vsyncpa [#allocation4], 1

</llo_original>
